<compile_context>
chip_gen: v6e
topology: v6e:2x2x1
jax: 0.10.0
libtpu: 0.0.40
codegen_flags: <defaults>
</compile_context>

<pallas_src>
import functools
import math

import jax
import jax.numpy as jnp
from jax.experimental import pallas as pl
from jax.experimental.pallas import tpu as pltpu

_HAS_BUFFERED = hasattr(pl, "Buffered")


def _round_up(n, m):
    return -(-n // m) * m


def _tpu_config():
    """Per-generation VMEM budget and GELU compute dtype (safe fallbacks)."""
    vmem_budget = 48 * 1024 * 1024          # safe on every generation (v7x: 64 MiB/TC)
    gelu_dtype = jnp.bfloat16               # v6e / v7x have a bf16 VPU / EUP path
    try:
        info = pltpu.get_tpu_info()
        cap = getattr(info, "vmem_capacity_bytes", None)
        if cap:
            vmem_budget = int(cap) * 3 // 4  # ~96 MiB on v5e/v6e, ~48 MiB on v7x
        ver = str(getattr(info, "chip_version", "")).lower()
        if "5" in ver:                       # v5e: no bf16 VPU/EUP -> keep GELU in f32
            gelu_dtype = jnp.float32
    except Exception:                        # not on TPU / older jax: keep defaults
        pass
    return vmem_budget, gelu_dtype


def _choose_tile_m(N, C, hid_pad, io_bytes, vmem_budget, gelu_bytes):
    """Row-tile size: ~2 MiB of x per buffer, >=2 grid steps, VMEM-bounded."""
    target_rows = (2 * 1024 * 1024) // max(1, C * io_bytes)
    tile_m = 256
    while tile_m < 4096 and tile_m * 2 <= target_rows:
        tile_m *= 2
    # v7x has 2 TensorCores: keep at least 2 row-grid steps so the "parallel"
    # axis can shard across both cores (v5e/v6e are single-TC, no harm there).
    while tile_m > 256 and -(-N // tile_m) < 2:
        tile_m //= 2

    def vmem_est(tm):
        xo = 2 * 2 * tm * C * io_bytes                          # double-buffered x + out
        inter = tm * (3 * C * 4 + hid_pad * (4 + gelu_bytes))   # f32 ln/y + fc1/GELU h
        w = 2 * 2 * 2 * C * hid_pad                             # bf16 w1+w2 (<=2 bufs)
        return xo + inter + w

    while tile_m > 256 and vmem_est(tile_m) > vmem_budget:
        tile_m //= 2
    return tile_m


def grootv_kernel(x_ref, vec_ref, c1_ref, w1_ref, w2_ref, o_ref, *, eps, gelu_dtype):
    x = x_ref[...].astype(jnp.float32)                        # (TM, C) residual in f32
    c = x.shape[-1]
    inv_c = jnp.float32(1.0 / c)

    vec = vec_ref[...].astype(jnp.float32)                    # (5, C): g1,b1,g2,b2,fc2-bias
    g1 = vec[0:1, :]
    b1 = vec[1:2, :]
    g2 = vec[2:3, :]
    b2 = vec[3:4, :]
    c2 = vec[4:5, :]

    def layernorm(v, gamma, beta):
        # One-pass mean / variance (E[x^2] - mu^2): one full-tile pass fewer.
        mu = jnp.sum(v, axis=-1, keepdims=True) * inv_c
        ex2 = jnp.sum(v * v, axis=-1, keepdims=True) * inv_c
        var = ex2 - mu * mu
        return (v - mu) * jax.lax.rsqrt(var + eps) * gamma + beta

    # --- branch 1: x = x + TreeSSM(LN1(x)) ---
    ln1 = layernorm(x, g1, b1)
    # TODO(synk): Tree_SSM definition unavailable in the reference source ->
    # identity substitution on the LN1 output.
    y = x + ln1

    # --- branch 2: x = x + fc2(GELU(fc1(LN2(x)))) ---
    ln2 = layernorm(y, g2, b2)
    h = jnp.dot(ln2.astype(jnp.bfloat16), w1_ref[...],
                preferred_element_type=jnp.float32)
    # Fused bias-add + GELU in `gelu_dtype` (bf16 on v6e/v7x, f32 on v5e).
    h = (h + c1_ref[...].astype(jnp.float32)).astype(gelu_dtype)
    h = jax.nn.gelu(h, approximate=True)           # tanh GELU -> EUP slot
    m = jnp.dot(h.astype(jnp.bfloat16), w2_ref[...],
                preferred_element_type=jnp.float32) + c2

    o_ref[...] = (y + m).astype(o_ref.dtype)


def _build_call(*, N, tile_m, C, hid_pad, eps, x_dtype, gelu_dtype, vmem_limit):
    kernel = functools.partial(grootv_kernel, eps=eps, gelu_dtype=gelu_dtype)

    # x / out row tiles: last dim is the TRUE C (== full array dim, so the
    # (8,128) constraint does not apply); ragged rows handled by cdiv grid.
    row_spec = pl.BlockSpec((tile_m, C), lambda i: (i, 0))

    if _HAS_BUFFERED:
        # Constant-index (resident) parameter blocks: single buffer saves VMEM.
        def pspec(shape):
            return pl.BlockSpec(shape, lambda i: (0, 0),
                                pipeline_mode=pl.Buffered(1))
    else:
        def pspec(shape):
            return pl.BlockSpec(shape, lambda i: (0, 0))

    io_bytes = jnp.dtype(x_dtype).itemsize
    weight_bytes = 2 * 2 * C * hid_pad                         # bf16 w1 + w2
    cost = pl.CostEstimate(
        flops=4 * N * C * hid_pad,                             # fc1 + fc2
        transcendentals=N * hid_pad,                           # tanh in GELU
        bytes_accessed=2 * N * C * io_bytes + weight_bytes + 4 * (5 * C + hid_pad))

    return pl.pallas_call(
        kernel,
        out_shape=jax.ShapeDtypeStruct((N, C), x_dtype),
        grid_spec=pltpu.PrefetchScalarGridSpec(
            num_scalar_prefetch=0,
            grid=(pl.cdiv(N, tile_m),),
            in_specs=[
                row_spec,                    # x row tile (true C, no lane pad)
                pspec((5, C)),               # packed [g1, b1, g2, b2, fc2-bias]
                pspec((1, hid_pad)),         # fc1 bias
                pspec((C, hid_pad)),         # fc1 weight (bf16, transposed)
                pspec((hid_pad, C)),         # fc2 weight (bf16, transposed)
            ],
            out_specs=row_spec,
        ),
        compiler_params=pltpu.CompilerParams(
            dimension_semantics=("parallel",),
            vmem_limit_bytes=vmem_limit),
        cost_estimate=cost,
    )


def grootv_layer(x, params, *, eps=1e-6):
    """GrootVLayer forward.  x: channels-last (..., C).  Returns same shape/dtype."""
    *lead, C = x.shape
    N = math.prod(lead)
    hid = params["w1"].shape[1]
    hid_pad = _round_up(max(hid, 128), 128)    # MLP intermediate lane-dense

    vmem_budget, gelu_dtype = _tpu_config()
    io_bytes = jnp.dtype(x.dtype).itemsize
    gelu_bytes = jnp.dtype(gelu_dtype).itemsize
    tile_m = _choose_tile_m(N, C, hid_pad, io_bytes, vmem_budget, gelu_bytes)

    # ---- pack / pad the (small) parameters once, outside the kernel ----
    def vec(name, width):
        v = params[name].reshape(1, -1).astype(jnp.float32)
        return jnp.pad(v, ((0, 0), (0, width - v.shape[1])))

    packed = jnp.concatenate(
        [vec("g1", C), vec("b1", C), vec("g2", C), vec("b2", C), vec("c2", C)],
        axis=0)                                                        # (5, C)
    c1 = vec("c1", hid_pad)                                            # (1, Hp)
    w1 = jnp.pad(params["w1"].astype(jnp.bfloat16),
                 ((0, 0), (0, hid_pad - hid)))                         # (C, Hp)
    w2 = jnp.pad(params["w2"].astype(jnp.bfloat16),
                 ((0, hid_pad - hid), (0, 0)))                         # (Hp, C)

    # x / out are NOT padded or sliced: no extra HBM round trips.
    x2d = x.reshape(N, C)

    vmem_limit = int(min(vmem_budget, 100 * 1024 * 1024))
    call = _build_call(N=N, tile_m=tile_m, C=C, hid_pad=hid_pad, eps=eps,
                       x_dtype=x.dtype, gelu_dtype=gelu_dtype,
                       vmem_limit=vmem_limit)
    out2d = call(x2d, packed, c1, w1, w2)
    return out2d.reshape(*lead, C)


def make_params(channels, mlp_ratio=4.0, dtype=jnp.float32, seed=0):
    hidden = int(channels * mlp_ratio)
    k1, k2, k3, k4 = jax.random.split(jax.random.PRNGKey(seed), 4)
    return dict(
        # LayerNorm: ones / zeros (PyTorch default init).
        g1=jnp.ones((channels,), dtype), b1=jnp.zeros((channels,), dtype),
        g2=jnp.ones((channels,), dtype), b2=jnp.zeros((channels,), dtype),
        # Linear weights stored transposed for x @ W layout.
        w1=jax.random.normal(k1, (channels, hidden), dtype) * 0.02,
        c1=jax.random.normal(k2, (hidden,), dtype) * 0.02,
        w2=jax.random.normal(k3, (hidden, channels), dtype) * 0.02,
        c2=jax.random.normal(k4, (channels,), dtype) * 0.02,
    )


def grootv_ref(x, p, eps=1e-6):
    """Pure-JAX reference doing the same math (identity TreeSSM, bf16 dots, tanh GELU)."""
    shape = x.shape
    C = shape[-1]
    x2 = x.reshape(-1, C).astype(jnp.float32)

    def ln(v, g, b):
        mu = jnp.mean(v, axis=-1, keepdims=True)
        xc = v - mu
        var = jnp.mean(xc * xc, axis=-1, keepdims=True)
        return xc * jax.lax.rsqrt(var + eps) * g.reshape(1, -1) + b.reshape(1, -1)

    ln1 = ln(x2, p["g1"].astype(jnp.float32), p["b1"].astype(jnp.float32))
    y = x2 + ln1
    ln2 = ln(y, p["g2"].astype(jnp.float32), p["b2"].astype(jnp.float32))
    w1 = p["w1"].astype(jnp.bfloat16)
    w2 = p["w2"].astype(jnp.bfloat16)
    h = jnp.dot(ln2.astype(jnp.bfloat16), w1,
                preferred_element_type=jnp.float32) + p["c1"].reshape(1, -1).astype(jnp.float32)
    h = jax.nn.gelu(h, approximate=True)
    m = jnp.dot(h.astype(jnp.bfloat16), w2,
                preferred_element_type=jnp.float32) + p["c2"].reshape(1, -1).astype(jnp.float32)
    return (y + m).astype(x.dtype).reshape(shape)


if __name__ == "__main__":
    # Small, module-consistent shapes: GrootV default stage-0 channels=80,
    # mlp_ratio=4 -> hidden=320.  Wrapper flattens all leading dims, so both
    # (B,H,W,C) and the 3D (B,T,H,W,C) layouts work; here: N = 2*2*16*16 = 1024.
    B, T, H, W, C = 2, 2, 16, 16, 80
    key = jax.random.PRNGKey(0)
    x = jax.random.normal(key, (B, T, H, W, C), jnp.float32)
    params = make_params(C, mlp_ratio=4.0)

    out = grootv_layer(x, params)
    out = jax.block_until_ready(out)

    ref = grootv_ref(x, params)
    assert out.shape == x.shape and out.dtype == x.dtype
    err = float(jnp.max(jnp.abs(out.astype(jnp.float32) - ref.astype(jnp.float32))))
    assert err < 2e-2, f"mismatch vs reference: max abs err {err}"
    print("KERNEL_OK")
</pallas_src>

<mosaic_0001>
module attributes {stable_mosaic.version = 11 : i64} {
  func.func @grootv_kernel(%arg0: i32, %arg1: memref<512x80xf32, #tpu.memory_space<vmem>>, %arg2: memref<5x80xf32, #tpu.memory_space<vmem>>, %arg3: memref<1x384xf32, #tpu.memory_space<vmem>>, %arg4: memref<80x384xbf16, #tpu.memory_space<vmem>>, %arg5: memref<384x80xbf16, #tpu.memory_space<vmem>>, %arg6: memref<512x80xf32, #tpu.memory_space<vmem>>) attributes {dimension_semantics = [#tpu.dimension_semantics<parallel>], iteration_bounds = array<i64: 2>, scalar_prefetch = 0 : i64, scratch_operands = 0 : i64, tpu.core_type = #tpu.core_type<tc>, window_params = [{transform_indices = @transform_0, window_bounds = array<i64: 512, 80>}, {pipeline_mode = #tpu.pipeline_mode<synchronous>, transform_indices = @transform_1, window_bounds = array<i64: 5, 80>}, {pipeline_mode = #tpu.pipeline_mode<synchronous>, transform_indices = @transform_2, window_bounds = array<i64: 1, 384>}, {pipeline_mode = #tpu.pipeline_mode<synchronous>, transform_indices = @transform_3, window_bounds = array<i64: 80, 384>}, {pipeline_mode = #tpu.pipeline_mode<synchronous>, transform_indices = @transform_4, window_bounds = array<i64: 384, 80>}, {transform_indices = @transform_5, window_bounds = array<i64: 512, 80>}]} {
    %c0 = arith.constant 0 : index
    %c0_0 = arith.constant 0 : index
    %0 = vector.load %arg1[%c0, %c0_0] : memref<512x80xf32, #tpu.memory_space<vmem>>, vector<512x80xf32>
    %c0_1 = arith.constant 0 : index
    %c0_2 = arith.constant 0 : index
    %1 = vector.load %arg2[%c0_1, %c0_2] : memref<5x80xf32, #tpu.memory_space<vmem>>, vector<5x80xf32>
    %2 = vector.extract_strided_slice %1 {offsets = [0, 0], sizes = [1, 80], strides = [1, 1]} : vector<5x80xf32> to vector<1x80xf32>
    %3 = vector.extract_strided_slice %1 {offsets = [1, 0], sizes = [1, 80], strides = [1, 1]} : vector<5x80xf32> to vector<1x80xf32>
    %4 = vector.extract_strided_slice %1 {offsets = [2, 0], sizes = [1, 80], strides = [1, 1]} : vector<5x80xf32> to vector<1x80xf32>
    %5 = vector.extract_strided_slice %1 {offsets = [3, 0], sizes = [1, 80], strides = [1, 1]} : vector<5x80xf32> to vector<1x80xf32>
    %6 = vector.extract_strided_slice %1 {offsets = [4, 0], sizes = [1, 80], strides = [1, 1]} : vector<5x80xf32> to vector<1x80xf32>
    %cst = arith.constant dense<0.000000e+00> : vector<512xf32>
    %7 = vector.multi_reduction <add>, %0, %cst [1] : vector<512x80xf32> to vector<512xf32>
    %8 = vector.shape_cast %7 : vector<512xf32> to vector<512x1xf32>
    %cst_3 = arith.constant 1.250000e-02 : f32
    %9 = vector.broadcast %cst_3 : f32 to vector<512x1xf32>
    %10 = arith.mulf %8, %9 : vector<512x1xf32>
    %11 = arith.mulf %0, %0 : vector<512x80xf32>
    %cst_4 = arith.constant dense<0.000000e+00> : vector<512xf32>
    %12 = vector.multi_reduction <add>, %11, %cst_4 [1] : vector<512x80xf32> to vector<512xf32>
    %13 = vector.shape_cast %12 : vector<512xf32> to vector<512x1xf32>
    %cst_5 = arith.constant 1.250000e-02 : f32
    %14 = vector.broadcast %cst_5 : f32 to vector<512x1xf32>
    %15 = arith.mulf %13, %14 : vector<512x1xf32>
    %16 = arith.mulf %10, %10 : vector<512x1xf32>
    %17 = arith.subf %15, %16 : vector<512x1xf32>
    %18 = vector.broadcast %10 : vector<512x1xf32> to vector<512x80xf32>
    %19 = arith.subf %0, %18 : vector<512x80xf32>
    %cst_6 = arith.constant 9.99999997E-7 : f32
    %20 = vector.broadcast %cst_6 : f32 to vector<512x1xf32>
    %21 = arith.addf %17, %20 : vector<512x1xf32>
    %22 = math.rsqrt %21 : vector<512x1xf32>
    %23 = vector.broadcast %22 : vector<512x1xf32> to vector<512x80xf32>
    %24 = arith.mulf %19, %23 : vector<512x80xf32>
    %25 = vector.broadcast %2 : vector<1x80xf32> to vector<512x80xf32>
    %26 = arith.mulf %24, %25 : vector<512x80xf32>
    %27 = vector.broadcast %3 : vector<1x80xf32> to vector<512x80xf32>
    %28 = arith.addf %26, %27 : vector<512x80xf32>
    %29 = arith.addf %0, %28 : vector<512x80xf32>
    %cst_7 = arith.constant dense<0.000000e+00> : vector<512xf32>
    %30 = vector.multi_reduction <add>, %29, %cst_7 [1] : vector<512x80xf32> to vector<512xf32>
    %31 = vector.shape_cast %30 : vector<512xf32> to vector<512x1xf32>
    %cst_8 = arith.constant 1.250000e-02 : f32
    %32 = vector.broadcast %cst_8 : f32 to vector<512x1xf32>
    %33 = arith.mulf %31, %32 : vector<512x1xf32>
    %34 = arith.mulf %29, %29 : vector<512x80xf32>
    %cst_9 = arith.constant dense<0.000000e+00> : vector<512xf32>
    %35 = vector.multi_reduction <add>, %34, %cst_9 [1] : vector<512x80xf32> to vector<512xf32>
    %36 = vector.shape_cast %35 : vector<512xf32> to vector<512x1xf32>
    %cst_10 = arith.constant 1.250000e-02 : f32
    %37 = vector.broadcast %cst_10 : f32 to vector<512x1xf32>
    %38 = arith.mulf %36, %37 : vector<512x1xf32>
    %39 = arith.mulf %33, %33 : vector<512x1xf32>
    %40 = arith.subf %38, %39 : vector<512x1xf32>
    %41 = vector.broadcast %33 : vector<512x1xf32> to vector<512x80xf32>
    %42 = arith.subf %29, %41 : vector<512x80xf32>
    %cst_11 = arith.constant 9.99999997E-7 : f32
    %43 = vector.broadcast %cst_11 : f32 to vector<512x1xf32>
    %44 = arith.addf %40, %43 : vector<512x1xf32>
    %45 = math.rsqrt %44 : vector<512x1xf32>
    %46 = vector.broadcast %45 : vector<512x1xf32> to vector<512x80xf32>
    %47 = arith.mulf %42, %46 : vector<512x80xf32>
    %48 = vector.broadcast %4 : vector<1x80xf32> to vector<512x80xf32>
    %49 = arith.mulf %47, %48 : vector<512x80xf32>
    %50 = vector.broadcast %5 : vector<1x80xf32> to vector<512x80xf32>
    %51 = arith.addf %49, %50 : vector<512x80xf32>
    %52 = arith.truncf %51 : vector<512x80xf32> to vector<512x80xbf16>
    %c0_12 = arith.constant 0 : index
    %c0_13 = arith.constant 0 : index
    %53 = vector.load %arg4[%c0_12, %c0_13] : memref<80x384xbf16, #tpu.memory_space<vmem>>, vector<80x384xbf16>
    %cst_14 = arith.constant dense<0.000000e+00> : vector<512x384xf32>
    %54 = tpu.matmul %52, %53, %cst_14 {dimension_numbers = #tpu.dot_dimension_numbers<[1], [0], [0], [1], [0, 0, 1, 1], [], []>} : vector<512x80xbf16>, vector<80x384xbf16>, vector<512x384xf32> -> vector<512x384xf32>
    %c0_15 = arith.constant 0 : index
    %c0_16 = arith.constant 0 : index
    %55 = vector.load %arg3[%c0_15, %c0_16] : memref<1x384xf32, #tpu.memory_space<vmem>>, vector<1x384xf32>
    %56 = vector.broadcast %55 : vector<1x384xf32> to vector<512x384xf32>
    %57 = arith.addf %54, %56 : vector<512x384xf32>
    %58 = arith.truncf %57 : vector<512x384xf32> to vector<512x384xbf16>
    %59 = arith.mulf %58, %58 : vector<512x384xbf16>
    %60 = arith.mulf %58, %59 : vector<512x384xbf16>
    %cst_17 = arith.constant 4.467770e-02 : bf16
    %61 = vector.broadcast %cst_17 : bf16 to vector<512x384xbf16>
    %62 = arith.mulf %61, %60 : vector<512x384xbf16>
    %63 = arith.addf %58, %62 : vector<512x384xbf16>
    %cst_18 = arith.constant 7.968750e-01 : bf16
    %64 = vector.broadcast %cst_18 : bf16 to vector<512x384xbf16>
    %65 = arith.mulf %64, %63 : vector<512x384xbf16>
    %66 = math.tanh %65 : vector<512x384xbf16>
    %cst_19 = arith.constant 1.000000e+00 : bf16
    %67 = vector.broadcast %cst_19 : bf16 to vector<512x384xbf16>
    %68 = arith.addf %67, %66 : vector<512x384xbf16>
    %cst_20 = arith.constant 5.000000e-01 : bf16
    %69 = vector.broadcast %cst_20 : bf16 to vector<512x384xbf16>
    %70 = arith.mulf %69, %68 : vector<512x384xbf16>
    %71 = arith.mulf %58, %70 : vector<512x384xbf16>
    %c0_21 = arith.constant 0 : index
    %c0_22 = arith.constant 0 : index
    %72 = vector.load %arg5[%c0_21, %c0_22] : memref<384x80xbf16, #tpu.memory_space<vmem>>, vector<384x80xbf16>
    %cst_23 = arith.constant dense<0.000000e+00> : vector<512x80xf32>
    %73 = tpu.matmul %71, %72, %cst_23 {dimension_numbers = #tpu.dot_dimension_numbers<[1], [0], [0], [1], [0, 0, 1, 1], [], []>} : vector<512x384xbf16>, vector<384x80xbf16>, vector<512x80xf32> -> vector<512x80xf32>
    %74 = vector.broadcast %6 : vector<1x80xf32> to vector<512x80xf32>
    %75 = arith.addf %73, %74 : vector<512x80xf32>
    %76 = arith.addf %29, %75 : vector<512x80xf32>
    %c0_24 = arith.constant 0 : index
    %c0_25 = arith.constant 0 : index
    %77 = vector.load %arg6[%c0_24, %c0_25] : memref<512x80xf32, #tpu.memory_space<vmem>>, vector<512x80xf32>
    tpu.vector_store %arg6[%c0_24, %c0_25], %76 {strides = array<i32>} : memref<512x80xf32, #tpu.memory_space<vmem>>, vector<512x80xf32>,
    return
  }
  func.func @transform_0(%arg0: i32) -> (i32, i32) {
    %c0_i32 = arith.constant 0 : i32
    %c0_i32_0 = arith.constant 0 : i32
    return %arg0, %c0_i32 : i32, i32
  }
  func.func @transform_1(%arg0: i32) -> (i32, i32) {
    %c0_i32 = arith.constant 0 : i32
    %c0_i32_0 = arith.constant 0 : i32
    %c0_i32_1 = arith.constant 0 : i32
    return %c0_i32, %c0_i32_0 : i32, i32
  }
  func.func @transform_2(%arg0: i32) -> (i32, i32) {
    %c0_i32 = arith.constant 0 : i32
    %c0_i32_0 = arith.constant 0 : i32
    %c0_i32_1 = arith.constant 0 : i32
    return %c0_i32, %c0_i32_0 : i32, i32
  }
  func.func @transform_3(%arg0: i32) -> (i32, i32) {
    %c0_i32 = arith.constant 0 : i32
    %c0_i32_0 = arith.constant 0 : i32
    %c0_i32_1 = arith.constant 0 : i32
    return %c0_i32, %c0_i32_0 : i32, i32
  }
  func.func @transform_4(%arg0: i32) -> (i32, i32) {
    %c0_i32 = arith.constant 0 : i32
    %c0_i32_0 = arith.constant 0 : i32
    %c0_i32_1 = arith.constant 0 : i32
    return %c0_i32, %c0_i32_0 : i32, i32
  }
  func.func @transform_5(%arg0: i32) -> (i32, i32) {
    %c0_i32 = arith.constant 0 : i32
    %c0_i32_0 = arith.constant 0 : i32
    return %arg0, %c0_i32 : i32, i32
  }
}

</mosaic_0001>

<llo_original>
// kernel: tpu_custom_call.1
$region0: #{tpu_custom_call.1}
  #allocation0 [shape = 'u32[]', space=smem, size = 0x4, offset = 0x4, fixed_abs, tag = 'smem constant byte address 0x4 - core index']
  #allocation1 [shape = 'u32[144,128]{1,0:T(1,128)}', space=vmem, size = 0x12000, scoped, tag = 'internal scratch']
  %s0 = inlined_call_operand.vmem [shape: f32[1024,80], index: 0, kind: input, shape index: {}]
  %s1 = inlined_call_operand.vmem [shape: f32[5,80], index: 1, kind: input, shape index: {}]
  %s2 = inlined_call_operand.vmem [shape: f32[1,384], index: 2, kind: input, shape index: {}]
  %s3 = inlined_call_operand.vmem [shape: bf16[80,384], index: 3, kind: input, shape index: {}]
  %s4 = inlined_call_operand.vmem [shape: bf16[384,80], index: 4, kind: input, shape index: {}]
  %s5 = inlined_call_operand.vmem [shape: f32[1024,80], index: 5, kind: output, shape index: {}]
  %s6 = sld [smem:[#allocation0]]
  $region53: #{tpu_custom_call.1} parent=0
    _
  %s8 = ssub.s32 1, %s6
  %s9 = scalar_select 0, %s8, %s6
  loop: start=0, step=1, limit=4
  $region2: #{tpu_custom_call.1} parent=0 // loop_pre_header
    _
  $region3: #{tpu_custom_call.1} parent=0 // loop_header
    %s11 = sphi 0, %s15
    %p12 = scmp.ge.s32.totalorder %s11, 4
    %s21 = sphi 0, %s23
    %s24 = sphi 0, %s21
    %s25 = sphi 0, %s24
    %s41 = sphi 0, %s25
    %s45 = sphi 0, %s45
    %s47 = sphi 0, %s45
    %s48 = sphi 0, %s47
    %s62 = sphi 0, %s48
    %s66 = sphi 0, %s66
    %s68 = sphi 0, %s66
    %s69 = sphi 0, %s68
    %s83 = sphi 0, %s69
    %s87 = sphi 0, %s87
    %s89 = sphi 0, %s87
    %s90 = sphi 0, %s89
    %s104 = sphi 0, %s90
    %s108 = sphi 0, %s108
    %s110 = sphi 0, %s108
    %s111 = sphi 0, %s110
    %s125 = sphi 0, %s111
    %s131 = sphi 0, %s133
    %s134 = sphi 0, %s131
    %s135 = sphi 0, %s134
    %s151 = sphi 0, %s135
  $region4: #{tpu_custom_call.1} parent=0 // loop_header_branch
    %14 = sbr.rel (%p12) target = $region8
  $region5: #{tpu_custom_call.1} parent=0 // loop_body
    %s16 = ssub.s32 %s11, 1
    %s17 = ssub.s32 %s11, 2
    %s18 = sadd.s32 %s11, 1
    %s19 = ssub.s32 %s11, %s18
    %p20 = scmp.eq.s32.totalorder %s19, 0
    %s22 = sadd.s32 %s21, 1
    %s23 = scalar_select %p20, %s21, %s22
    %p26 = pneg %p20
    %p27 = scmp.eq.s32.totalorder %s11, 1
    %p28 = por %p26, %p27
    %p29 = scmp.ne.s32.totalorder %s21, %s24
    %p30 = scmp.eq.s32.totalorder %s11, 0
    %p31 = por %p29, %p30
    %p32 = scmp.ne.s32.totalorder %s21, %s24
    %p33 = scmp.eq.s32.totalorder %s16, 1
    %p34 = por %p32, %p33
    %p35 = scmp.ne.s32.totalorder %s24, %s25
    %p36 = scmp.eq.s32.totalorder %s16, 0
    %p37 = por %p35, %p36
    %p38 = scmp.ne.s32.totalorder %s24, %s25
    %p39 = scmp.eq.s32.totalorder %s17, 1
    %p40 = por %p38, %p39
    %p42 = scmp.ne.s32.totalorder %s25, %s41
    %p43 = scmp.eq.s32.totalorder %s17, 0
    %p44 = por %p42, %p43
    %s46 = sadd.s32 %s45, 1
    %p49 = scmp.eq.s32.totalorder %s11, 1
    %p50 = scmp.ne.s32.totalorder %s45, %s47
    %p51 = scmp.eq.s32.totalorder %s11, 0
    %p52 = por %p50, %p51
    %p53 = scmp.ne.s32.totalorder %s45, %s47
    %p54 = scmp.eq.s32.totalorder %s16, 1
    %p55 = por %p53, %p54
    %p56 = scmp.ne.s32.totalorder %s47, %s48
    %p57 = scmp.eq.s32.totalorder %s16, 0
    %p58 = por %p56, %p57
    %p59 = scmp.ne.s32.totalorder %s47, %s48
    %p60 = scmp.eq.s32.totalorder %s17, 1
    %p61 = por %p59, %p60
    %p63 = scmp.ne.s32.totalorder %s48, %s62
    %p64 = scmp.eq.s32.totalorder %s17, 0
    %p65 = por %p63, %p64
    %s67 = sadd.s32 %s66, 1
    %p70 = scmp.eq.s32.totalorder %s11, 1
    %p71 = scmp.ne.s32.totalorder %s66, %s68
    %p72 = scmp.eq.s32.totalorder %s11, 0
    %p73 = por %p71, %p72
    %p74 = scmp.ne.s32.totalorder %s66, %s68
    %p75 = scmp.eq.s32.totalorder %s16, 1
    %p76 = por %p74, %p75
    %p77 = scmp.ne.s32.totalorder %s68, %s69
    %p78 = scmp.eq.s32.totalorder %s16, 0
    %p79 = por %p77, %p78
    %p80 = scmp.ne.s32.totalorder %s68, %s69
    %p81 = scmp.eq.s32.totalorder %s17, 1
    %p82 = por %p80, %p81
    %p84 = scmp.ne.s32.totalorder %s69, %s83
    %p85 = scmp.eq.s32.totalorder %s17, 0
    %p86 = por %p84, %p85
    %s88 = sadd.s32 %s87, 1
    %p91 = scmp.eq.s32.totalorder %s11, 1
    %p92 = scmp.ne.s32.totalorder %s87, %s89
    %p93 = scmp.eq.s32.totalorder %s11, 0
    %p94 = por %p92, %p93
    %p95 = scmp.ne.s32.totalorder %s87, %s89
    %p96 = scmp.eq.s32.totalorder %s16, 1
    %p97 = por %p95, %p96
    %p98 = scmp.ne.s32.totalorder %s89, %s90
    %p99 = scmp.eq.s32.totalorder %s16, 0
    %p100 = por %p98, %p99
    %p101 = scmp.ne.s32.totalorder %s89, %s90
    %p102 = scmp.eq.s32.totalorder %s17, 1
    %p103 = por %p101, %p102
    %p105 = scmp.ne.s32.totalorder %s90, %s104
    %p106 = scmp.eq.s32.totalorder %s17, 0
    %p107 = por %p105, %p106
    %s109 = sadd.s32 %s108, 1
    %p112 = scmp.eq.s32.totalorder %s11, 1
    %p113 = scmp.ne.s32.totalorder %s108, %s110
    %p114 = scmp.eq.s32.totalorder %s11, 0
    %p115 = por %p113, %p114
    %p116 = scmp.ne.s32.totalorder %s108, %s110
    %p117 = scmp.eq.s32.totalorder %s16, 1
    %p118 = por %p116, %p117
    %p119 = scmp.ne.s32.totalorder %s110, %s111
    %p120 = scmp.eq.s32.totalorder %s16, 0
    %p121 = por %p119, %p120
    %p122 = scmp.ne.s32.totalorder %s110, %s111
    %p123 = scmp.eq.s32.totalorder %s17, 1
    %p124 = por %p122, %p123
    %p126 = scmp.ne.s32.totalorder %s111, %s125
    %p127 = scmp.eq.s32.totalorder %s17, 0
    %p128 = por %p126, %p127
    %s129 = ssub.s32 %s11, %s18
    %p130 = scmp.eq.s32.totalorder %s129, 0
    %s132 = sadd.s32 %s131, 1
    %s133 = scalar_select %p130, %s131, %s132
    %p136 = pneg %p130
    %p137 = scmp.eq.s32.totalorder %s11, 1
    %p138 = por %p136, %p137
    %p139 = scmp.ne.s32.totalorder %s131, %s134
    %p140 = scmp.eq.s32.totalorder %s11, 0
    %p141 = por %p139, %p140
    %p142 = scmp.ne.s32.totalorder %s131, %s134
    %p143 = scmp.eq.s32.totalorder %s16, 1
    %p144 = por %p142, %p143
    %p145 = scmp.ne.s32.totalorder %s134, %s135
    %p146 = scmp.eq.s32.totalorder %s16, 0
    %p147 = por %p145, %p146
    %p148 = scmp.ne.s32.totalorder %s134, %s135
    %p149 = scmp.eq.s32.totalorder %s17, 1
    %p150 = por %p148, %p149
    %p152 = scmp.ne.s32.totalorder %s135, %s151
    %p153 = scmp.eq.s32.totalorder %s17, 0
    %p154 = por %p152, %p153
    %p155 = scmp.le.s32.totalorder 1, %s11
    %p156 = scmp.lt.s32.totalorder %s11, 3
    %p157 = pnand %p155, %p156
    %p158 = pneg %p157
    // Predicated region
    $region9: #{tpu_custom_call.1} parent=5 // pred_check
      _
    $region10: #{tpu_custom_call.1} parent=5 // pred_check_branch
      %160 = sbr.rel (%p157) target = $region12
    $region11: #{tpu_custom_call.1} parent=5 // pred_region
      %s161 = ssub.s32 %s11, 1
      // Predicated region
      $region13: #{tpu_custom_call.1} parent=11 // pred_check
        %p162 = pneg %p58
      $region14: #{tpu_custom_call.1} parent=11 // pred_check_branch
        %164 = sbr.rel (%p162) target = $region16
      $region15: #{tpu_custom_call.1} parent=11 // pred_region
        _
      $region16: #{tpu_custom_call.1} parent=11 // pred_fallthru
        _
      // Predicated region
      $region17: #{tpu_custom_call.1} parent=11 // pred_check
        %p165 = pneg %p79
      $region18: #{tpu_custom_call.1} parent=11 // pred_check_branch
        %167 = sbr.rel (%p165) target = $region20
      $region19: #{tpu_custom_call.1} parent=11 // pred_region
        _
      $region20: #{tpu_custom_call.1} parent=11 // pred_fallthru
        _
      // Predicated region
      $region21: #{tpu_custom_call.1} parent=11 // pred_check
        %p168 = pneg %p100
      $region22: #{tpu_custom_call.1} parent=11 // pred_check_branch
        %170 = sbr.rel (%p168) target = $region24
      $region23: #{tpu_custom_call.1} parent=11 // pred_region
        _
      $region24: #{tpu_custom_call.1} parent=11 // pred_fallthru
        _
      // Predicated region
      $region25: #{tpu_custom_call.1} parent=11 // pred_check
        %p171 = pneg %p121
      $region26: #{tpu_custom_call.1} parent=11 // pred_check_branch
        %173 = sbr.rel (%p171) target = $region28
      $region27: #{tpu_custom_call.1} parent=11 // pred_region
        _
      $region28: #{tpu_custom_call.1} parent=11 // pred_fallthru
        _
    $region12: #{tpu_custom_call.1} parent=5 // pred_fallthru
      _
    %p174 = scmp.lt.s32.totalorder %s11, 2
    // Predicated region
    $region29: #{tpu_custom_call.1} parent=5 // pred_check
      %p175 = pneg %p174
    $region30: #{tpu_custom_call.1} parent=5 // pred_check_branch
      %177 = sbr.rel (%p175) target = $region32
    $region31: #{tpu_custom_call.1} parent=5 // pred_region
      // Predicated region
      $region33: #{tpu_custom_call.1} parent=31 // pred_check
        %p178 = pneg %p31
      $region34: #{tpu_custom_call.1} parent=31 // pred_check_branch
        %180 = sbr.rel (%p178) target = $region36
      $region35: #{tpu_custom_call.1} parent=31 // pred_region
        %s181 = smul.u32 64, %s11
        %p182 = scmp.lt.s32.totalorder %s181, 127
        %s183 = scalar_select %p182, %s181, 127
        %s184 = smul.addr %s183, 8
        %s185 = scalar_lea.vmem %s0, %s184
        %s186 = smul.u32 64, %s11
      $region36: #{tpu_custom_call.1} parent=31 // pred_fallthru
        _
    $region32: #{tpu_custom_call.1} parent=5 // pred_fallthru
      _
    %p187 = scmp.le.s32.totalorder 1, %s11
    %p188 = scmp.lt.s32.totalorder %s11, 3
    %p189 = pnand %p187, %p188
    %p190 = pneg %p189
    // Predicated region
    $region37: #{tpu_custom_call.1} parent=5 // pred_check
      _
    $region38: #{tpu_custom_call.1} parent=5 // pred_check_branch
      %192 = sbr.rel (%p189) target = $region40
    $region39: #{tpu_custom_call.1} parent=5 // pred_region
      %s193 = ssub.s32 %s11, 1
      %s194 = smul.u32 64, %s16
      %p195 = scmp.lt.s32.totalorder %s194, 127
      %s196 = scalar_select %p195, %s194, 127
      %s197 = smul.addr %s196, 8
      %s198 = scalar_lea.vmem %s0, %s197
      %p199 = pneg %p37
      %p200 = pneg %p34
      %p201 = pneg %p58
      %p202 = pneg %p55
      %p203 = pneg %p79
      %p204 = pneg %p76
      %p205 = pneg %p100
      %p206 = pneg %p97
      %p207 = pneg %p121
      %p208 = pneg %p118
      %p209 = pneg %p147
      %p210 = pneg %p144
      %s211 = smul.u32 64, %s16
      %p212 = scmp.lt.s32.totalorder %s211, 127
      %s213 = scalar_select %p212, %s211, 127
      %s214 = smul.addr %s213, 8
      %s215 = scalar_lea.vmem %s5, %s214
      %s216 = smul.u32 64, %s16
      %p217 = scmp.lt.s32.totalorder %s216, 127
      %s218 = scalar_select %p217, %s216, 127
      %s219 = smul.addr %s218, 8
      %s220 = scalar_lea.vmem %s0, %s219
      %s221 = smul.u32 64, %s16
      %s222 = smul.u32 64, %s16
      %p223 = scmp.lt.s32.totalorder %s222, 127
      %s224 = scalar_select %p223, %s222, 127
      %s225 = smul.addr %s224, 8
      %s226 = scalar_lea.vmem %s5, %s225
      %s227 = smul.u32 64, %s16
      %v233 = vld [vmem:[%s220] sm:$0xff]
      %v234 = vld [vmem:[%s220 + $0x8] sm:$0xff]
      %v235 = vld [vmem:[%s220 + $0x10] sm:$0xff]
      %v236 = vld [vmem:[%s220 + $0x18] sm:$0xff]
      %v237 = vld [vmem:[%s220 + $0x20] sm:$0xff]
      %v238 = vld [vmem:[%s220 + $0x28] sm:$0xff]
      %v239 = vld [vmem:[%s220 + $0x30] sm:$0xff]
      %v240 = vld [vmem:[%s220 + $0x38] sm:$0xff]
      %v241 = vld [vmem:[%s220 + $0x40] sm:$0xff]
      %v242 = vld [vmem:[%s220 + $0x48] sm:$0xff]
      %v243 = vld [vmem:[%s220 + $0x50] sm:$0xff]
      %v244 = vld [vmem:[%s220 + $0x58] sm:$0xff]
      %v245 = vld [vmem:[%s220 + $0x60] sm:$0xff]
      %v246 = vld [vmem:[%s220 + $0x68] sm:$0xff]
      %v247 = vld [vmem:[%s220 + $0x70] sm:$0xff]
      %v248 = vld [vmem:[%s220 + $0x78] sm:$0xff]
      %v249 = vld [vmem:[%s220 + $0x80] sm:$0xff]
      %v250 = vld [vmem:[%s220 + $0x88] sm:$0xff]
      %v251 = vld [vmem:[%s220 + $0x90] sm:$0xff]
      %v252 = vld [vmem:[%s220 + $0x98] sm:$0xff]
      %v253 = vld [vmem:[%s220 + $0xa0] sm:$0xff]
      %v254 = vld [vmem:[%s220 + $0xa8] sm:$0xff]
      %v255 = vld [vmem:[%s220 + $0xb0] sm:$0xff]
      %v256 = vld [vmem:[%s220 + $0xb8] sm:$0xff]
      %v257 = vld [vmem:[%s220 + $0xc0] sm:$0xff]
      %v258 = vld [vmem:[%s220 + $0xc8] sm:$0xff]
      %v259 = vld [vmem:[%s220 + $0xd0] sm:$0xff]
      %v260 = vld [vmem:[%s220 + $0xd8] sm:$0xff]
      %v261 = vld [vmem:[%s220 + $0xe0] sm:$0xff]
      %v262 = vld [vmem:[%s220 + $0xe8] sm:$0xff]
      %v263 = vld [vmem:[%s220 + $0xf0] sm:$0xff]
      %v264 = vld [vmem:[%s220 + $0xf8] sm:$0xff]
      %v265 = vld [vmem:[%s220 + $0x100] sm:$0xff]
      %v266 = vld [vmem:[%s220 + $0x108] sm:$0xff]
      %v267 = vld [vmem:[%s220 + $0x110] sm:$0xff]
      %v268 = vld [vmem:[%s220 + $0x118] sm:$0xff]
      %v269 = vld [vmem:[%s220 + $0x120] sm:$0xff]
      %v270 = vld [vmem:[%s220 + $0x128] sm:$0xff]
      %v271 = vld [vmem:[%s220 + $0x130] sm:$0xff]
      %v272 = vld [vmem:[%s220 + $0x138] sm:$0xff]
      %v273 = vld [vmem:[%s220 + $0x140] sm:$0xff]
      %v274 = vld [vmem:[%s220 + $0x148] sm:$0xff]
      %v275 = vld [vmem:[%s220 + $0x150] sm:$0xff]
      %v276 = vld [vmem:[%s220 + $0x158] sm:$0xff]
      %v277 = vld [vmem:[%s220 + $0x160] sm:$0xff]
      %v278 = vld [vmem:[%s220 + $0x168] sm:$0xff]
      %v279 = vld [vmem:[%s220 + $0x170] sm:$0xff]
      %v280 = vld [vmem:[%s220 + $0x178] sm:$0xff]
      %v281 = vld [vmem:[%s220 + $0x180] sm:$0xff]
      %v282 = vld [vmem:[%s220 + $0x188] sm:$0xff]
      %v283 = vld [vmem:[%s220 + $0x190] sm:$0xff]
      %v284 = vld [vmem:[%s220 + $0x198] sm:$0xff]
      %v285 = vld [vmem:[%s220 + $0x1a0] sm:$0xff]
      %v286 = vld [vmem:[%s220 + $0x1a8] sm:$0xff]
      %v287 = vld [vmem:[%s220 + $0x1b0] sm:$0xff]
      %v288 = vld [vmem:[%s220 + $0x1b8] sm:$0xff]
      %v289 = vld [vmem:[%s220 + $0x1c0] sm:$0xff]
      %v290 = vld [vmem:[%s220 + $0x1c8] sm:$0xff]
      %v291 = vld [vmem:[%s220 + $0x1d0] sm:$0xff]
      %v292 = vld [vmem:[%s220 + $0x1d8] sm:$0xff]
      %v293 = vld [vmem:[%s220 + $0x1e0] sm:$0xff]
      %v294 = vld [vmem:[%s220 + $0x1e8] sm:$0xff]
      %v295 = vld [vmem:[%s220 + $0x1f0] sm:$0xff]
      %v296 = vld [vmem:[%s220 + $0x1f8] sm:$0xff]
      %v297 = vld [vmem:[%s1] sm:$0x1f]
      %vm298 = vcmask 654336
      %v299 = vsel %vm298, %v233, 0.0
      %300 = vadd.xlane.f32.xlu0 %v299
      %v301 = vpop.xlane.xlu0 %300
      %v302 = vsel %vm298, %v234, 0.0
      %303 = vadd.xlane.f32.xlu0 %v302
      %v304 = vpop.xlane.xlu0 %303
      %v305 = vsel %vm298, %v235, 0.0
      %306 = vadd.xlane.f32.xlu0 %v305
      %v307 = vpop.xlane.xlu0 %306
      %v308 = vsel %vm298, %v236, 0.0
      %309 = vadd.xlane.f32.xlu0 %v308
      %v310 = vpop.xlane.xlu0 %309
      %v311 = vsel %vm298, %v237, 0.0
      %312 = vadd.xlane.f32.xlu0 %v311
      %v313 = vpop.xlane.xlu0 %312
      %v314 = vsel %vm298, %v238, 0.0
      %315 = vadd.xlane.f32.xlu0 %v314
      %v316 = vpop.xlane.xlu0 %315
      %v317 = vsel %vm298, %v239, 0.0
      %318 = vadd.xlane.f32.xlu0 %v317
      %v319 = vpop.xlane.xlu0 %318
      %v320 = vsel %vm298, %v240, 0.0
      %321 = vadd.xlane.f32.xlu0 %v320
      %v322 = vpop.xlane.xlu0 %321
      %v323 = vsel %vm298, %v241, 0.0
      %324 = vadd.xlane.f32.xlu0 %v323
      %v325 = vpop.xlane.xlu0 %324
      %v326 = vsel %vm298, %v242, 0.0
      %327 = vadd.xlane.f32.xlu0 %v326
      %v328 = vpop.xlane.xlu0 %327
      %v329 = vsel %vm298, %v243, 0.0
      %330 = vadd.xlane.f32.xlu0 %v329
      %v331 = vpop.xlane.xlu0 %330
      %v332 = vsel %vm298, %v244, 0.0
      %333 = vadd.xlane.f32.xlu0 %v332
      %v334 = vpop.xlane.xlu0 %333
      %v335 = vsel %vm298, %v245, 0.0
      %336 = vadd.xlane.f32.xlu0 %v335
      %v337 = vpop.xlane.xlu0 %336
      %v338 = vsel %vm298, %v246, 0.0
      %339 = vadd.xlane.f32.xlu0 %v338
      %v340 = vpop.xlane.xlu0 %339
      %v341 = vsel %vm298, %v247, 0.0
      %342 = vadd.xlane.f32.xlu0 %v341
      %v343 = vpop.xlane.xlu0 %342
      %v344 = vsel %vm298, %v248, 0.0
      %345 = vadd.xlane.f32.xlu0 %v344
      %v346 = vpop.xlane.xlu0 %345
      %v347 = vsel %vm298, %v249, 0.0
      %348 = vadd.xlane.f32.xlu0 %v347
      %v349 = vpop.xlane.xlu0 %348
      %v350 = vsel %vm298, %v250, 0.0
      %351 = vadd.xlane.f32.xlu0 %v350
      %v352 = vpop.xlane.xlu0 %351
      %v353 = vsel %vm298, %v251, 0.0
      %354 = vadd.xlane.f32.xlu0 %v353
      %v355 = vpop.xlane.xlu0 %354
      %v356 = vsel %vm298, %v252, 0.0
      %357 = vadd.xlane.f32.xlu0 %v356
      %v358 = vpop.xlane.xlu0 %357
      %v359 = vsel %vm298, %v253, 0.0
      %360 = vadd.xlane.f32.xlu0 %v359
      %v361 = vpop.xlane.xlu0 %360
      %v362 = vsel %vm298, %v254, 0.0
      %363 = vadd.xlane.f32.xlu0 %v362
      %v364 = vpop.xlane.xlu0 %363
      %v365 = vsel %vm298, %v255, 0.0
      %366 = vadd.xlane.f32.xlu0 %v365
      %v367 = vpop.xlane.xlu0 %366
      %v368 = vsel %vm298, %v256, 0.0
      %369 = vadd.xlane.f32.xlu0 %v368
      %v370 = vpop.xlane.xlu0 %369
      %v371 = vsel %vm298, %v257, 0.0
      %372 = vadd.xlane.f32.xlu0 %v371
      %v373 = vpop.xlane.xlu0 %372
      %v374 = vsel %vm298, %v258, 0.0
      %375 = vadd.xlane.f32.xlu0 %v374
      %v376 = vpop.xlane.xlu0 %375
      %v377 = vsel %vm298, %v259, 0.0
      %378 = vadd.xlane.f32.xlu0 %v377
      %v379 = vpop.xlane.xlu0 %378
      %v380 = vsel %vm298, %v260, 0.0
      %381 = vadd.xlane.f32.xlu0 %v380
      %v382 = vpop.xlane.xlu0 %381
      %v383 = vsel %vm298, %v261, 0.0
      %384 = vadd.xlane.f32.xlu0 %v383
      %v385 = vpop.xlane.xlu0 %384
      %v386 = vsel %vm298, %v262, 0.0
      %387 = vadd.xlane.f32.xlu0 %v386
      %v388 = vpop.xlane.xlu0 %387
      %v389 = vsel %vm298, %v263, 0.0
      %390 = vadd.xlane.f32.xlu0 %v389
      %v391 = vpop.xlane.xlu0 %390
      %v392 = vsel %vm298, %v264, 0.0
      %393 = vadd.xlane.f32.xlu0 %v392
      %v394 = vpop.xlane.xlu0 %393
      %v395 = vsel %vm298, %v265, 0.0
      %396 = vadd.xlane.f32.xlu0 %v395
      %v397 = vpop.xlane.xlu0 %396
      %v398 = vsel %vm298, %v266, 0.0
      %399 = vadd.xlane.f32.xlu0 %v398
      %v400 = vpop.xlane.xlu0 %399
      %v401 = vsel %vm298, %v267, 0.0
      %402 = vadd.xlane.f32.xlu0 %v401
      %v403 = vpop.xlane.xlu0 %402
      %v404 = vsel %vm298, %v268, 0.0
      %405 = vadd.xlane.f32.xlu0 %v404
      %v406 = vpop.xlane.xlu0 %405
      %v407 = vsel %vm298, %v269, 0.0
      %408 = vadd.xlane.f32.xlu0 %v407
      %v409 = vpop.xlane.xlu0 %408
      %v410 = vsel %vm298, %v270, 0.0
      %411 = vadd.xlane.f32.xlu0 %v410
      %v412 = vpop.xlane.xlu0 %411
      %v413 = vsel %vm298, %v271, 0.0
      %414 = vadd.xlane.f32.xlu0 %v413
      %v415 = vpop.xlane.xlu0 %414
      %v416 = vsel %vm298, %v272, 0.0
      %417 = vadd.xlane.f32.xlu0 %v416
      %v418 = vpop.xlane.xlu0 %417
      %v419 = vsel %vm298, %v273, 0.0
      %420 = vadd.xlane.f32.xlu0 %v419
      %v421 = vpop.xlane.xlu0 %420
      %v422 = vsel %vm298, %v274, 0.0
      %423 = vadd.xlane.f32.xlu0 %v422
      %v424 = vpop.xlane.xlu0 %423
      %v425 = vsel %vm298, %v275, 0.0
      %426 = vadd.xlane.f32.xlu0 %v425
      %v427 = vpop.xlane.xlu0 %426
      %v428 = vsel %vm298, %v276, 0.0
      %429 = vadd.xlane.f32.xlu0 %v428
      %v430 = vpop.xlane.xlu0 %429
      %v431 = vsel %vm298, %v277, 0.0
      %432 = vadd.xlane.f32.xlu0 %v431
      %v433 = vpop.xlane.xlu0 %432
      %v434 = vsel %vm298, %v278, 0.0
      %435 = vadd.xlane.f32.xlu0 %v434
      %v436 = vpop.xlane.xlu0 %435
      %v437 = vsel %vm298, %v279, 0.0
      %438 = vadd.xlane.f32.xlu0 %v437
      %v439 = vpop.xlane.xlu0 %438
      %v440 = vsel %vm298, %v280, 0.0
      %441 = vadd.xlane.f32.xlu0 %v440
      %v442 = vpop.xlane.xlu0 %441
      %v443 = vsel %vm298, %v281, 0.0
      %444 = vadd.xlane.f32.xlu0 %v443
      %v445 = vpop.xlane.xlu0 %444
      %v446 = vsel %vm298, %v282, 0.0
      %447 = vadd.xlane.f32.xlu0 %v446
      %v448 = vpop.xlane.xlu0 %447
      %v449 = vsel %vm298, %v283, 0.0
      %450 = vadd.xlane.f32.xlu0 %v449
      %v451 = vpop.xlane.xlu0 %450
      %v452 = vsel %vm298, %v284, 0.0
      %453 = vadd.xlane.f32.xlu0 %v452
      %v454 = vpop.xlane.xlu0 %453
      %v455 = vsel %vm298, %v285, 0.0
      %456 = vadd.xlane.f32.xlu0 %v455
      %v457 = vpop.xlane.xlu0 %456
      %v458 = vsel %vm298, %v286, 0.0
      %459 = vadd.xlane.f32.xlu0 %v458
      %v460 = vpop.xlane.xlu0 %459
      %v461 = vsel %vm298, %v287, 0.0
      %462 = vadd.xlane.f32.xlu0 %v461
      %v463 = vpop.xlane.xlu0 %462
      %v464 = vsel %vm298, %v288, 0.0
      %465 = vadd.xlane.f32.xlu0 %v464
      %v466 = vpop.xlane.xlu0 %465
      %v467 = vsel %vm298, %v289, 0.0
      %468 = vadd.xlane.f32.xlu0 %v467
      %v469 = vpop.xlane.xlu0 %468
      %v470 = vsel %vm298, %v290, 0.0
      %471 = vadd.xlane.f32.xlu0 %v470
      %v472 = vpop.xlane.xlu0 %471
      %v473 = vsel %vm298, %v291, 0.0
      %474 = vadd.xlane.f32.xlu0 %v473
      %v475 = vpop.xlane.xlu0 %474
      %v476 = vsel %vm298, %v292, 0.0
      %477 = vadd.xlane.f32.xlu0 %v476
      %v478 = vpop.xlane.xlu0 %477
      %v479 = vsel %vm298, %v293, 0.0
      %480 = vadd.xlane.f32.xlu0 %v479
      %v481 = vpop.xlane.xlu0 %480
      %v482 = vsel %vm298, %v294, 0.0
      %483 = vadd.xlane.f32.xlu0 %v482
      %v484 = vpop.xlane.xlu0 %483
      %v485 = vsel %vm298, %v295, 0.0
      %486 = vadd.xlane.f32.xlu0 %v485
      %v487 = vpop.xlane.xlu0 %486
      %v488 = vsel %vm298, %v296, 0.0
      %489 = vadd.xlane.f32.xlu0 %v488
      %v490 = vpop.xlane.xlu0 %489
      %v491 = vmul.f32 %v301, 0.0125
      %v492 = vmul.f32 %v304, 0.0125
      %v493 = vmul.f32 %v307, 0.0125
      %v494 = vmul.f32 %v310, 0.0125
      %v495 = vmul.f32 %v313, 0.0125
      %v496 = vmul.f32 %v316, 0.0125
      %v497 = vmul.f32 %v319, 0.0125
      %v498 = vmul.f32 %v322, 0.0125
      %v499 = vmul.f32 %v325, 0.0125
      %v500 = vmul.f32 %v328, 0.0125
      %v501 = vmul.f32 %v331, 0.0125
      %v502 = vmul.f32 %v334, 0.0125
      %v503 = vmul.f32 %v337, 0.0125
      %v504 = vmul.f32 %v340, 0.0125
      %v505 = vmul.f32 %v343, 0.0125
      %v506 = vmul.f32 %v346, 0.0125
      %v507 = vmul.f32 %v349, 0.0125
      %v508 = vmul.f32 %v352, 0.0125
      %v509 = vmul.f32 %v355, 0.0125
      %v510 = vmul.f32 %v358, 0.0125
      %v511 = vmul.f32 %v361, 0.0125
      %v512 = vmul.f32 %v364, 0.0125
      %v513 = vmul.f32 %v367, 0.0125
      %v514 = vmul.f32 %v370, 0.0125
      %v515 = vmul.f32 %v373, 0.0125
      %v516 = vmul.f32 %v376, 0.0125
      %v517 = vmul.f32 %v379, 0.0125
      %v518 = vmul.f32 %v382, 0.0125
      %v519 = vmul.f32 %v385, 0.0125
      %v520 = vmul.f32 %v388, 0.0125
      %v521 = vmul.f32 %v391, 0.0125
      %v522 = vmul.f32 %v394, 0.0125
      %v523 = vmul.f32 %v397, 0.0125
      %v524 = vmul.f32 %v400, 0.0125
      %v525 = vmul.f32 %v403, 0.0125
      %v526 = vmul.f32 %v406, 0.0125
      %v527 = vmul.f32 %v409, 0.0125
      %v528 = vmul.f32 %v412, 0.0125
      %v529 = vmul.f32 %v415, 0.0125
      %v530 = vmul.f32 %v418, 0.0125
      %v531 = vmul.f32 %v421, 0.0125
      %v532 = vmul.f32 %v424, 0.0125
      %v533 = vmul.f32 %v427, 0.0125
      %v534 = vmul.f32 %v430, 0.0125
      %v535 = vmul.f32 %v433, 0.0125
      %v536 = vmul.f32 %v436, 0.0125
      %v537 = vmul.f32 %v439, 0.0125
      %v538 = vmul.f32 %v442, 0.0125
      %v539 = vmul.f32 %v445, 0.0125
      %v540 = vmul.f32 %v448, 0.0125
      %v541 = vmul.f32 %v451, 0.0125
      %v542 = vmul.f32 %v454, 0.0125
      %v543 = vmul.f32 %v457, 0.0125
      %v544 = vmul.f32 %v460, 0.0125
      %v545 = vmul.f32 %v463, 0.0125
      %v546 = vmul.f32 %v466, 0.0125
      %v547 = vmul.f32 %v469, 0.0125
      %v548 = vmul.f32 %v472, 0.0125
      %v549 = vmul.f32 %v475, 0.0125
      %v550 = vmul.f32 %v478, 0.0125
      %v551 = vmul.f32 %v481, 0.0125
      %v552 = vmul.f32 %v484, 0.0125
      %v553 = vmul.f32 %v487, 0.0125
      %v554 = vmul.f32 %v490, 0.0125
      %v555 = vmul.f32 %v233, %v233
      %v556 = vmul.f32 %v234, %v234
      %v557 = vmul.f32 %v235, %v235
      %v558 = vmul.f32 %v236, %v236
      %v559 = vmul.f32 %v237, %v237
      %v560 = vmul.f32 %v238, %v238
      %v561 = vmul.f32 %v239, %v239
      %v562 = vmul.f32 %v240, %v240
      %v563 = vmul.f32 %v241, %v241
      %v564 = vmul.f32 %v242, %v242
      %v565 = vmul.f32 %v243, %v243
      %v566 = vmul.f32 %v244, %v244
      %v567 = vmul.f32 %v245, %v245
      %v568 = vmul.f32 %v246, %v246
      %v569 = vmul.f32 %v247, %v247
      %v570 = vmul.f32 %v248, %v248
      %v571 = vmul.f32 %v249, %v249
      %v572 = vmul.f32 %v250, %v250
      %v573 = vmul.f32 %v251, %v251
      %v574 = vmul.f32 %v252, %v252
      %v575 = vmul.f32 %v253, %v253
      %v576 = vmul.f32 %v254, %v254
      %v577 = vmul.f32 %v255, %v255
      %v578 = vmul.f32 %v256, %v256
      %v579 = vmul.f32 %v257, %v257
      %v580 = vmul.f32 %v258, %v258
      %v581 = vmul.f32 %v259, %v259
      %v582 = vmul.f32 %v260, %v260
      %v583 = vmul.f32 %v261, %v261
      %v584 = vmul.f32 %v262, %v262
      %v585 = vmul.f32 %v263, %v263
      %v586 = vmul.f32 %v264, %v264
      %v587 = vmul.f32 %v265, %v265
      %v588 = vmul.f32 %v266, %v266
      %v589 = vmul.f32 %v267, %v267
      %v590 = vmul.f32 %v268, %v268
      %v591 = vmul.f32 %v269, %v269
      %v592 = vmul.f32 %v270, %v270
      %v593 = vmul.f32 %v271, %v271
      %v594 = vmul.f32 %v272, %v272
      %v595 = vmul.f32 %v273, %v273
      %v596 = vmul.f32 %v274, %v274
      %v597 = vmul.f32 %v275, %v275
      %v598 = vmul.f32 %v276, %v276
      %v599 = vmul.f32 %v277, %v277
      %v600 = vmul.f32 %v278, %v278
      %v601 = vmul.f32 %v279, %v279
      %v602 = vmul.f32 %v280, %v280
      %v603 = vmul.f32 %v281, %v281
      %v604 = vmul.f32 %v282, %v282
      %v605 = vmul.f32 %v283, %v283
      %v606 = vmul.f32 %v284, %v284
      %v607 = vmul.f32 %v285, %v285
      %v608 = vmul.f32 %v286, %v286
      %v609 = vmul.f32 %v287, %v287
      %v610 = vmul.f32 %v288, %v288
      %v611 = vmul.f32 %v289, %v289
      %v612 = vmul.f32 %v290, %v290
      %v613 = vmul.f32 %v291, %v291
      %v614 = vmul.f32 %v292, %v292
      %v615 = vmul.f32 %v293, %v293
      %v616 = vmul.f32 %v294, %v294
      %v617 = vmul.f32 %v295, %v295
      %v618 = vmul.f32 %v296, %v296
      %v619 = vsel %vm298, %v555, 0.0
      %620 = vadd.xlane.f32.xlu0 %v619
      %v621 = vpop.xlane.xlu0 %620
      %v622 = vsel %vm298, %v556, 0.0
      %623 = vadd.xlane.f32.xlu0 %v622
      %v624 = vpop.xlane.xlu0 %623
      %v625 = vsel %vm298, %v557, 0.0
      %626 = vadd.xlane.f32.xlu0 %v625
      %v627 = vpop.xlane.xlu0 %626
      %v628 = vsel %vm298, %v558, 0.0
      %629 = vadd.xlane.f32.xlu0 %v628
      %v630 = vpop.xlane.xlu0 %629
      %v631 = vsel %vm298, %v559, 0.0
      %632 = vadd.xlane.f32.xlu0 %v631
      %v633 = vpop.xlane.xlu0 %632
      %v634 = vsel %vm298, %v560, 0.0
      %635 = vadd.xlane.f32.xlu0 %v634
      %v636 = vpop.xlane.xlu0 %635
      %v637 = vsel %vm298, %v561, 0.0
      %638 = vadd.xlane.f32.xlu0 %v637
      %v639 = vpop.xlane.xlu0 %638
      %v640 = vsel %vm298, %v562, 0.0
      %641 = vadd.xlane.f32.xlu0 %v640
      %v642 = vpop.xlane.xlu0 %641
      %v643 = vsel %vm298, %v563, 0.0
      %644 = vadd.xlane.f32.xlu0 %v643
      %v645 = vpop.xlane.xlu0 %644
      %v646 = vsel %vm298, %v564, 0.0
      %647 = vadd.xlane.f32.xlu0 %v646
      %v648 = vpop.xlane.xlu0 %647
      %v649 = vsel %vm298, %v565, 0.0
      %650 = vadd.xlane.f32.xlu0 %v649
      %v651 = vpop.xlane.xlu0 %650
      %v652 = vsel %vm298, %v566, 0.0
      %653 = vadd.xlane.f32.xlu0 %v652
      %v654 = vpop.xlane.xlu0 %653
      %v655 = vsel %vm298, %v567, 0.0
      %656 = vadd.xlane.f32.xlu0 %v655
      %v657 = vpop.xlane.xlu0 %656
      %v658 = vsel %vm298, %v568, 0.0
      %659 = vadd.xlane.f32.xlu0 %v658
      %v660 = vpop.xlane.xlu0 %659
      %v661 = vsel %vm298, %v569, 0.0
      %662 = vadd.xlane.f32.xlu0 %v661
      %v663 = vpop.xlane.xlu0 %662
      %v664 = vsel %vm298, %v570, 0.0
      %665 = vadd.xlane.f32.xlu0 %v664
      %v666 = vpop.xlane.xlu0 %665
      %v667 = vsel %vm298, %v571, 0.0
      %668 = vadd.xlane.f32.xlu0 %v667
      %v669 = vpop.xlane.xlu0 %668
      %v670 = vsel %vm298, %v572, 0.0
      %671 = vadd.xlane.f32.xlu0 %v670
      %v672 = vpop.xlane.xlu0 %671
      %v673 = vsel %vm298, %v573, 0.0
      %674 = vadd.xlane.f32.xlu0 %v673
      %v675 = vpop.xlane.xlu0 %674
      %v676 = vsel %vm298, %v574, 0.0
      %677 = vadd.xlane.f32.xlu0 %v676
      %v678 = vpop.xlane.xlu0 %677
      %v679 = vsel %vm298, %v575, 0.0
      %680 = vadd.xlane.f32.xlu0 %v679
      %v681 = vpop.xlane.xlu0 %680
      %v682 = vsel %vm298, %v576, 0.0
      %683 = vadd.xlane.f32.xlu0 %v682
      %v684 = vpop.xlane.xlu0 %683
      %v685 = vsel %vm298, %v577, 0.0
      %686 = vadd.xlane.f32.xlu0 %v685
      %v687 = vpop.xlane.xlu0 %686
      %v688 = vsel %vm298, %v578, 0.0
      %689 = vadd.xlane.f32.xlu0 %v688
      %v690 = vpop.xlane.xlu0 %689
      %v691 = vsel %vm298, %v579, 0.0
      %692 = vadd.xlane.f32.xlu0 %v691
      %v693 = vpop.xlane.xlu0 %692
      %v694 = vsel %vm298, %v580, 0.0
      %695 = vadd.xlane.f32.xlu0 %v694
      %v696 = vpop.xlane.xlu0 %695
      %v697 = vsel %vm298, %v581, 0.0
      %698 = vadd.xlane.f32.xlu0 %v697
      %v699 = vpop.xlane.xlu0 %698
      %v700 = vsel %vm298, %v582, 0.0
      %701 = vadd.xlane.f32.xlu0 %v700
      %v702 = vpop.xlane.xlu0 %701
      %v703 = vsel %vm298, %v583, 0.0
      %704 = vadd.xlane.f32.xlu0 %v703
      %v705 = vpop.xlane.xlu0 %704
      %v706 = vsel %vm298, %v584, 0.0
      %707 = vadd.xlane.f32.xlu0 %v706
      %v708 = vpop.xlane.xlu0 %707
      %v709 = vsel %vm298, %v585, 0.0
      %710 = vadd.xlane.f32.xlu0 %v709
      %v711 = vpop.xlane.xlu0 %710
      %v712 = vsel %vm298, %v586, 0.0
      %713 = vadd.xlane.f32.xlu0 %v712
      %v714 = vpop.xlane.xlu0 %713
      %v715 = vsel %vm298, %v587, 0.0
      %716 = vadd.xlane.f32.xlu0 %v715
      %v717 = vpop.xlane.xlu0 %716
      %v718 = vsel %vm298, %v588, 0.0
      %719 = vadd.xlane.f32.xlu0 %v718
      %v720 = vpop.xlane.xlu0 %719
      %v721 = vsel %vm298, %v589, 0.0
      %722 = vadd.xlane.f32.xlu0 %v721
      %v723 = vpop.xlane.xlu0 %722
      %v724 = vsel %vm298, %v590, 0.0
      %725 = vadd.xlane.f32.xlu0 %v724
      %v726 = vpop.xlane.xlu0 %725
      %v727 = vsel %vm298, %v591, 0.0
      %728 = vadd.xlane.f32.xlu0 %v727
      %v729 = vpop.xlane.xlu0 %728
      %v730 = vsel %vm298, %v592, 0.0
      %731 = vadd.xlane.f32.xlu0 %v730
      %v732 = vpop.xlane.xlu0 %731
      %v733 = vsel %vm298, %v593, 0.0
      %734 = vadd.xlane.f32.xlu0 %v733
      %v735 = vpop.xlane.xlu0 %734
      %v736 = vsel %vm298, %v594, 0.0
      %737 = vadd.xlane.f32.xlu0 %v736
      %v738 = vpop.xlane.xlu0 %737
      %v739 = vsel %vm298, %v595, 0.0
      %740 = vadd.xlane.f32.xlu0 %v739
      %v741 = vpop.xlane.xlu0 %740
      %v742 = vsel %vm298, %v596, 0.0
      %743 = vadd.xlane.f32.xlu0 %v742
      %v744 = vpop.xlane.xlu0 %743
      %v745 = vsel %vm298, %v597, 0.0
      %746 = vadd.xlane.f32.xlu0 %v745
      %v747 = vpop.xlane.xlu0 %746
      %v748 = vsel %vm298, %v598, 0.0
      %749 = vadd.xlane.f32.xlu0 %v748
      %v750 = vpop.xlane.xlu0 %749
      %v751 = vsel %vm298, %v599, 0.0
      %752 = vadd.xlane.f32.xlu0 %v751
      %v753 = vpop.xlane.xlu0 %752
      %v754 = vsel %vm298, %v600, 0.0
      %755 = vadd.xlane.f32.xlu0 %v754
      %v756 = vpop.xlane.xlu0 %755
      %v757 = vsel %vm298, %v601, 0.0
      %758 = vadd.xlane.f32.xlu0 %v757
      %v759 = vpop.xlane.xlu0 %758
      %v760 = vsel %vm298, %v602, 0.0
      %761 = vadd.xlane.f32.xlu0 %v760
      %v762 = vpop.xlane.xlu0 %761
      %v763 = vsel %vm298, %v603, 0.0
      %764 = vadd.xlane.f32.xlu0 %v763
      %v765 = vpop.xlane.xlu0 %764
      %v766 = vsel %vm298, %v604, 0.0
      %767 = vadd.xlane.f32.xlu0 %v766
      %v768 = vpop.xlane.xlu0 %767
      %v769 = vsel %vm298, %v605, 0.0
      %770 = vadd.xlane.f32.xlu0 %v769
      %v771 = vpop.xlane.xlu0 %770
      %v772 = vsel %vm298, %v606, 0.0
      %773 = vadd.xlane.f32.xlu0 %v772
      %v774 = vpop.xlane.xlu0 %773
      %v775 = vsel %vm298, %v607, 0.0
      %776 = vadd.xlane.f32.xlu0 %v775
      %v777 = vpop.xlane.xlu0 %776
      %v778 = vsel %vm298, %v608, 0.0
      %779 = vadd.xlane.f32.xlu0 %v778
      %v780 = vpop.xlane.xlu0 %779
      %v781 = vsel %vm298, %v609, 0.0
      %782 = vadd.xlane.f32.xlu0 %v781
      %v783 = vpop.xlane.xlu0 %782
      %v784 = vsel %vm298, %v610, 0.0
      %785 = vadd.xlane.f32.xlu0 %v784
      %v786 = vpop.xlane.xlu0 %785
      %v787 = vsel %vm298, %v611, 0.0
      %788 = vadd.xlane.f32.xlu0 %v787
      %v789 = vpop.xlane.xlu0 %788
      %v790 = vsel %vm298, %v612, 0.0
      %791 = vadd.xlane.f32.xlu0 %v790
      %v792 = vpop.xlane.xlu0 %791
      %v793 = vsel %vm298, %v613, 0.0
      %794 = vadd.xlane.f32.xlu0 %v793
      %v795 = vpop.xlane.xlu0 %794
      %v796 = vsel %vm298, %v614, 0.0
      %797 = vadd.xlane.f32.xlu0 %v796
      %v798 = vpop.xlane.xlu0 %797
      %v799 = vsel %vm298, %v615, 0.0
      %800 = vadd.xlane.f32.xlu0 %v799
      %v801 = vpop.xlane.xlu0 %800
      %v802 = vsel %vm298, %v616, 0.0
      %803 = vadd.xlane.f32.xlu0 %v802
      %v804 = vpop.xlane.xlu0 %803
      %v805 = vsel %vm298, %v617, 0.0
      %806 = vadd.xlane.f32.xlu0 %v805
      %v807 = vpop.xlane.xlu0 %806
      %v808 = vsel %vm298, %v618, 0.0
      %809 = vadd.xlane.f32.xlu0 %v808
      %v810 = vpop.xlane.xlu0 %809
      %v811 = vmul.f32 %v621, 0.0125
      %v812 = vmul.f32 %v624, 0.0125
      %v813 = vmul.f32 %v627, 0.0125
      %v814 = vmul.f32 %v630, 0.0125
      %v815 = vmul.f32 %v633, 0.0125
      %v816 = vmul.f32 %v636, 0.0125
      %v817 = vmul.f32 %v639, 0.0125
      %v818 = vmul.f32 %v642, 0.0125
      %v819 = vmul.f32 %v645, 0.0125
      %v820 = vmul.f32 %v648, 0.0125
      %v821 = vmul.f32 %v651, 0.0125
      %v822 = vmul.f32 %v654, 0.0125
      %v823 = vmul.f32 %v657, 0.0125
      %v824 = vmul.f32 %v660, 0.0125
      %v825 = vmul.f32 %v663, 0.0125
      %v826 = vmul.f32 %v666, 0.0125
      %v827 = vmul.f32 %v669, 0.0125
      %v828 = vmul.f32 %v672, 0.0125
      %v829 = vmul.f32 %v675, 0.0125
      %v830 = vmul.f32 %v678, 0.0125
      %v831 = vmul.f32 %v681, 0.0125
      %v832 = vmul.f32 %v684, 0.0125
      %v833 = vmul.f32 %v687, 0.0125
      %v834 = vmul.f32 %v690, 0.0125
      %v835 = vmul.f32 %v693, 0.0125
      %v836 = vmul.f32 %v696, 0.0125
      %v837 = vmul.f32 %v699, 0.0125
      %v838 = vmul.f32 %v702, 0.0125
      %v839 = vmul.f32 %v705, 0.0125
      %v840 = vmul.f32 %v708, 0.0125
      %v841 = vmul.f32 %v711, 0.0125
      %v842 = vmul.f32 %v714, 0.0125
      %v843 = vmul.f32 %v717, 0.0125
      %v844 = vmul.f32 %v720, 0.0125
      %v845 = vmul.f32 %v723, 0.0125
      %v846 = vmul.f32 %v726, 0.0125
      %v847 = vmul.f32 %v729, 0.0125
      %v848 = vmul.f32 %v732, 0.0125
      %v849 = vmul.f32 %v735, 0.0125
      %v850 = vmul.f32 %v738, 0.0125
      %v851 = vmul.f32 %v741, 0.0125
      %v852 = vmul.f32 %v744, 0.0125
      %v853 = vmul.f32 %v747, 0.0125
      %v854 = vmul.f32 %v750, 0.0125
      %v855 = vmul.f32 %v753, 0.0125
      %v856 = vmul.f32 %v756, 0.0125
      %v857 = vmul.f32 %v759, 0.0125
      %v858 = vmul.f32 %v762, 0.0125
      %v859 = vmul.f32 %v765, 0.0125
      %v860 = vmul.f32 %v768, 0.0125
      %v861 = vmul.f32 %v771, 0.0125
      %v862 = vmul.f32 %v774, 0.0125
      %v863 = vmul.f32 %v777, 0.0125
      %v864 = vmul.f32 %v780, 0.0125
      %v865 = vmul.f32 %v783, 0.0125
      %v866 = vmul.f32 %v786, 0.0125
      %v867 = vmul.f32 %v789, 0.0125
      %v868 = vmul.f32 %v792, 0.0125
      %v869 = vmul.f32 %v795, 0.0125
      %v870 = vmul.f32 %v798, 0.0125
      %v871 = vmul.f32 %v801, 0.0125
      %v872 = vmul.f32 %v804, 0.0125
      %v873 = vmul.f32 %v807, 0.0125
      %v874 = vmul.f32 %v810, 0.0125
      %v875 = vmul.f32 %v491, %v491
      %v876 = vmul.f32 %v492, %v492
      %v877 = vmul.f32 %v493, %v493
      %v878 = vmul.f32 %v494, %v494
      %v879 = vmul.f32 %v495, %v495
      %v880 = vmul.f32 %v496, %v496
      %v881 = vmul.f32 %v497, %v497
      %v882 = vmul.f32 %v498, %v498
      %v883 = vmul.f32 %v499, %v499
      %v884 = vmul.f32 %v500, %v500
      %v885 = vmul.f32 %v501, %v501
      %v886 = vmul.f32 %v502, %v502
      %v887 = vmul.f32 %v503, %v503
      %v888 = vmul.f32 %v504, %v504
      %v889 = vmul.f32 %v505, %v505
      %v890 = vmul.f32 %v506, %v506
      %v891 = vmul.f32 %v507, %v507
      %v892 = vmul.f32 %v508, %v508
      %v893 = vmul.f32 %v509, %v509
      %v894 = vmul.f32 %v510, %v510
      %v895 = vmul.f32 %v511, %v511
      %v896 = vmul.f32 %v512, %v512
      %v897 = vmul.f32 %v513, %v513
      %v898 = vmul.f32 %v514, %v514
      %v899 = vmul.f32 %v515, %v515
      %v900 = vmul.f32 %v516, %v516
      %v901 = vmul.f32 %v517, %v517
      %v902 = vmul.f32 %v518, %v518
      %v903 = vmul.f32 %v519, %v519
      %v904 = vmul.f32 %v520, %v520
      %v905 = vmul.f32 %v521, %v521
      %v906 = vmul.f32 %v522, %v522
      %v907 = vmul.f32 %v523, %v523
      %v908 = vmul.f32 %v524, %v524
      %v909 = vmul.f32 %v525, %v525
      %v910 = vmul.f32 %v526, %v526
      %v911 = vmul.f32 %v527, %v527
      %v912 = vmul.f32 %v528, %v528
      %v913 = vmul.f32 %v529, %v529
      %v914 = vmul.f32 %v530, %v530
      %v915 = vmul.f32 %v531, %v531
      %v916 = vmul.f32 %v532, %v532
      %v917 = vmul.f32 %v533, %v533
      %v918 = vmul.f32 %v534, %v534
      %v919 = vmul.f32 %v535, %v535
      %v920 = vmul.f32 %v536, %v536
      %v921 = vmul.f32 %v537, %v537
      %v922 = vmul.f32 %v538, %v538
      %v923 = vmul.f32 %v539, %v539
      %v924 = vmul.f32 %v540, %v540
      %v925 = vmul.f32 %v541, %v541
      %v926 = vmul.f32 %v542, %v542
      %v927 = vmul.f32 %v543, %v543
      %v928 = vmul.f32 %v544, %v544
      %v929 = vmul.f32 %v545, %v545
      %v930 = vmul.f32 %v546, %v546
      %v931 = vmul.f32 %v547, %v547
      %v932 = vmul.f32 %v548, %v548
      %v933 = vmul.f32 %v549, %v549
      %v934 = vmul.f32 %v550, %v550
      %v935 = vmul.f32 %v551, %v551
      %v936 = vmul.f32 %v552, %v552
      %v937 = vmul.f32 %v553, %v553
      %v938 = vmul.f32 %v554, %v554
      %v939 = vsub.f32 %v811, %v875
      %v940 = vsub.f32 %v812, %v876
      %v941 = vsub.f32 %v813, %v877
      %v942 = vsub.f32 %v814, %v878
      %v943 = vsub.f32 %v815, %v879
      %v944 = vsub.f32 %v816, %v880
      %v945 = vsub.f32 %v817, %v881
      %v946 = vsub.f32 %v818, %v882
      %v947 = vsub.f32 %v819, %v883
      %v948 = vsub.f32 %v820, %v884
      %v949 = vsub.f32 %v821, %v885
      %v950 = vsub.f32 %v822, %v886
      %v951 = vsub.f32 %v823, %v887
      %v952 = vsub.f32 %v824, %v888
      %v953 = vsub.f32 %v825, %v889
      %v954 = vsub.f32 %v826, %v890
      %v955 = vsub.f32 %v827, %v891
      %v956 = vsub.f32 %v828, %v892
      %v957 = vsub.f32 %v829, %v893
      %v958 = vsub.f32 %v830, %v894
      %v959 = vsub.f32 %v831, %v895
      %v960 = vsub.f32 %v832, %v896
      %v961 = vsub.f32 %v833, %v897
      %v962 = vsub.f32 %v834, %v898
      %v963 = vsub.f32 %v835, %v899
      %v964 = vsub.f32 %v836, %v900
      %v965 = vsub.f32 %v837, %v901
      %v966 = vsub.f32 %v838, %v902
      %v967 = vsub.f32 %v839, %v903
      %v968 = vsub.f32 %v840, %v904
      %v969 = vsub.f32 %v841, %v905
      %v970 = vsub.f32 %v842, %v906
      %v971 = vsub.f32 %v843, %v907
      %v972 = vsub.f32 %v844, %v908
      %v973 = vsub.f32 %v845, %v909
      %v974 = vsub.f32 %v846, %v910
      %v975 = vsub.f32 %v847, %v911
      %v976 = vsub.f32 %v848, %v912
      %v977 = vsub.f32 %v849, %v913
      %v978 = vsub.f32 %v850, %v914
      %v979 = vsub.f32 %v851, %v915
      %v980 = vsub.f32 %v852, %v916
      %v981 = vsub.f32 %v853, %v917
      %v982 = vsub.f32 %v854, %v918
      %v983 = vsub.f32 %v855, %v919
      %v984 = vsub.f32 %v856, %v920
      %v985 = vsub.f32 %v857, %v921
      %v986 = vsub.f32 %v858, %v922
      %v987 = vsub.f32 %v859, %v923
      %v988 = vsub.f32 %v860, %v924
      %v989 = vsub.f32 %v861, %v925
      %v990 = vsub.f32 %v862, %v926
      %v991 = vsub.f32 %v863, %v927
      %v992 = vsub.f32 %v864, %v928
      %v993 = vsub.f32 %v865, %v929
      %v994 = vsub.f32 %v866, %v930
      %v995 = vsub.f32 %v867, %v931
      %v996 = vsub.f32 %v868, %v932
      %v997 = vsub.f32 %v869, %v933
      %v998 = vsub.f32 %v870, %v934
      %v999 = vsub.f32 %v871, %v935
      %v1000 = vsub.f32 %v872, %v936
      %v1001 = vsub.f32 %v873, %v937
      %v1002 = vsub.f32 %v874, %v938
      %v1003 = vsub.f32 %v233, %v491
      %v1004 = vsub.f32 %v234, %v492
      %v1005 = vsub.f32 %v235, %v493
      %v1006 = vsub.f32 %v236, %v494
      %v1007 = vsub.f32 %v237, %v495
      %v1008 = vsub.f32 %v238, %v496
      %v1009 = vsub.f32 %v239, %v497
      %v1010 = vsub.f32 %v240, %v498
      %v1011 = vsub.f32 %v241, %v499
      %v1012 = vsub.f32 %v242, %v500
      %v1013 = vsub.f32 %v243, %v501
      %v1014 = vsub.f32 %v244, %v502
      %v1015 = vsub.f32 %v245, %v503
      %v1016 = vsub.f32 %v246, %v504
      %v1017 = vsub.f32 %v247, %v505
      %v1018 = vsub.f32 %v248, %v506
      %v1019 = vsub.f32 %v249, %v507
      %v1020 = vsub.f32 %v250, %v508
      %v1021 = vsub.f32 %v251, %v509
      %v1022 = vsub.f32 %v252, %v510
      %v1023 = vsub.f32 %v253, %v511
      %v1024 = vsub.f32 %v254, %v512
      %v1025 = vsub.f32 %v255, %v513
      %v1026 = vsub.f32 %v256, %v514
      %v1027 = vsub.f32 %v257, %v515
      %v1028 = vsub.f32 %v258, %v516
      %v1029 = vsub.f32 %v259, %v517
      %v1030 = vsub.f32 %v260, %v518
      %v1031 = vsub.f32 %v261, %v519
      %v1032 = vsub.f32 %v262, %v520
      %v1033 = vsub.f32 %v263, %v521
      %v1034 = vsub.f32 %v264, %v522
      %v1035 = vsub.f32 %v265, %v523
      %v1036 = vsub.f32 %v266, %v524
      %v1037 = vsub.f32 %v267, %v525
      %v1038 = vsub.f32 %v268, %v526
      %v1039 = vsub.f32 %v269, %v527
      %v1040 = vsub.f32 %v270, %v528
      %v1041 = vsub.f32 %v271, %v529
      %v1042 = vsub.f32 %v272, %v530
      %v1043 = vsub.f32 %v273, %v531
      %v1044 = vsub.f32 %v274, %v532
      %v1045 = vsub.f32 %v275, %v533
      %v1046 = vsub.f32 %v276, %v534
      %v1047 = vsub.f32 %v277, %v535
      %v1048 = vsub.f32 %v278, %v536
      %v1049 = vsub.f32 %v279, %v537
      %v1050 = vsub.f32 %v280, %v538
      %v1051 = vsub.f32 %v281, %v539
      %v1052 = vsub.f32 %v282, %v540
      %v1053 = vsub.f32 %v283, %v541
      %v1054 = vsub.f32 %v284, %v542
      %v1055 = vsub.f32 %v285, %v543
      %v1056 = vsub.f32 %v286, %v544
      %v1057 = vsub.f32 %v287, %v545
      %v1058 = vsub.f32 %v288, %v546
      %v1059 = vsub.f32 %v289, %v547
      %v1060 = vsub.f32 %v290, %v548
      %v1061 = vsub.f32 %v291, %v549
      %v1062 = vsub.f32 %v292, %v550
      %v1063 = vsub.f32 %v293, %v551
      %v1064 = vsub.f32 %v294, %v552
      %v1065 = vsub.f32 %v295, %v553
      %v1066 = vsub.f32 %v296, %v554
      %v1067 = vadd.f32 %v939, 1e-06
      %v1068 = vadd.f32 %v940, 1e-06
      %v1069 = vadd.f32 %v941, 1e-06
      %v1070 = vadd.f32 %v942, 1e-06
      %v1071 = vadd.f32 %v943, 1e-06
      %v1072 = vadd.f32 %v944, 1e-06
      %v1073 = vadd.f32 %v945, 1e-06
      %v1074 = vadd.f32 %v946, 1e-06
      %v1075 = vadd.f32 %v947, 1e-06
      %v1076 = vadd.f32 %v948, 1e-06
      %v1077 = vadd.f32 %v949, 1e-06
      %v1078 = vadd.f32 %v950, 1e-06
      %v1079 = vadd.f32 %v951, 1e-06
      %v1080 = vadd.f32 %v952, 1e-06
      %v1081 = vadd.f32 %v953, 1e-06
      %v1082 = vadd.f32 %v954, 1e-06
      %v1083 = vadd.f32 %v955, 1e-06
      %v1084 = vadd.f32 %v956, 1e-06
      %v1085 = vadd.f32 %v957, 1e-06
      %v1086 = vadd.f32 %v958, 1e-06
      %v1087 = vadd.f32 %v959, 1e-06
      %v1088 = vadd.f32 %v960, 1e-06
      %v1089 = vadd.f32 %v961, 1e-06
      %v1090 = vadd.f32 %v962, 1e-06
      %v1091 = vadd.f32 %v963, 1e-06
      %v1092 = vadd.f32 %v964, 1e-06
      %v1093 = vadd.f32 %v965, 1e-06
      %v1094 = vadd.f32 %v966, 1e-06
      %v1095 = vadd.f32 %v967, 1e-06
      %v1096 = vadd.f32 %v968, 1e-06
      %v1097 = vadd.f32 %v969, 1e-06
      %v1098 = vadd.f32 %v970, 1e-06
      %v1099 = vadd.f32 %v971, 1e-06
      %v1100 = vadd.f32 %v972, 1e-06
      %v1101 = vadd.f32 %v973, 1e-06
      %v1102 = vadd.f32 %v974, 1e-06
      %v1103 = vadd.f32 %v975, 1e-06
      %v1104 = vadd.f32 %v976, 1e-06
      %v1105 = vadd.f32 %v977, 1e-06
      %v1106 = vadd.f32 %v978, 1e-06
      %v1107 = vadd.f32 %v979, 1e-06
      %v1108 = vadd.f32 %v980, 1e-06
      %v1109 = vadd.f32 %v981, 1e-06
      %v1110 = vadd.f32 %v982, 1e-06
      %v1111 = vadd.f32 %v983, 1e-06
      %v1112 = vadd.f32 %v984, 1e-06
      %v1113 = vadd.f32 %v985, 1e-06
      %v1114 = vadd.f32 %v986, 1e-06
      %v1115 = vadd.f32 %v987, 1e-06
      %v1116 = vadd.f32 %v988, 1e-06
      %v1117 = vadd.f32 %v989, 1e-06
      %v1118 = vadd.f32 %v990, 1e-06
      %v1119 = vadd.f32 %v991, 1e-06
      %v1120 = vadd.f32 %v992, 1e-06
      %v1121 = vadd.f32 %v993, 1e-06
      %v1122 = vadd.f32 %v994, 1e-06
      %v1123 = vadd.f32 %v995, 1e-06
      %v1124 = vadd.f32 %v996, 1e-06
      %v1125 = vadd.f32 %v997, 1e-06
      %v1126 = vadd.f32 %v998, 1e-06
      %v1127 = vadd.f32 %v999, 1e-06
      %v1128 = vadd.f32 %v1000, 1e-06
      %v1129 = vadd.f32 %v1001, 1e-06
      %v1130 = vadd.f32 %v1002, 1e-06
      %v1131 = vrsqrt.pop %v1067
      %v1132 = vrsqrt.pop %v1068
      %v1133 = vrsqrt.pop %v1069
      %v1134 = vrsqrt.pop %v1070
      %v1135 = vrsqrt.pop %v1071
      %v1136 = vrsqrt.pop %v1072
      %v1137 = vrsqrt.pop %v1073
      %v1138 = vrsqrt.pop %v1074
      %v1139 = vrsqrt.pop %v1075
      %v1140 = vrsqrt.pop %v1076
      %v1141 = vrsqrt.pop %v1077
      %v1142 = vrsqrt.pop %v1078
      %v1143 = vrsqrt.pop %v1079
      %v1144 = vrsqrt.pop %v1080
      %v1145 = vrsqrt.pop %v1081
      %v1146 = vrsqrt.pop %v1082
      %v1147 = vrsqrt.pop %v1083
      %v1148 = vrsqrt.pop %v1084
      %v1149 = vrsqrt.pop %v1085
      %v1150 = vrsqrt.pop %v1086
      %v1151 = vrsqrt.pop %v1087
      %v1152 = vrsqrt.pop %v1088
      %v1153 = vrsqrt.pop %v1089
      %v1154 = vrsqrt.pop %v1090
      %v1155 = vrsqrt.pop %v1091
      %v1156 = vrsqrt.pop %v1092
      %v1157 = vrsqrt.pop %v1093
      %v1158 = vrsqrt.pop %v1094
      %v1159 = vrsqrt.pop %v1095
      %v1160 = vrsqrt.pop %v1096
      %v1161 = vrsqrt.pop %v1097
      %v1162 = vrsqrt.pop %v1098
      %v1163 = vrsqrt.pop %v1099
      %v1164 = vrsqrt.pop %v1100
      %v1165 = vrsqrt.pop %v1101
      %v1166 = vrsqrt.pop %v1102
      %v1167 = vrsqrt.pop %v1103
      %v1168 = vrsqrt.pop %v1104
      %v1169 = vrsqrt.pop %v1105
      %v1170 = vrsqrt.pop %v1106
      %v1171 = vrsqrt.pop %v1107
      %v1172 = vrsqrt.pop %v1108
      %v1173 = vrsqrt.pop %v1109
      %v1174 = vrsqrt.pop %v1110
      %v1175 = vrsqrt.pop %v1111
      %v1176 = vrsqrt.pop %v1112
      %v1177 = vrsqrt.pop %v1113
      %v1178 = vrsqrt.pop %v1114
      %v1179 = vrsqrt.pop %v1115
      %v1180 = vrsqrt.pop %v1116
      %v1181 = vrsqrt.pop %v1117
      %v1182 = vrsqrt.pop %v1118
      %v1183 = vrsqrt.pop %v1119
      %v1184 = vrsqrt.pop %v1120
      %v1185 = vrsqrt.pop %v1121
      %v1186 = vrsqrt.pop %v1122
      %v1187 = vrsqrt.pop %v1123
      %v1188 = vrsqrt.pop %v1124
      %v1189 = vrsqrt.pop %v1125
      %v1190 = vrsqrt.pop %v1126
      %v1191 = vrsqrt.pop %v1127
      %v1192 = vrsqrt.pop %v1128
      %v1193 = vrsqrt.pop %v1129
      %v1194 = vrsqrt.pop %v1130
      %v1195 = vmul.f32 %v1003, %v1131
      %v1196 = vmul.f32 %v1004, %v1132
      %v1197 = vmul.f32 %v1005, %v1133
      %v1198 = vmul.f32 %v1006, %v1134
      %v1199 = vmul.f32 %v1007, %v1135
      %v1200 = vmul.f32 %v1008, %v1136
      %v1201 = vmul.f32 %v1009, %v1137
      %v1202 = vmul.f32 %v1010, %v1138
      %v1203 = vmul.f32 %v1011, %v1139
      %v1204 = vmul.f32 %v1012, %v1140
      %v1205 = vmul.f32 %v1013, %v1141
      %v1206 = vmul.f32 %v1014, %v1142
      %v1207 = vmul.f32 %v1015, %v1143
      %v1208 = vmul.f32 %v1016, %v1144
      %v1209 = vmul.f32 %v1017, %v1145
      %v1210 = vmul.f32 %v1018, %v1146
      %v1211 = vmul.f32 %v1019, %v1147
      %v1212 = vmul.f32 %v1020, %v1148
      %v1213 = vmul.f32 %v1021, %v1149
      %v1214 = vmul.f32 %v1022, %v1150
      %v1215 = vmul.f32 %v1023, %v1151
      %v1216 = vmul.f32 %v1024, %v1152
      %v1217 = vmul.f32 %v1025, %v1153
      %v1218 = vmul.f32 %v1026, %v1154
      %v1219 = vmul.f32 %v1027, %v1155
      %v1220 = vmul.f32 %v1028, %v1156
      %v1221 = vmul.f32 %v1029, %v1157
      %v1222 = vmul.f32 %v1030, %v1158
      %v1223 = vmul.f32 %v1031, %v1159
      %v1224 = vmul.f32 %v1032, %v1160
      %v1225 = vmul.f32 %v1033, %v1161
      %v1226 = vmul.f32 %v1034, %v1162
      %v1227 = vmul.f32 %v1035, %v1163
      %v1228 = vmul.f32 %v1036, %v1164
      %v1229 = vmul.f32 %v1037, %v1165
      %v1230 = vmul.f32 %v1038, %v1166
      %v1231 = vmul.f32 %v1039, %v1167
      %v1232 = vmul.f32 %v1040, %v1168
      %v1233 = vmul.f32 %v1041, %v1169
      %v1234 = vmul.f32 %v1042, %v1170
      %v1235 = vmul.f32 %v1043, %v1171
      %v1236 = vmul.f32 %v1044, %v1172
      %v1237 = vmul.f32 %v1045, %v1173
      %v1238 = vmul.f32 %v1046, %v1174
      %v1239 = vmul.f32 %v1047, %v1175
      %v1240 = vmul.f32 %v1048, %v1176
      %v1241 = vmul.f32 %v1049, %v1177
      %v1242 = vmul.f32 %v1050, %v1178
      %v1243 = vmul.f32 %v1051, %v1179
      %v1244 = vmul.f32 %v1052, %v1180
      %v1245 = vmul.f32 %v1053, %v1181
      %v1246 = vmul.f32 %v1054, %v1182
      %v1247 = vmul.f32 %v1055, %v1183
      %v1248 = vmul.f32 %v1056, %v1184
      %v1249 = vmul.f32 %v1057, %v1185
      %v1250 = vmul.f32 %v1058, %v1186
      %v1251 = vmul.f32 %v1059, %v1187
      %v1252 = vmul.f32 %v1060, %v1188
      %v1253 = vmul.f32 %v1061, %v1189
      %v1254 = vmul.f32 %v1062, %v1190
      %v1255 = vmul.f32 %v1063, %v1191
      %v1256 = vmul.f32 %v1064, %v1192
      %v1257 = vmul.f32 %v1065, %v1193
      %v1258 = vmul.f32 %v1066, %v1194
      %v1259 = vlaneseq
      %v1260 = vshrl.u32 %v1259, 7
      %v1261 = vsub.s32 0, %v1260
      %v1262 = vrot.slane %v297, %v1261
      %v1263 = vmul.f32 %v1195, %v1262
      %v1264 = vmul.f32 %v1196, %v1262
      %v1265 = vmul.f32 %v1197, %v1262
      %v1266 = vmul.f32 %v1198, %v1262
      %v1267 = vmul.f32 %v1199, %v1262
      %v1268 = vmul.f32 %v1200, %v1262
      %v1269 = vmul.f32 %v1201, %v1262
      %v1270 = vmul.f32 %v1202, %v1262
      %v1271 = vmul.f32 %v1203, %v1262
      %v1272 = vmul.f32 %v1204, %v1262
      %v1273 = vmul.f32 %v1205, %v1262
      %v1274 = vmul.f32 %v1206, %v1262
      %v1275 = vmul.f32 %v1207, %v1262
      %v1276 = vmul.f32 %v1208, %v1262
      %v1277 = vmul.f32 %v1209, %v1262
      %v1278 = vmul.f32 %v1210, %v1262
      %v1279 = vmul.f32 %v1211, %v1262
      %v1280 = vmul.f32 %v1212, %v1262
      %v1281 = vmul.f32 %v1213, %v1262
      %v1282 = vmul.f32 %v1214, %v1262
      %v1283 = vmul.f32 %v1215, %v1262
      %v1284 = vmul.f32 %v1216, %v1262
      %v1285 = vmul.f32 %v1217, %v1262
      %v1286 = vmul.f32 %v1218, %v1262
      %v1287 = vmul.f32 %v1219, %v1262
      %v1288 = vmul.f32 %v1220, %v1262
      %v1289 = vmul.f32 %v1221, %v1262
      %v1290 = vmul.f32 %v1222, %v1262
      %v1291 = vmul.f32 %v1223, %v1262
      %v1292 = vmul.f32 %v1224, %v1262
      %v1293 = vmul.f32 %v1225, %v1262
      %v1294 = vmul.f32 %v1226, %v1262
      %v1295 = vmul.f32 %v1227, %v1262
      %v1296 = vmul.f32 %v1228, %v1262
      %v1297 = vmul.f32 %v1229, %v1262
      %v1298 = vmul.f32 %v1230, %v1262
      %v1299 = vmul.f32 %v1231, %v1262
      %v1300 = vmul.f32 %v1232, %v1262
      %v1301 = vmul.f32 %v1233, %v1262
      %v1302 = vmul.f32 %v1234, %v1262
      %v1303 = vmul.f32 %v1235, %v1262
      %v1304 = vmul.f32 %v1236, %v1262
      %v1305 = vmul.f32 %v1237, %v1262
      %v1306 = vmul.f32 %v1238, %v1262
      %v1307 = vmul.f32 %v1239, %v1262
      %v1308 = vmul.f32 %v1240, %v1262
      %v1309 = vmul.f32 %v1241, %v1262
      %v1310 = vmul.f32 %v1242, %v1262
      %v1311 = vmul.f32 %v1243, %v1262
      %v1312 = vmul.f32 %v1244, %v1262
      %v1313 = vmul.f32 %v1245, %v1262
      %v1314 = vmul.f32 %v1246, %v1262
      %v1315 = vmul.f32 %v1247, %v1262
      %v1316 = vmul.f32 %v1248, %v1262
      %v1317 = vmul.f32 %v1249, %v1262
      %v1318 = vmul.f32 %v1250, %v1262
      %v1319 = vmul.f32 %v1251, %v1262
      %v1320 = vmul.f32 %v1252, %v1262
      %v1321 = vmul.f32 %v1253, %v1262
      %v1322 = vmul.f32 %v1254, %v1262
      %v1323 = vmul.f32 %v1255, %v1262
      %v1324 = vmul.f32 %v1256, %v1262
      %v1325 = vmul.f32 %v1257, %v1262
      %v1326 = vmul.f32 %v1258, %v1262
      %v1327 = vlaneseq
      %v1328 = vshrl.u32 %v1327, 7
      %v1329 = vsub.s32 1, %v1328
      %v1330 = vrot.slane %v297, %v1329
      %v1331 = vadd.f32 %v1263, %v1330
      %v1332 = vadd.f32 %v1264, %v1330
      %v1333 = vadd.f32 %v1265, %v1330
      %v1334 = vadd.f32 %v1266, %v1330
      %v1335 = vadd.f32 %v1267, %v1330
      %v1336 = vadd.f32 %v1268, %v1330
      %v1337 = vadd.f32 %v1269, %v1330
      %v1338 = vadd.f32 %v1270, %v1330
      %v1339 = vadd.f32 %v1271, %v1330
      %v1340 = vadd.f32 %v1272, %v1330
      %v1341 = vadd.f32 %v1273, %v1330
      %v1342 = vadd.f32 %v1274, %v1330
      %v1343 = vadd.f32 %v1275, %v1330
      %v1344 = vadd.f32 %v1276, %v1330
      %v1345 = vadd.f32 %v1277, %v1330
      %v1346 = vadd.f32 %v1278, %v1330
      %v1347 = vadd.f32 %v1279, %v1330
      %v1348 = vadd.f32 %v1280, %v1330
      %v1349 = vadd.f32 %v1281, %v1330
      %v1350 = vadd.f32 %v1282, %v1330
      %v1351 = vadd.f32 %v1283, %v1330
      %v1352 = vadd.f32 %v1284, %v1330
      %v1353 = vadd.f32 %v1285, %v1330
      %v1354 = vadd.f32 %v1286, %v1330
      %v1355 = vadd.f32 %v1287, %v1330
      %v1356 = vadd.f32 %v1288, %v1330
      %v1357 = vadd.f32 %v1289, %v1330
      %v1358 = vadd.f32 %v1290, %v1330
      %v1359 = vadd.f32 %v1291, %v1330
      %v1360 = vadd.f32 %v1292, %v1330
      %v1361 = vadd.f32 %v1293, %v1330
      %v1362 = vadd.f32 %v1294, %v1330
      %v1363 = vadd.f32 %v1295, %v1330
      %v1364 = vadd.f32 %v1296, %v1330
      %v1365 = vadd.f32 %v1297, %v1330
      %v1366 = vadd.f32 %v1298, %v1330
      %v1367 = vadd.f32 %v1299, %v1330
      %v1368 = vadd.f32 %v1300, %v1330
      %v1369 = vadd.f32 %v1301, %v1330
      %v1370 = vadd.f32 %v1302, %v1330
      %v1371 = vadd.f32 %v1303, %v1330
      %v1372 = vadd.f32 %v1304, %v1330
      %v1373 = vadd.f32 %v1305, %v1330
      %v1374 = vadd.f32 %v1306, %v1330
      %v1375 = vadd.f32 %v1307, %v1330
      %v1376 = vadd.f32 %v1308, %v1330
      %v1377 = vadd.f32 %v1309, %v1330
      %v1378 = vadd.f32 %v1310, %v1330
      %v1379 = vadd.f32 %v1311, %v1330
      %v1380 = vadd.f32 %v1312, %v1330
      %v1381 = vadd.f32 %v1313, %v1330
      %v1382 = vadd.f32 %v1314, %v1330
      %v1383 = vadd.f32 %v1315, %v1330
      %v1384 = vadd.f32 %v1316, %v1330
      %v1385 = vadd.f32 %v1317, %v1330
      %v1386 = vadd.f32 %v1318, %v1330
      %v1387 = vadd.f32 %v1319, %v1330
      %v1388 = vadd.f32 %v1320, %v1330
      %v1389 = vadd.f32 %v1321, %v1330
      %v1390 = vadd.f32 %v1322, %v1330
      %v1391 = vadd.f32 %v1323, %v1330
      %v1392 = vadd.f32 %v1324, %v1330
      %v1393 = vadd.f32 %v1325, %v1330
      %v1394 = vadd.f32 %v1326, %v1330
      %v1395 = vadd.f32 %v233, %v1331
      %v1396 = vadd.f32 %v234, %v1332
      %v1397 = vadd.f32 %v235, %v1333
      %v1398 = vadd.f32 %v236, %v1334
      %v1399 = vadd.f32 %v237, %v1335
      %v1400 = vadd.f32 %v238, %v1336
      %v1401 = vadd.f32 %v239, %v1337
      %v1402 = vadd.f32 %v240, %v1338
      %v1403 = vadd.f32 %v241, %v1339
      %v1404 = vadd.f32 %v242, %v1340
      %v1405 = vadd.f32 %v243, %v1341
      %v1406 = vadd.f32 %v244, %v1342
      %v1407 = vadd.f32 %v245, %v1343
      %v1408 = vadd.f32 %v246, %v1344
      %v1409 = vadd.f32 %v247, %v1345
      %v1410 = vadd.f32 %v248, %v1346
      %v1411 = vadd.f32 %v249, %v1347
      %v1412 = vadd.f32 %v250, %v1348
      %v1413 = vadd.f32 %v251, %v1349
      %v1414 = vadd.f32 %v252, %v1350
      %v1415 = vadd.f32 %v253, %v1351
      %v1416 = vadd.f32 %v254, %v1352
      %v1417 = vadd.f32 %v255, %v1353
      %v1418 = vadd.f32 %v256, %v1354
      %v1419 = vadd.f32 %v257, %v1355
      %v1420 = vadd.f32 %v258, %v1356
      %v1421 = vadd.f32 %v259, %v1357
      %v1422 = vadd.f32 %v260, %v1358
      %v1423 = vadd.f32 %v261, %v1359
      %v1424 = vadd.f32 %v262, %v1360
      %v1425 = vadd.f32 %v263, %v1361
      %v1426 = vadd.f32 %v264, %v1362
      %v1427 = vadd.f32 %v265, %v1363
      %v1428 = vadd.f32 %v266, %v1364
      %v1429 = vadd.f32 %v267, %v1365
      %v1430 = vadd.f32 %v268, %v1366
      %v1431 = vadd.f32 %v269, %v1367
      %v1432 = vadd.f32 %v270, %v1368
      %v1433 = vadd.f32 %v271, %v1369
      %v1434 = vadd.f32 %v272, %v1370
      %v1435 = vadd.f32 %v273, %v1371
      %v1436 = vadd.f32 %v274, %v1372
      %v1437 = vadd.f32 %v275, %v1373
      %v1438 = vadd.f32 %v276, %v1374
      %v1439 = vadd.f32 %v277, %v1375
      %v1440 = vadd.f32 %v278, %v1376
      %v1441 = vadd.f32 %v279, %v1377
      %v1442 = vadd.f32 %v280, %v1378
      %v1443 = vadd.f32 %v281, %v1379
      %v1444 = vadd.f32 %v282, %v1380
      %v1445 = vadd.f32 %v283, %v1381
      %v1446 = vadd.f32 %v284, %v1382
      %v1447 = vadd.f32 %v285, %v1383
      %v1448 = vadd.f32 %v286, %v1384
      %v1449 = vadd.f32 %v287, %v1385
      %v1450 = vadd.f32 %v288, %v1386
      %v1451 = vadd.f32 %v289, %v1387
      %v1452 = vadd.f32 %v290, %v1388
      %v1453 = vadd.f32 %v291, %v1389
      %v1454 = vadd.f32 %v292, %v1390
      %v1455 = vadd.f32 %v293, %v1391
      %v1456 = vadd.f32 %v294, %v1392
      %v1457 = vadd.f32 %v295, %v1393
      %v1458 = vadd.f32 %v296, %v1394
      %v1459 = vsel %vm298, %v1395, 0.0
      %1460 = vadd.xlane.f32.xlu0 %v1459
      %v1461 = vpop.xlane.xlu0 %1460
      %v1462 = vsel %vm298, %v1396, 0.0
      %1463 = vadd.xlane.f32.xlu0 %v1462
      %v1464 = vpop.xlane.xlu0 %1463
      %v1465 = vsel %vm298, %v1397, 0.0
      %1466 = vadd.xlane.f32.xlu0 %v1465
      %v1467 = vpop.xlane.xlu0 %1466
      %v1468 = vsel %vm298, %v1398, 0.0
      %1469 = vadd.xlane.f32.xlu0 %v1468
      %v1470 = vpop.xlane.xlu0 %1469
      %v1471 = vsel %vm298, %v1399, 0.0
      %1472 = vadd.xlane.f32.xlu0 %v1471
      %v1473 = vpop.xlane.xlu0 %1472
      %v1474 = vsel %vm298, %v1400, 0.0
      %1475 = vadd.xlane.f32.xlu0 %v1474
      %v1476 = vpop.xlane.xlu0 %1475
      %v1477 = vsel %vm298, %v1401, 0.0
      %1478 = vadd.xlane.f32.xlu0 %v1477
      %v1479 = vpop.xlane.xlu0 %1478
      %v1480 = vsel %vm298, %v1402, 0.0
      %1481 = vadd.xlane.f32.xlu0 %v1480
      %v1482 = vpop.xlane.xlu0 %1481
      %v1483 = vsel %vm298, %v1403, 0.0
      %1484 = vadd.xlane.f32.xlu0 %v1483
      %v1485 = vpop.xlane.xlu0 %1484
      %v1486 = vsel %vm298, %v1404, 0.0
      %1487 = vadd.xlane.f32.xlu0 %v1486
      %v1488 = vpop.xlane.xlu0 %1487
      %v1489 = vsel %vm298, %v1405, 0.0
      %1490 = vadd.xlane.f32.xlu0 %v1489
      %v1491 = vpop.xlane.xlu0 %1490
      %v1492 = vsel %vm298, %v1406, 0.0
      %1493 = vadd.xlane.f32.xlu0 %v1492
      %v1494 = vpop.xlane.xlu0 %1493
      %v1495 = vsel %vm298, %v1407, 0.0
      %1496 = vadd.xlane.f32.xlu0 %v1495
      %v1497 = vpop.xlane.xlu0 %1496
      %v1498 = vsel %vm298, %v1408, 0.0
      %1499 = vadd.xlane.f32.xlu0 %v1498
      %v1500 = vpop.xlane.xlu0 %1499
      %v1501 = vsel %vm298, %v1409, 0.0
      %1502 = vadd.xlane.f32.xlu0 %v1501
      %v1503 = vpop.xlane.xlu0 %1502
      %v1504 = vsel %vm298, %v1410, 0.0
      %1505 = vadd.xlane.f32.xlu0 %v1504
      %v1506 = vpop.xlane.xlu0 %1505
      %v1507 = vsel %vm298, %v1411, 0.0
      %1508 = vadd.xlane.f32.xlu0 %v1507
      %v1509 = vpop.xlane.xlu0 %1508
      %v1510 = vsel %vm298, %v1412, 0.0
      %1511 = vadd.xlane.f32.xlu0 %v1510
      %v1512 = vpop.xlane.xlu0 %1511
      %v1513 = vsel %vm298, %v1413, 0.0
      %1514 = vadd.xlane.f32.xlu0 %v1513
      %v1515 = vpop.xlane.xlu0 %1514
      %v1516 = vsel %vm298, %v1414, 0.0
      %1517 = vadd.xlane.f32.xlu0 %v1516
      %v1518 = vpop.xlane.xlu0 %1517
      %v1519 = vsel %vm298, %v1415, 0.0
      %1520 = vadd.xlane.f32.xlu0 %v1519
      %v1521 = vpop.xlane.xlu0 %1520
      %v1522 = vsel %vm298, %v1416, 0.0
      %1523 = vadd.xlane.f32.xlu0 %v1522
      %v1524 = vpop.xlane.xlu0 %1523
      %v1525 = vsel %vm298, %v1417, 0.0
      %1526 = vadd.xlane.f32.xlu0 %v1525
      %v1527 = vpop.xlane.xlu0 %1526
      %v1528 = vsel %vm298, %v1418, 0.0
      %1529 = vadd.xlane.f32.xlu0 %v1528
      %v1530 = vpop.xlane.xlu0 %1529
      %v1531 = vsel %vm298, %v1419, 0.0
      %1532 = vadd.xlane.f32.xlu0 %v1531
      %v1533 = vpop.xlane.xlu0 %1532
      %v1534 = vsel %vm298, %v1420, 0.0
      %1535 = vadd.xlane.f32.xlu0 %v1534
      %v1536 = vpop.xlane.xlu0 %1535
      %v1537 = vsel %vm298, %v1421, 0.0
      %1538 = vadd.xlane.f32.xlu0 %v1537
      %v1539 = vpop.xlane.xlu0 %1538
      %v1540 = vsel %vm298, %v1422, 0.0
      %1541 = vadd.xlane.f32.xlu0 %v1540
      %v1542 = vpop.xlane.xlu0 %1541
      %v1543 = vsel %vm298, %v1423, 0.0
      %1544 = vadd.xlane.f32.xlu0 %v1543
      %v1545 = vpop.xlane.xlu0 %1544
      %v1546 = vsel %vm298, %v1424, 0.0
      %1547 = vadd.xlane.f32.xlu0 %v1546
      %v1548 = vpop.xlane.xlu0 %1547
      %v1549 = vsel %vm298, %v1425, 0.0
      %1550 = vadd.xlane.f32.xlu0 %v1549
      %v1551 = vpop.xlane.xlu0 %1550
      %v1552 = vsel %vm298, %v1426, 0.0
      %1553 = vadd.xlane.f32.xlu0 %v1552
      %v1554 = vpop.xlane.xlu0 %1553
      %v1555 = vsel %vm298, %v1427, 0.0
      %1556 = vadd.xlane.f32.xlu0 %v1555
      %v1557 = vpop.xlane.xlu0 %1556
      %v1558 = vsel %vm298, %v1428, 0.0
      %1559 = vadd.xlane.f32.xlu0 %v1558
      %v1560 = vpop.xlane.xlu0 %1559
      %v1561 = vsel %vm298, %v1429, 0.0
      %1562 = vadd.xlane.f32.xlu0 %v1561
      %v1563 = vpop.xlane.xlu0 %1562
      %v1564 = vsel %vm298, %v1430, 0.0
      %1565 = vadd.xlane.f32.xlu0 %v1564
      %v1566 = vpop.xlane.xlu0 %1565
      %v1567 = vsel %vm298, %v1431, 0.0
      %1568 = vadd.xlane.f32.xlu0 %v1567
      %v1569 = vpop.xlane.xlu0 %1568
      %v1570 = vsel %vm298, %v1432, 0.0
      %1571 = vadd.xlane.f32.xlu0 %v1570
      %v1572 = vpop.xlane.xlu0 %1571
      %v1573 = vsel %vm298, %v1433, 0.0
      %1574 = vadd.xlane.f32.xlu0 %v1573
      %v1575 = vpop.xlane.xlu0 %1574
      %v1576 = vsel %vm298, %v1434, 0.0
      %1577 = vadd.xlane.f32.xlu0 %v1576
      %v1578 = vpop.xlane.xlu0 %1577
      %v1579 = vsel %vm298, %v1435, 0.0
      %1580 = vadd.xlane.f32.xlu0 %v1579
      %v1581 = vpop.xlane.xlu0 %1580
      %v1582 = vsel %vm298, %v1436, 0.0
      %1583 = vadd.xlane.f32.xlu0 %v1582
      %v1584 = vpop.xlane.xlu0 %1583
      %v1585 = vsel %vm298, %v1437, 0.0
      %1586 = vadd.xlane.f32.xlu0 %v1585
      %v1587 = vpop.xlane.xlu0 %1586
      %v1588 = vsel %vm298, %v1438, 0.0
      %1589 = vadd.xlane.f32.xlu0 %v1588
      %v1590 = vpop.xlane.xlu0 %1589
      %v1591 = vsel %vm298, %v1439, 0.0
      %1592 = vadd.xlane.f32.xlu0 %v1591
      %v1593 = vpop.xlane.xlu0 %1592
      %v1594 = vsel %vm298, %v1440, 0.0
      %1595 = vadd.xlane.f32.xlu0 %v1594
      %v1596 = vpop.xlane.xlu0 %1595
      %v1597 = vsel %vm298, %v1441, 0.0
      %1598 = vadd.xlane.f32.xlu0 %v1597
      %v1599 = vpop.xlane.xlu0 %1598
      %v1600 = vsel %vm298, %v1442, 0.0
      %1601 = vadd.xlane.f32.xlu0 %v1600
      %v1602 = vpop.xlane.xlu0 %1601
      %v1603 = vsel %vm298, %v1443, 0.0
      %1604 = vadd.xlane.f32.xlu0 %v1603
      %v1605 = vpop.xlane.xlu0 %1604
      %v1606 = vsel %vm298, %v1444, 0.0
      %1607 = vadd.xlane.f32.xlu0 %v1606
      %v1608 = vpop.xlane.xlu0 %1607
      %v1609 = vsel %vm298, %v1445, 0.0
      %1610 = vadd.xlane.f32.xlu0 %v1609
      %v1611 = vpop.xlane.xlu0 %1610
      %v1612 = vsel %vm298, %v1446, 0.0
      %1613 = vadd.xlane.f32.xlu0 %v1612
      %v1614 = vpop.xlane.xlu0 %1613
      %v1615 = vsel %vm298, %v1447, 0.0
      %1616 = vadd.xlane.f32.xlu0 %v1615
      %v1617 = vpop.xlane.xlu0 %1616
      %v1618 = vsel %vm298, %v1448, 0.0
      %1619 = vadd.xlane.f32.xlu0 %v1618
      %v1620 = vpop.xlane.xlu0 %1619
      %v1621 = vsel %vm298, %v1449, 0.0
      %1622 = vadd.xlane.f32.xlu0 %v1621
      %v1623 = vpop.xlane.xlu0 %1622
      %v1624 = vsel %vm298, %v1450, 0.0
      %1625 = vadd.xlane.f32.xlu0 %v1624
      %v1626 = vpop.xlane.xlu0 %1625
      %v1627 = vsel %vm298, %v1451, 0.0
      %1628 = vadd.xlane.f32.xlu0 %v1627
      %v1629 = vpop.xlane.xlu0 %1628
      %v1630 = vsel %vm298, %v1452, 0.0
      %1631 = vadd.xlane.f32.xlu0 %v1630
      %v1632 = vpop.xlane.xlu0 %1631
      %v1633 = vsel %vm298, %v1453, 0.0
      %1634 = vadd.xlane.f32.xlu0 %v1633
      %v1635 = vpop.xlane.xlu0 %1634
      %v1636 = vsel %vm298, %v1454, 0.0
      %1637 = vadd.xlane.f32.xlu0 %v1636
      %v1638 = vpop.xlane.xlu0 %1637
      %v1639 = vsel %vm298, %v1455, 0.0
      %1640 = vadd.xlane.f32.xlu0 %v1639
      %v1641 = vpop.xlane.xlu0 %1640
      %v1642 = vsel %vm298, %v1456, 0.0
      %1643 = vadd.xlane.f32.xlu0 %v1642
      %v1644 = vpop.xlane.xlu0 %1643
      %v1645 = vsel %vm298, %v1457, 0.0
      %1646 = vadd.xlane.f32.xlu0 %v1645
      %v1647 = vpop.xlane.xlu0 %1646
      %v1648 = vsel %vm298, %v1458, 0.0
      %1649 = vadd.xlane.f32.xlu0 %v1648
      %v1650 = vpop.xlane.xlu0 %1649
      %v1651 = vmul.f32 %v1461, 0.0125
      %v1652 = vmul.f32 %v1464, 0.0125
      %v1653 = vmul.f32 %v1467, 0.0125
      %v1654 = vmul.f32 %v1470, 0.0125
      %v1655 = vmul.f32 %v1473, 0.0125
      %v1656 = vmul.f32 %v1476, 0.0125
      %v1657 = vmul.f32 %v1479, 0.0125
      %v1658 = vmul.f32 %v1482, 0.0125
      %v1659 = vmul.f32 %v1485, 0.0125
      %v1660 = vmul.f32 %v1488, 0.0125
      %v1661 = vmul.f32 %v1491, 0.0125
      %v1662 = vmul.f32 %v1494, 0.0125
      %v1663 = vmul.f32 %v1497, 0.0125
      %v1664 = vmul.f32 %v1500, 0.0125
      %v1665 = vmul.f32 %v1503, 0.0125
      %v1666 = vmul.f32 %v1506, 0.0125
      %v1667 = vmul.f32 %v1509, 0.0125
      %v1668 = vmul.f32 %v1512, 0.0125
      %v1669 = vmul.f32 %v1515, 0.0125
      %v1670 = vmul.f32 %v1518, 0.0125
      %v1671 = vmul.f32 %v1521, 0.0125
      %v1672 = vmul.f32 %v1524, 0.0125
      %v1673 = vmul.f32 %v1527, 0.0125
      %v1674 = vmul.f32 %v1530, 0.0125
      %v1675 = vmul.f32 %v1533, 0.0125
      %v1676 = vmul.f32 %v1536, 0.0125
      %v1677 = vmul.f32 %v1539, 0.0125
      %v1678 = vmul.f32 %v1542, 0.0125
      %v1679 = vmul.f32 %v1545, 0.0125
      %v1680 = vmul.f32 %v1548, 0.0125
      %v1681 = vmul.f32 %v1551, 0.0125
      %v1682 = vmul.f32 %v1554, 0.0125
      %v1683 = vmul.f32 %v1557, 0.0125
      %v1684 = vmul.f32 %v1560, 0.0125
      %v1685 = vmul.f32 %v1563, 0.0125
      %v1686 = vmul.f32 %v1566, 0.0125
      %v1687 = vmul.f32 %v1569, 0.0125
      %v1688 = vmul.f32 %v1572, 0.0125
      %v1689 = vmul.f32 %v1575, 0.0125
      %v1690 = vmul.f32 %v1578, 0.0125
      %v1691 = vmul.f32 %v1581, 0.0125
      %v1692 = vmul.f32 %v1584, 0.0125
      %v1693 = vmul.f32 %v1587, 0.0125
      %v1694 = vmul.f32 %v1590, 0.0125
      %v1695 = vmul.f32 %v1593, 0.0125
      %v1696 = vmul.f32 %v1596, 0.0125
      %v1697 = vmul.f32 %v1599, 0.0125
      %v1698 = vmul.f32 %v1602, 0.0125
      %v1699 = vmul.f32 %v1605, 0.0125
      %v1700 = vmul.f32 %v1608, 0.0125
      %v1701 = vmul.f32 %v1611, 0.0125
      %v1702 = vmul.f32 %v1614, 0.0125
      %v1703 = vmul.f32 %v1617, 0.0125
      %v1704 = vmul.f32 %v1620, 0.0125
      %v1705 = vmul.f32 %v1623, 0.0125
      %v1706 = vmul.f32 %v1626, 0.0125
      %v1707 = vmul.f32 %v1629, 0.0125
      %v1708 = vmul.f32 %v1632, 0.0125
      %v1709 = vmul.f32 %v1635, 0.0125
      %v1710 = vmul.f32 %v1638, 0.0125
      %v1711 = vmul.f32 %v1641, 0.0125
      %v1712 = vmul.f32 %v1644, 0.0125
      %v1713 = vmul.f32 %v1647, 0.0125
      %v1714 = vmul.f32 %v1650, 0.0125
      %v1715 = vmul.f32 %v1395, %v1395
      %v1716 = vmul.f32 %v1396, %v1396
      %v1717 = vmul.f32 %v1397, %v1397
      %v1718 = vmul.f32 %v1398, %v1398
      %v1719 = vmul.f32 %v1399, %v1399
      %v1720 = vmul.f32 %v1400, %v1400
      %v1721 = vmul.f32 %v1401, %v1401
      %v1722 = vmul.f32 %v1402, %v1402
      %v1723 = vmul.f32 %v1403, %v1403
      %v1724 = vmul.f32 %v1404, %v1404
      %v1725 = vmul.f32 %v1405, %v1405
      %v1726 = vmul.f32 %v1406, %v1406
      %v1727 = vmul.f32 %v1407, %v1407
      %v1728 = vmul.f32 %v1408, %v1408
      %v1729 = vmul.f32 %v1409, %v1409
      %v1730 = vmul.f32 %v1410, %v1410
      %v1731 = vmul.f32 %v1411, %v1411
      %v1732 = vmul.f32 %v1412, %v1412
      %v1733 = vmul.f32 %v1413, %v1413
      %v1734 = vmul.f32 %v1414, %v1414
      %v1735 = vmul.f32 %v1415, %v1415
      %v1736 = vmul.f32 %v1416, %v1416
      %v1737 = vmul.f32 %v1417, %v1417
      %v1738 = vmul.f32 %v1418, %v1418
      %v1739 = vmul.f32 %v1419, %v1419
      %v1740 = vmul.f32 %v1420, %v1420
      %v1741 = vmul.f32 %v1421, %v1421
      %v1742 = vmul.f32 %v1422, %v1422
      %v1743 = vmul.f32 %v1423, %v1423
      %v1744 = vmul.f32 %v1424, %v1424
      %v1745 = vmul.f32 %v1425, %v1425
      %v1746 = vmul.f32 %v1426, %v1426
      %v1747 = vmul.f32 %v1427, %v1427
      %v1748 = vmul.f32 %v1428, %v1428
      %v1749 = vmul.f32 %v1429, %v1429
      %v1750 = vmul.f32 %v1430, %v1430
      %v1751 = vmul.f32 %v1431, %v1431
      %v1752 = vmul.f32 %v1432, %v1432
      %v1753 = vmul.f32 %v1433, %v1433
      %v1754 = vmul.f32 %v1434, %v1434
      %v1755 = vmul.f32 %v1435, %v1435
      %v1756 = vmul.f32 %v1436, %v1436
      %v1757 = vmul.f32 %v1437, %v1437
      %v1758 = vmul.f32 %v1438, %v1438
      %v1759 = vmul.f32 %v1439, %v1439
      %v1760 = vmul.f32 %v1440, %v1440
      %v1761 = vmul.f32 %v1441, %v1441
      %v1762 = vmul.f32 %v1442, %v1442
      %v1763 = vmul.f32 %v1443, %v1443
      %v1764 = vmul.f32 %v1444, %v1444
      %v1765 = vmul.f32 %v1445, %v1445
      %v1766 = vmul.f32 %v1446, %v1446
      %v1767 = vmul.f32 %v1447, %v1447
      %v1768 = vmul.f32 %v1448, %v1448
      %v1769 = vmul.f32 %v1449, %v1449
      %v1770 = vmul.f32 %v1450, %v1450
      %v1771 = vmul.f32 %v1451, %v1451
      %v1772 = vmul.f32 %v1452, %v1452
      %v1773 = vmul.f32 %v1453, %v1453
      %v1774 = vmul.f32 %v1454, %v1454
      %v1775 = vmul.f32 %v1455, %v1455
      %v1776 = vmul.f32 %v1456, %v1456
      %v1777 = vmul.f32 %v1457, %v1457
      %v1778 = vmul.f32 %v1458, %v1458
      %v1779 = vsel %vm298, %v1715, 0.0
      %1780 = vadd.xlane.f32.xlu0 %v1779
      %v1781 = vpop.xlane.xlu0 %1780
      %v1782 = vsel %vm298, %v1716, 0.0
      %1783 = vadd.xlane.f32.xlu0 %v1782
      %v1784 = vpop.xlane.xlu0 %1783
      %v1785 = vsel %vm298, %v1717, 0.0
      %1786 = vadd.xlane.f32.xlu0 %v1785
      %v1787 = vpop.xlane.xlu0 %1786
      %v1788 = vsel %vm298, %v1718, 0.0
      %1789 = vadd.xlane.f32.xlu0 %v1788
      %v1790 = vpop.xlane.xlu0 %1789
      %v1791 = vsel %vm298, %v1719, 0.0
      %1792 = vadd.xlane.f32.xlu0 %v1791
      %v1793 = vpop.xlane.xlu0 %1792
      %v1794 = vsel %vm298, %v1720, 0.0
      %1795 = vadd.xlane.f32.xlu0 %v1794
      %v1796 = vpop.xlane.xlu0 %1795
      %v1797 = vsel %vm298, %v1721, 0.0
      %1798 = vadd.xlane.f32.xlu0 %v1797
      %v1799 = vpop.xlane.xlu0 %1798
      %v1800 = vsel %vm298, %v1722, 0.0
      %1801 = vadd.xlane.f32.xlu0 %v1800
      %v1802 = vpop.xlane.xlu0 %1801
      %v1803 = vsel %vm298, %v1723, 0.0
      %1804 = vadd.xlane.f32.xlu0 %v1803
      %v1805 = vpop.xlane.xlu0 %1804
      %v1806 = vsel %vm298, %v1724, 0.0
      %1807 = vadd.xlane.f32.xlu0 %v1806
      %v1808 = vpop.xlane.xlu0 %1807
      %v1809 = vsel %vm298, %v1725, 0.0
      %1810 = vadd.xlane.f32.xlu0 %v1809
      %v1811 = vpop.xlane.xlu0 %1810
      %v1812 = vsel %vm298, %v1726, 0.0
      %1813 = vadd.xlane.f32.xlu0 %v1812
      %v1814 = vpop.xlane.xlu0 %1813
      %v1815 = vsel %vm298, %v1727, 0.0
      %1816 = vadd.xlane.f32.xlu0 %v1815
      %v1817 = vpop.xlane.xlu0 %1816
      %v1818 = vsel %vm298, %v1728, 0.0
      %1819 = vadd.xlane.f32.xlu0 %v1818
      %v1820 = vpop.xlane.xlu0 %1819
      %v1821 = vsel %vm298, %v1729, 0.0
      %1822 = vadd.xlane.f32.xlu0 %v1821
      %v1823 = vpop.xlane.xlu0 %1822
      %v1824 = vsel %vm298, %v1730, 0.0
      %1825 = vadd.xlane.f32.xlu0 %v1824
      %v1826 = vpop.xlane.xlu0 %1825
      %v1827 = vsel %vm298, %v1731, 0.0
      %1828 = vadd.xlane.f32.xlu0 %v1827
      %v1829 = vpop.xlane.xlu0 %1828
      %v1830 = vsel %vm298, %v1732, 0.0
      %1831 = vadd.xlane.f32.xlu0 %v1830
      %v1832 = vpop.xlane.xlu0 %1831
      %v1833 = vsel %vm298, %v1733, 0.0
      %1834 = vadd.xlane.f32.xlu0 %v1833
      %v1835 = vpop.xlane.xlu0 %1834
      %v1836 = vsel %vm298, %v1734, 0.0
      %1837 = vadd.xlane.f32.xlu0 %v1836
      %v1838 = vpop.xlane.xlu0 %1837
      %v1839 = vsel %vm298, %v1735, 0.0
      %1840 = vadd.xlane.f32.xlu0 %v1839
      %v1841 = vpop.xlane.xlu0 %1840
      %v1842 = vsel %vm298, %v1736, 0.0
      %1843 = vadd.xlane.f32.xlu0 %v1842
      %v1844 = vpop.xlane.xlu0 %1843
      %v1845 = vsel %vm298, %v1737, 0.0
      %1846 = vadd.xlane.f32.xlu0 %v1845
      %v1847 = vpop.xlane.xlu0 %1846
      %v1848 = vsel %vm298, %v1738, 0.0
      %1849 = vadd.xlane.f32.xlu0 %v1848
      %v1850 = vpop.xlane.xlu0 %1849
      %v1851 = vsel %vm298, %v1739, 0.0
      %1852 = vadd.xlane.f32.xlu0 %v1851
      %v1853 = vpop.xlane.xlu0 %1852
      %v1854 = vsel %vm298, %v1740, 0.0
      %1855 = vadd.xlane.f32.xlu0 %v1854
      %v1856 = vpop.xlane.xlu0 %1855
      %v1857 = vsel %vm298, %v1741, 0.0
      %1858 = vadd.xlane.f32.xlu0 %v1857
      %v1859 = vpop.xlane.xlu0 %1858
      %v1860 = vsel %vm298, %v1742, 0.0
      %1861 = vadd.xlane.f32.xlu0 %v1860
      %v1862 = vpop.xlane.xlu0 %1861
      %v1863 = vsel %vm298, %v1743, 0.0
      %1864 = vadd.xlane.f32.xlu0 %v1863
      %v1865 = vpop.xlane.xlu0 %1864
      %v1866 = vsel %vm298, %v1744, 0.0
      %1867 = vadd.xlane.f32.xlu0 %v1866
      %v1868 = vpop.xlane.xlu0 %1867
      %v1869 = vsel %vm298, %v1745, 0.0
      %1870 = vadd.xlane.f32.xlu0 %v1869
      %v1871 = vpop.xlane.xlu0 %1870
      %v1872 = vsel %vm298, %v1746, 0.0
      %1873 = vadd.xlane.f32.xlu0 %v1872
      %v1874 = vpop.xlane.xlu0 %1873
      %v1875 = vsel %vm298, %v1747, 0.0
      %1876 = vadd.xlane.f32.xlu0 %v1875
      %v1877 = vpop.xlane.xlu0 %1876
      %v1878 = vsel %vm298, %v1748, 0.0
      %1879 = vadd.xlane.f32.xlu0 %v1878
      %v1880 = vpop.xlane.xlu0 %1879
      %v1881 = vsel %vm298, %v1749, 0.0
      %1882 = vadd.xlane.f32.xlu0 %v1881
      %v1883 = vpop.xlane.xlu0 %1882
      %v1884 = vsel %vm298, %v1750, 0.0
      %1885 = vadd.xlane.f32.xlu0 %v1884
      %v1886 = vpop.xlane.xlu0 %1885
      %v1887 = vsel %vm298, %v1751, 0.0
      %1888 = vadd.xlane.f32.xlu0 %v1887
      %v1889 = vpop.xlane.xlu0 %1888
      %v1890 = vsel %vm298, %v1752, 0.0
      %1891 = vadd.xlane.f32.xlu0 %v1890
      %v1892 = vpop.xlane.xlu0 %1891
      %v1893 = vsel %vm298, %v1753, 0.0
      %1894 = vadd.xlane.f32.xlu0 %v1893
      %v1895 = vpop.xlane.xlu0 %1894
      %v1896 = vsel %vm298, %v1754, 0.0
      %1897 = vadd.xlane.f32.xlu0 %v1896
      %v1898 = vpop.xlane.xlu0 %1897
      %v1899 = vsel %vm298, %v1755, 0.0
      %1900 = vadd.xlane.f32.xlu0 %v1899
      %v1901 = vpop.xlane.xlu0 %1900
      %v1902 = vsel %vm298, %v1756, 0.0
      %1903 = vadd.xlane.f32.xlu0 %v1902
      %v1904 = vpop.xlane.xlu0 %1903
      %v1905 = vsel %vm298, %v1757, 0.0
      %1906 = vadd.xlane.f32.xlu0 %v1905
      %v1907 = vpop.xlane.xlu0 %1906
      %v1908 = vsel %vm298, %v1758, 0.0
      %1909 = vadd.xlane.f32.xlu0 %v1908
      %v1910 = vpop.xlane.xlu0 %1909
      %v1911 = vsel %vm298, %v1759, 0.0
      %1912 = vadd.xlane.f32.xlu0 %v1911
      %v1913 = vpop.xlane.xlu0 %1912
      %v1914 = vsel %vm298, %v1760, 0.0
      %1915 = vadd.xlane.f32.xlu0 %v1914
      %v1916 = vpop.xlane.xlu0 %1915
      %v1917 = vsel %vm298, %v1761, 0.0
      %1918 = vadd.xlane.f32.xlu0 %v1917
      %v1919 = vpop.xlane.xlu0 %1918
      %v1920 = vsel %vm298, %v1762, 0.0
      %1921 = vadd.xlane.f32.xlu0 %v1920
      %v1922 = vpop.xlane.xlu0 %1921
      %v1923 = vsel %vm298, %v1763, 0.0
      %1924 = vadd.xlane.f32.xlu0 %v1923
      %v1925 = vpop.xlane.xlu0 %1924
      %v1926 = vsel %vm298, %v1764, 0.0
      %1927 = vadd.xlane.f32.xlu0 %v1926
      %v1928 = vpop.xlane.xlu0 %1927
      %v1929 = vsel %vm298, %v1765, 0.0
      %1930 = vadd.xlane.f32.xlu0 %v1929
      %v1931 = vpop.xlane.xlu0 %1930
      %v1932 = vsel %vm298, %v1766, 0.0
      %1933 = vadd.xlane.f32.xlu0 %v1932
      %v1934 = vpop.xlane.xlu0 %1933
      %v1935 = vsel %vm298, %v1767, 0.0
      %1936 = vadd.xlane.f32.xlu0 %v1935
      %v1937 = vpop.xlane.xlu0 %1936
      %v1938 = vsel %vm298, %v1768, 0.0
      %1939 = vadd.xlane.f32.xlu0 %v1938
      %v1940 = vpop.xlane.xlu0 %1939
      %v1941 = vsel %vm298, %v1769, 0.0
      %1942 = vadd.xlane.f32.xlu0 %v1941
      %v1943 = vpop.xlane.xlu0 %1942
      %v1944 = vsel %vm298, %v1770, 0.0
      %1945 = vadd.xlane.f32.xlu0 %v1944
      %v1946 = vpop.xlane.xlu0 %1945
      %v1947 = vsel %vm298, %v1771, 0.0
      %1948 = vadd.xlane.f32.xlu0 %v1947
      %v1949 = vpop.xlane.xlu0 %1948
      %v1950 = vsel %vm298, %v1772, 0.0
      %1951 = vadd.xlane.f32.xlu0 %v1950
      %v1952 = vpop.xlane.xlu0 %1951
      %v1953 = vsel %vm298, %v1773, 0.0
      %1954 = vadd.xlane.f32.xlu0 %v1953
      %v1955 = vpop.xlane.xlu0 %1954
      %v1956 = vsel %vm298, %v1774, 0.0
      %1957 = vadd.xlane.f32.xlu0 %v1956
      %v1958 = vpop.xlane.xlu0 %1957
      %v1959 = vsel %vm298, %v1775, 0.0
      %1960 = vadd.xlane.f32.xlu0 %v1959
      %v1961 = vpop.xlane.xlu0 %1960
      %v1962 = vsel %vm298, %v1776, 0.0
      %1963 = vadd.xlane.f32.xlu0 %v1962
      %v1964 = vpop.xlane.xlu0 %1963
      %v1965 = vsel %vm298, %v1777, 0.0
      %1966 = vadd.xlane.f32.xlu0 %v1965
      %v1967 = vpop.xlane.xlu0 %1966
      %v1968 = vsel %vm298, %v1778, 0.0
      %1969 = vadd.xlane.f32.xlu0 %v1968
      %v1970 = vpop.xlane.xlu0 %1969
      %v1971 = vmul.f32 %v1781, 0.0125
      %v1972 = vmul.f32 %v1784, 0.0125
      %v1973 = vmul.f32 %v1787, 0.0125
      %v1974 = vmul.f32 %v1790, 0.0125
      %v1975 = vmul.f32 %v1793, 0.0125
      %v1976 = vmul.f32 %v1796, 0.0125
      %v1977 = vmul.f32 %v1799, 0.0125
      %v1978 = vmul.f32 %v1802, 0.0125
      %v1979 = vmul.f32 %v1805, 0.0125
      %v1980 = vmul.f32 %v1808, 0.0125
      %v1981 = vmul.f32 %v1811, 0.0125
      %v1982 = vmul.f32 %v1814, 0.0125
      %v1983 = vmul.f32 %v1817, 0.0125
      %v1984 = vmul.f32 %v1820, 0.0125
      %v1985 = vmul.f32 %v1823, 0.0125
      %v1986 = vmul.f32 %v1826, 0.0125
      %v1987 = vmul.f32 %v1829, 0.0125
      %v1988 = vmul.f32 %v1832, 0.0125
      %v1989 = vmul.f32 %v1835, 0.0125
      %v1990 = vmul.f32 %v1838, 0.0125
      %v1991 = vmul.f32 %v1841, 0.0125
      %v1992 = vmul.f32 %v1844, 0.0125
      %v1993 = vmul.f32 %v1847, 0.0125
      %v1994 = vmul.f32 %v1850, 0.0125
      %v1995 = vmul.f32 %v1853, 0.0125
      %v1996 = vmul.f32 %v1856, 0.0125
      %v1997 = vmul.f32 %v1859, 0.0125
      %v1998 = vmul.f32 %v1862, 0.0125
      %v1999 = vmul.f32 %v1865, 0.0125
      %v2000 = vmul.f32 %v1868, 0.0125
      %v2001 = vmul.f32 %v1871, 0.0125
      %v2002 = vmul.f32 %v1874, 0.0125
      %v2003 = vmul.f32 %v1877, 0.0125
      %v2004 = vmul.f32 %v1880, 0.0125
      %v2005 = vmul.f32 %v1883, 0.0125
      %v2006 = vmul.f32 %v1886, 0.0125
      %v2007 = vmul.f32 %v1889, 0.0125
      %v2008 = vmul.f32 %v1892, 0.0125
      %v2009 = vmul.f32 %v1895, 0.0125
      %v2010 = vmul.f32 %v1898, 0.0125
      %v2011 = vmul.f32 %v1901, 0.0125
      %v2012 = vmul.f32 %v1904, 0.0125
      %v2013 = vmul.f32 %v1907, 0.0125
      %v2014 = vmul.f32 %v1910, 0.0125
      %v2015 = vmul.f32 %v1913, 0.0125
      %v2016 = vmul.f32 %v1916, 0.0125
      %v2017 = vmul.f32 %v1919, 0.0125
      %v2018 = vmul.f32 %v1922, 0.0125
      %v2019 = vmul.f32 %v1925, 0.0125
      %v2020 = vmul.f32 %v1928, 0.0125
      %v2021 = vmul.f32 %v1931, 0.0125
      %v2022 = vmul.f32 %v1934, 0.0125
      %v2023 = vmul.f32 %v1937, 0.0125
      %v2024 = vmul.f32 %v1940, 0.0125
      %v2025 = vmul.f32 %v1943, 0.0125
      %v2026 = vmul.f32 %v1946, 0.0125
      %v2027 = vmul.f32 %v1949, 0.0125
      %v2028 = vmul.f32 %v1952, 0.0125
      %v2029 = vmul.f32 %v1955, 0.0125
      %v2030 = vmul.f32 %v1958, 0.0125
      %v2031 = vmul.f32 %v1961, 0.0125
      %v2032 = vmul.f32 %v1964, 0.0125
      %v2033 = vmul.f32 %v1967, 0.0125
      %v2034 = vmul.f32 %v1970, 0.0125
      %v2035 = vmul.f32 %v1651, %v1651
      %v2036 = vmul.f32 %v1652, %v1652
      %v2037 = vmul.f32 %v1653, %v1653
      %v2038 = vmul.f32 %v1654, %v1654
      %v2039 = vmul.f32 %v1655, %v1655
      %v2040 = vmul.f32 %v1656, %v1656
      %v2041 = vmul.f32 %v1657, %v1657
      %v2042 = vmul.f32 %v1658, %v1658
      %v2043 = vmul.f32 %v1659, %v1659
      %v2044 = vmul.f32 %v1660, %v1660
      %v2045 = vmul.f32 %v1661, %v1661
      %v2046 = vmul.f32 %v1662, %v1662
      %v2047 = vmul.f32 %v1663, %v1663
      %v2048 = vmul.f32 %v1664, %v1664
      %v2049 = vmul.f32 %v1665, %v1665
      %v2050 = vmul.f32 %v1666, %v1666
      %v2051 = vmul.f32 %v1667, %v1667
      %v2052 = vmul.f32 %v1668, %v1668
      %v2053 = vmul.f32 %v1669, %v1669
      %v2054 = vmul.f32 %v1670, %v1670
      %v2055 = vmul.f32 %v1671, %v1671
      %v2056 = vmul.f32 %v1672, %v1672
      %v2057 = vmul.f32 %v1673, %v1673
      %v2058 = vmul.f32 %v1674, %v1674
      %v2059 = vmul.f32 %v1675, %v1675
      %v2060 = vmul.f32 %v1676, %v1676
      %v2061 = vmul.f32 %v1677, %v1677
      %v2062 = vmul.f32 %v1678, %v1678
      %v2063 = vmul.f32 %v1679, %v1679
      %v2064 = vmul.f32 %v1680, %v1680
      %v2065 = vmul.f32 %v1681, %v1681
      %v2066 = vmul.f32 %v1682, %v1682
      %v2067 = vmul.f32 %v1683, %v1683
      %v2068 = vmul.f32 %v1684, %v1684
      %v2069 = vmul.f32 %v1685, %v1685
      %v2070 = vmul.f32 %v1686, %v1686
      %v2071 = vmul.f32 %v1687, %v1687
      %v2072 = vmul.f32 %v1688, %v1688
      %v2073 = vmul.f32 %v1689, %v1689
      %v2074 = vmul.f32 %v1690, %v1690
      %v2075 = vmul.f32 %v1691, %v1691
      %v2076 = vmul.f32 %v1692, %v1692
      %v2077 = vmul.f32 %v1693, %v1693
      %v2078 = vmul.f32 %v1694, %v1694
      %v2079 = vmul.f32 %v1695, %v1695
      %v2080 = vmul.f32 %v1696, %v1696
      %v2081 = vmul.f32 %v1697, %v1697
      %v2082 = vmul.f32 %v1698, %v1698
      %v2083 = vmul.f32 %v1699, %v1699
      %v2084 = vmul.f32 %v1700, %v1700
      %v2085 = vmul.f32 %v1701, %v1701
      %v2086 = vmul.f32 %v1702, %v1702
      %v2087 = vmul.f32 %v1703, %v1703
      %v2088 = vmul.f32 %v1704, %v1704
      %v2089 = vmul.f32 %v1705, %v1705
      %v2090 = vmul.f32 %v1706, %v1706
      %v2091 = vmul.f32 %v1707, %v1707
      %v2092 = vmul.f32 %v1708, %v1708
      %v2093 = vmul.f32 %v1709, %v1709
      %v2094 = vmul.f32 %v1710, %v1710
      %v2095 = vmul.f32 %v1711, %v1711
      %v2096 = vmul.f32 %v1712, %v1712
      %v2097 = vmul.f32 %v1713, %v1713
      %v2098 = vmul.f32 %v1714, %v1714
      %v2099 = vsub.f32 %v1971, %v2035
      %v2100 = vsub.f32 %v1972, %v2036
      %v2101 = vsub.f32 %v1973, %v2037
      %v2102 = vsub.f32 %v1974, %v2038
      %v2103 = vsub.f32 %v1975, %v2039
      %v2104 = vsub.f32 %v1976, %v2040
      %v2105 = vsub.f32 %v1977, %v2041
      %v2106 = vsub.f32 %v1978, %v2042
      %v2107 = vsub.f32 %v1979, %v2043
      %v2108 = vsub.f32 %v1980, %v2044
      %v2109 = vsub.f32 %v1981, %v2045
      %v2110 = vsub.f32 %v1982, %v2046
      %v2111 = vsub.f32 %v1983, %v2047
      %v2112 = vsub.f32 %v1984, %v2048
      %v2113 = vsub.f32 %v1985, %v2049
      %v2114 = vsub.f32 %v1986, %v2050
      %v2115 = vsub.f32 %v1987, %v2051
      %v2116 = vsub.f32 %v1988, %v2052
      %v2117 = vsub.f32 %v1989, %v2053
      %v2118 = vsub.f32 %v1990, %v2054
      %v2119 = vsub.f32 %v1991, %v2055
      %v2120 = vsub.f32 %v1992, %v2056
      %v2121 = vsub.f32 %v1993, %v2057
      %v2122 = vsub.f32 %v1994, %v2058
      %v2123 = vsub.f32 %v1995, %v2059
      %v2124 = vsub.f32 %v1996, %v2060
      %v2125 = vsub.f32 %v1997, %v2061
      %v2126 = vsub.f32 %v1998, %v2062
      %v2127 = vsub.f32 %v1999, %v2063
      %v2128 = vsub.f32 %v2000, %v2064
      %v2129 = vsub.f32 %v2001, %v2065
      %v2130 = vsub.f32 %v2002, %v2066
      %v2131 = vsub.f32 %v2003, %v2067
      %v2132 = vsub.f32 %v2004, %v2068
      %v2133 = vsub.f32 %v2005, %v2069
      %v2134 = vsub.f32 %v2006, %v2070
      %v2135 = vsub.f32 %v2007, %v2071
      %v2136 = vsub.f32 %v2008, %v2072
      %v2137 = vsub.f32 %v2009, %v2073
      %v2138 = vsub.f32 %v2010, %v2074
      %v2139 = vsub.f32 %v2011, %v2075
      %v2140 = vsub.f32 %v2012, %v2076
      %v2141 = vsub.f32 %v2013, %v2077
      %v2142 = vsub.f32 %v2014, %v2078
      %v2143 = vsub.f32 %v2015, %v2079
      %v2144 = vsub.f32 %v2016, %v2080
      %v2145 = vsub.f32 %v2017, %v2081
      %v2146 = vsub.f32 %v2018, %v2082
      %v2147 = vsub.f32 %v2019, %v2083
      %v2148 = vsub.f32 %v2020, %v2084
      %v2149 = vsub.f32 %v2021, %v2085
      %v2150 = vsub.f32 %v2022, %v2086
      %v2151 = vsub.f32 %v2023, %v2087
      %v2152 = vsub.f32 %v2024, %v2088
      %v2153 = vsub.f32 %v2025, %v2089
      %v2154 = vsub.f32 %v2026, %v2090
      %v2155 = vsub.f32 %v2027, %v2091
      %v2156 = vsub.f32 %v2028, %v2092
      %v2157 = vsub.f32 %v2029, %v2093
      %v2158 = vsub.f32 %v2030, %v2094
      %v2159 = vsub.f32 %v2031, %v2095
      %v2160 = vsub.f32 %v2032, %v2096
      %v2161 = vsub.f32 %v2033, %v2097
      %v2162 = vsub.f32 %v2034, %v2098
      %v2163 = vsub.f32 %v1395, %v1651
      %v2164 = vsub.f32 %v1396, %v1652
      %v2165 = vsub.f32 %v1397, %v1653
      %v2166 = vsub.f32 %v1398, %v1654
      %v2167 = vsub.f32 %v1399, %v1655
      %v2168 = vsub.f32 %v1400, %v1656
      %v2169 = vsub.f32 %v1401, %v1657
      %v2170 = vsub.f32 %v1402, %v1658
      %v2171 = vsub.f32 %v1403, %v1659
      %v2172 = vsub.f32 %v1404, %v1660
      %v2173 = vsub.f32 %v1405, %v1661
      %v2174 = vsub.f32 %v1406, %v1662
      %v2175 = vsub.f32 %v1407, %v1663
      %v2176 = vsub.f32 %v1408, %v1664
      %v2177 = vsub.f32 %v1409, %v1665
      %v2178 = vsub.f32 %v1410, %v1666
      %v2179 = vsub.f32 %v1411, %v1667
      %v2180 = vsub.f32 %v1412, %v1668
      %v2181 = vsub.f32 %v1413, %v1669
      %v2182 = vsub.f32 %v1414, %v1670
      %v2183 = vsub.f32 %v1415, %v1671
      %v2184 = vsub.f32 %v1416, %v1672
      %v2185 = vsub.f32 %v1417, %v1673
      %v2186 = vsub.f32 %v1418, %v1674
      %v2187 = vsub.f32 %v1419, %v1675
      %v2188 = vsub.f32 %v1420, %v1676
      %v2189 = vsub.f32 %v1421, %v1677
      %v2190 = vsub.f32 %v1422, %v1678
      %v2191 = vsub.f32 %v1423, %v1679
      %v2192 = vsub.f32 %v1424, %v1680
      %v2193 = vsub.f32 %v1425, %v1681
      %v2194 = vsub.f32 %v1426, %v1682
      %v2195 = vsub.f32 %v1427, %v1683
      %v2196 = vsub.f32 %v1428, %v1684
      %v2197 = vsub.f32 %v1429, %v1685
      %v2198 = vsub.f32 %v1430, %v1686
      %v2199 = vsub.f32 %v1431, %v1687
      %v2200 = vsub.f32 %v1432, %v1688
      %v2201 = vsub.f32 %v1433, %v1689
      %v2202 = vsub.f32 %v1434, %v1690
      %v2203 = vsub.f32 %v1435, %v1691
      %v2204 = vsub.f32 %v1436, %v1692
      %v2205 = vsub.f32 %v1437, %v1693
      %v2206 = vsub.f32 %v1438, %v1694
      %v2207 = vsub.f32 %v1439, %v1695
      %v2208 = vsub.f32 %v1440, %v1696
      %v2209 = vsub.f32 %v1441, %v1697
      %v2210 = vsub.f32 %v1442, %v1698
      %v2211 = vsub.f32 %v1443, %v1699
      %v2212 = vsub.f32 %v1444, %v1700
      %v2213 = vsub.f32 %v1445, %v1701
      %v2214 = vsub.f32 %v1446, %v1702
      %v2215 = vsub.f32 %v1447, %v1703
      %v2216 = vsub.f32 %v1448, %v1704
      %v2217 = vsub.f32 %v1449, %v1705
      %v2218 = vsub.f32 %v1450, %v1706
      %v2219 = vsub.f32 %v1451, %v1707
      %v2220 = vsub.f32 %v1452, %v1708
      %v2221 = vsub.f32 %v1453, %v1709
      %v2222 = vsub.f32 %v1454, %v1710
      %v2223 = vsub.f32 %v1455, %v1711
      %v2224 = vsub.f32 %v1456, %v1712
      %v2225 = vsub.f32 %v1457, %v1713
      %v2226 = vsub.f32 %v1458, %v1714
      %v2227 = vadd.f32 %v2099, 1e-06
      %v2228 = vadd.f32 %v2100, 1e-06
      %v2229 = vadd.f32 %v2101, 1e-06
      %v2230 = vadd.f32 %v2102, 1e-06
      %v2231 = vadd.f32 %v2103, 1e-06
      %v2232 = vadd.f32 %v2104, 1e-06
      %v2233 = vadd.f32 %v2105, 1e-06
      %v2234 = vadd.f32 %v2106, 1e-06
      %v2235 = vadd.f32 %v2107, 1e-06
      %v2236 = vadd.f32 %v2108, 1e-06
      %v2237 = vadd.f32 %v2109, 1e-06
      %v2238 = vadd.f32 %v2110, 1e-06
      %v2239 = vadd.f32 %v2111, 1e-06
      %v2240 = vadd.f32 %v2112, 1e-06
      %v2241 = vadd.f32 %v2113, 1e-06
      %v2242 = vadd.f32 %v2114, 1e-06
      %v2243 = vadd.f32 %v2115, 1e-06
      %v2244 = vadd.f32 %v2116, 1e-06
      %v2245 = vadd.f32 %v2117, 1e-06
      %v2246 = vadd.f32 %v2118, 1e-06
      %v2247 = vadd.f32 %v2119, 1e-06
      %v2248 = vadd.f32 %v2120, 1e-06
      %v2249 = vadd.f32 %v2121, 1e-06
      %v2250 = vadd.f32 %v2122, 1e-06
      %v2251 = vadd.f32 %v2123, 1e-06
      %v2252 = vadd.f32 %v2124, 1e-06
      %v2253 = vadd.f32 %v2125, 1e-06
      %v2254 = vadd.f32 %v2126, 1e-06
      %v2255 = vadd.f32 %v2127, 1e-06
      %v2256 = vadd.f32 %v2128, 1e-06
      %v2257 = vadd.f32 %v2129, 1e-06
      %v2258 = vadd.f32 %v2130, 1e-06
      %v2259 = vadd.f32 %v2131, 1e-06
      %v2260 = vadd.f32 %v2132, 1e-06
      %v2261 = vadd.f32 %v2133, 1e-06
      %v2262 = vadd.f32 %v2134, 1e-06
      %v2263 = vadd.f32 %v2135, 1e-06
      %v2264 = vadd.f32 %v2136, 1e-06
      %v2265 = vadd.f32 %v2137, 1e-06
      %v2266 = vadd.f32 %v2138, 1e-06
      %v2267 = vadd.f32 %v2139, 1e-06
      %v2268 = vadd.f32 %v2140, 1e-06
      %v2269 = vadd.f32 %v2141, 1e-06
      %v2270 = vadd.f32 %v2142, 1e-06
      %v2271 = vadd.f32 %v2143, 1e-06
      %v2272 = vadd.f32 %v2144, 1e-06
      %v2273 = vadd.f32 %v2145, 1e-06
      %v2274 = vadd.f32 %v2146, 1e-06
      %v2275 = vadd.f32 %v2147, 1e-06
      %v2276 = vadd.f32 %v2148, 1e-06
      %v2277 = vadd.f32 %v2149, 1e-06
      %v2278 = vadd.f32 %v2150, 1e-06
      %v2279 = vadd.f32 %v2151, 1e-06
      %v2280 = vadd.f32 %v2152, 1e-06
      %v2281 = vadd.f32 %v2153, 1e-06
      %v2282 = vadd.f32 %v2154, 1e-06
      %v2283 = vadd.f32 %v2155, 1e-06
      %v2284 = vadd.f32 %v2156, 1e-06
      %v2285 = vadd.f32 %v2157, 1e-06
      %v2286 = vadd.f32 %v2158, 1e-06
      %v2287 = vadd.f32 %v2159, 1e-06
      %v2288 = vadd.f32 %v2160, 1e-06
      %v2289 = vadd.f32 %v2161, 1e-06
      %v2290 = vadd.f32 %v2162, 1e-06
      %v2291 = vrsqrt.pop %v2227
      %v2292 = vrsqrt.pop %v2228
      %v2293 = vrsqrt.pop %v2229
      %v2294 = vrsqrt.pop %v2230
      %v2295 = vrsqrt.pop %v2231
      %v2296 = vrsqrt.pop %v2232
      %v2297 = vrsqrt.pop %v2233
      %v2298 = vrsqrt.pop %v2234
      %v2299 = vrsqrt.pop %v2235
      %v2300 = vrsqrt.pop %v2236
      %v2301 = vrsqrt.pop %v2237
      %v2302 = vrsqrt.pop %v2238
      %v2303 = vrsqrt.pop %v2239
      %v2304 = vrsqrt.pop %v2240
      %v2305 = vrsqrt.pop %v2241
      %v2306 = vrsqrt.pop %v2242
      %v2307 = vrsqrt.pop %v2243
      %v2308 = vrsqrt.pop %v2244
      %v2309 = vrsqrt.pop %v2245
      %v2310 = vrsqrt.pop %v2246
      %v2311 = vrsqrt.pop %v2247
      %v2312 = vrsqrt.pop %v2248
      %v2313 = vrsqrt.pop %v2249
      %v2314 = vrsqrt.pop %v2250
      %v2315 = vrsqrt.pop %v2251
      %v2316 = vrsqrt.pop %v2252
      %v2317 = vrsqrt.pop %v2253
      %v2318 = vrsqrt.pop %v2254
      %v2319 = vrsqrt.pop %v2255
      %v2320 = vrsqrt.pop %v2256
      %v2321 = vrsqrt.pop %v2257
      %v2322 = vrsqrt.pop %v2258
      %v2323 = vrsqrt.pop %v2259
      %v2324 = vrsqrt.pop %v2260
      %v2325 = vrsqrt.pop %v2261
      %v2326 = vrsqrt.pop %v2262
      %v2327 = vrsqrt.pop %v2263
      %v2328 = vrsqrt.pop %v2264
      %v2329 = vrsqrt.pop %v2265
      %v2330 = vrsqrt.pop %v2266
      %v2331 = vrsqrt.pop %v2267
      %v2332 = vrsqrt.pop %v2268
      %v2333 = vrsqrt.pop %v2269
      %v2334 = vrsqrt.pop %v2270
      %v2335 = vrsqrt.pop %v2271
      %v2336 = vrsqrt.pop %v2272
      %v2337 = vrsqrt.pop %v2273
      %v2338 = vrsqrt.pop %v2274
      %v2339 = vrsqrt.pop %v2275
      %v2340 = vrsqrt.pop %v2276
      %v2341 = vrsqrt.pop %v2277
      %v2342 = vrsqrt.pop %v2278
      %v2343 = vrsqrt.pop %v2279
      %v2344 = vrsqrt.pop %v2280
      %v2345 = vrsqrt.pop %v2281
      %v2346 = vrsqrt.pop %v2282
      %v2347 = vrsqrt.pop %v2283
      %v2348 = vrsqrt.pop %v2284
      %v2349 = vrsqrt.pop %v2285
      %v2350 = vrsqrt.pop %v2286
      %v2351 = vrsqrt.pop %v2287
      %v2352 = vrsqrt.pop %v2288
      %v2353 = vrsqrt.pop %v2289
      %v2354 = vrsqrt.pop %v2290
      %v2355 = vmul.f32 %v2163, %v2291
      %v2356 = vmul.f32 %v2164, %v2292
      %v2357 = vmul.f32 %v2165, %v2293
      %v2358 = vmul.f32 %v2166, %v2294
      %v2359 = vmul.f32 %v2167, %v2295
      %v2360 = vmul.f32 %v2168, %v2296
      %v2361 = vmul.f32 %v2169, %v2297
      %v2362 = vmul.f32 %v2170, %v2298
      %v2363 = vmul.f32 %v2171, %v2299
      %v2364 = vmul.f32 %v2172, %v2300
      %v2365 = vmul.f32 %v2173, %v2301
      %v2366 = vmul.f32 %v2174, %v2302
      %v2367 = vmul.f32 %v2175, %v2303
      %v2368 = vmul.f32 %v2176, %v2304
      %v2369 = vmul.f32 %v2177, %v2305
      %v2370 = vmul.f32 %v2178, %v2306
      %v2371 = vmul.f32 %v2179, %v2307
      %v2372 = vmul.f32 %v2180, %v2308
      %v2373 = vmul.f32 %v2181, %v2309
      %v2374 = vmul.f32 %v2182, %v2310
      %v2375 = vmul.f32 %v2183, %v2311
      %v2376 = vmul.f32 %v2184, %v2312
      %v2377 = vmul.f32 %v2185, %v2313
      %v2378 = vmul.f32 %v2186, %v2314
      %v2379 = vmul.f32 %v2187, %v2315
      %v2380 = vmul.f32 %v2188, %v2316
      %v2381 = vmul.f32 %v2189, %v2317
      %v2382 = vmul.f32 %v2190, %v2318
      %v2383 = vmul.f32 %v2191, %v2319
      %v2384 = vmul.f32 %v2192, %v2320
      %v2385 = vmul.f32 %v2193, %v2321
      %v2386 = vmul.f32 %v2194, %v2322
      %v2387 = vmul.f32 %v2195, %v2323
      %v2388 = vmul.f32 %v2196, %v2324
      %v2389 = vmul.f32 %v2197, %v2325
      %v2390 = vmul.f32 %v2198, %v2326
      %v2391 = vmul.f32 %v2199, %v2327
      %v2392 = vmul.f32 %v2200, %v2328
      %v2393 = vmul.f32 %v2201, %v2329
      %v2394 = vmul.f32 %v2202, %v2330
      %v2395 = vmul.f32 %v2203, %v2331
      %v2396 = vmul.f32 %v2204, %v2332
      %v2397 = vmul.f32 %v2205, %v2333
      %v2398 = vmul.f32 %v2206, %v2334
      %v2399 = vmul.f32 %v2207, %v2335
      %v2400 = vmul.f32 %v2208, %v2336
      %v2401 = vmul.f32 %v2209, %v2337
      %v2402 = vmul.f32 %v2210, %v2338
      %v2403 = vmul.f32 %v2211, %v2339
      %v2404 = vmul.f32 %v2212, %v2340
      %v2405 = vmul.f32 %v2213, %v2341
      %v2406 = vmul.f32 %v2214, %v2342
      %v2407 = vmul.f32 %v2215, %v2343
      %v2408 = vmul.f32 %v2216, %v2344
      %v2409 = vmul.f32 %v2217, %v2345
      %v2410 = vmul.f32 %v2218, %v2346
      %v2411 = vmul.f32 %v2219, %v2347
      %v2412 = vmul.f32 %v2220, %v2348
      %v2413 = vmul.f32 %v2221, %v2349
      %v2414 = vmul.f32 %v2222, %v2350
      %v2415 = vmul.f32 %v2223, %v2351
      %v2416 = vmul.f32 %v2224, %v2352
      %v2417 = vmul.f32 %v2225, %v2353
      %v2418 = vmul.f32 %v2226, %v2354
      %v2419 = vlaneseq
      %v2420 = vshrl.u32 %v2419, 7
      %v2421 = vsub.s32 2, %v2420
      %v2422 = vrot.slane %v297, %v2421
      %v2423 = vmul.f32 %v2355, %v2422
      %v2424 = vmul.f32 %v2356, %v2422
      %v2425 = vmul.f32 %v2357, %v2422
      %v2426 = vmul.f32 %v2358, %v2422
      %v2427 = vmul.f32 %v2359, %v2422
      %v2428 = vmul.f32 %v2360, %v2422
      %v2429 = vmul.f32 %v2361, %v2422
      %v2430 = vmul.f32 %v2362, %v2422
      %v2431 = vmul.f32 %v2363, %v2422
      %v2432 = vmul.f32 %v2364, %v2422
      %v2433 = vmul.f32 %v2365, %v2422
      %v2434 = vmul.f32 %v2366, %v2422
      %v2435 = vmul.f32 %v2367, %v2422
      %v2436 = vmul.f32 %v2368, %v2422
      %v2437 = vmul.f32 %v2369, %v2422
      %v2438 = vmul.f32 %v2370, %v2422
      %v2439 = vmul.f32 %v2371, %v2422
      %v2440 = vmul.f32 %v2372, %v2422
      %v2441 = vmul.f32 %v2373, %v2422
      %v2442 = vmul.f32 %v2374, %v2422
      %v2443 = vmul.f32 %v2375, %v2422
      %v2444 = vmul.f32 %v2376, %v2422
      %v2445 = vmul.f32 %v2377, %v2422
      %v2446 = vmul.f32 %v2378, %v2422
      %v2447 = vmul.f32 %v2379, %v2422
      %v2448 = vmul.f32 %v2380, %v2422
      %v2449 = vmul.f32 %v2381, %v2422
      %v2450 = vmul.f32 %v2382, %v2422
      %v2451 = vmul.f32 %v2383, %v2422
      %v2452 = vmul.f32 %v2384, %v2422
      %v2453 = vmul.f32 %v2385, %v2422
      %v2454 = vmul.f32 %v2386, %v2422
      %v2455 = vmul.f32 %v2387, %v2422
      %v2456 = vmul.f32 %v2388, %v2422
      %v2457 = vmul.f32 %v2389, %v2422
      %v2458 = vmul.f32 %v2390, %v2422
      %v2459 = vmul.f32 %v2391, %v2422
      %v2460 = vmul.f32 %v2392, %v2422
      %v2461 = vmul.f32 %v2393, %v2422
      %v2462 = vmul.f32 %v2394, %v2422
      %v2463 = vmul.f32 %v2395, %v2422
      %v2464 = vmul.f32 %v2396, %v2422
      %v2465 = vmul.f32 %v2397, %v2422
      %v2466 = vmul.f32 %v2398, %v2422
      %v2467 = vmul.f32 %v2399, %v2422
      %v2468 = vmul.f32 %v2400, %v2422
      %v2469 = vmul.f32 %v2401, %v2422
      %v2470 = vmul.f32 %v2402, %v2422
      %v2471 = vmul.f32 %v2403, %v2422
      %v2472 = vmul.f32 %v2404, %v2422
      %v2473 = vmul.f32 %v2405, %v2422
      %v2474 = vmul.f32 %v2406, %v2422
      %v2475 = vmul.f32 %v2407, %v2422
      %v2476 = vmul.f32 %v2408, %v2422
      %v2477 = vmul.f32 %v2409, %v2422
      %v2478 = vmul.f32 %v2410, %v2422
      %v2479 = vmul.f32 %v2411, %v2422
      %v2480 = vmul.f32 %v2412, %v2422
      %v2481 = vmul.f32 %v2413, %v2422
      %v2482 = vmul.f32 %v2414, %v2422
      %v2483 = vmul.f32 %v2415, %v2422
      %v2484 = vmul.f32 %v2416, %v2422
      %v2485 = vmul.f32 %v2417, %v2422
      %v2486 = vmul.f32 %v2418, %v2422
      %v2487 = vlaneseq
      %v2488 = vshrl.u32 %v2487, 7
      %v2489 = vsub.s32 3, %v2488
      %v2490 = vrot.slane %v297, %v2489
      %v2491 = vadd.f32 %v2423, %v2490
      %v2492 = vadd.f32 %v2424, %v2490
      %v2493 = vadd.f32 %v2425, %v2490
      %v2494 = vadd.f32 %v2426, %v2490
      %v2495 = vadd.f32 %v2427, %v2490
      %v2496 = vadd.f32 %v2428, %v2490
      %v2497 = vadd.f32 %v2429, %v2490
      %v2498 = vadd.f32 %v2430, %v2490
      %v2499 = vadd.f32 %v2431, %v2490
      %v2500 = vadd.f32 %v2432, %v2490
      %v2501 = vadd.f32 %v2433, %v2490
      %v2502 = vadd.f32 %v2434, %v2490
      %v2503 = vadd.f32 %v2435, %v2490
      %v2504 = vadd.f32 %v2436, %v2490
      %v2505 = vadd.f32 %v2437, %v2490
      %v2506 = vadd.f32 %v2438, %v2490
      %v2507 = vadd.f32 %v2439, %v2490
      %v2508 = vadd.f32 %v2440, %v2490
      %v2509 = vadd.f32 %v2441, %v2490
      %v2510 = vadd.f32 %v2442, %v2490
      %v2511 = vadd.f32 %v2443, %v2490
      %v2512 = vadd.f32 %v2444, %v2490
      %v2513 = vadd.f32 %v2445, %v2490
      %v2514 = vadd.f32 %v2446, %v2490
      %v2515 = vadd.f32 %v2447, %v2490
      %v2516 = vadd.f32 %v2448, %v2490
      %v2517 = vadd.f32 %v2449, %v2490
      %v2518 = vadd.f32 %v2450, %v2490
      %v2519 = vadd.f32 %v2451, %v2490
      %v2520 = vadd.f32 %v2452, %v2490
      %v2521 = vadd.f32 %v2453, %v2490
      %v2522 = vadd.f32 %v2454, %v2490
      %v2523 = vadd.f32 %v2455, %v2490
      %v2524 = vadd.f32 %v2456, %v2490
      %v2525 = vadd.f32 %v2457, %v2490
      %v2526 = vadd.f32 %v2458, %v2490
      %v2527 = vadd.f32 %v2459, %v2490
      %v2528 = vadd.f32 %v2460, %v2490
      %v2529 = vadd.f32 %v2461, %v2490
      %v2530 = vadd.f32 %v2462, %v2490
      %v2531 = vadd.f32 %v2463, %v2490
      %v2532 = vadd.f32 %v2464, %v2490
      %v2533 = vadd.f32 %v2465, %v2490
      %v2534 = vadd.f32 %v2466, %v2490
      %v2535 = vadd.f32 %v2467, %v2490
      %v2536 = vadd.f32 %v2468, %v2490
      %v2537 = vadd.f32 %v2469, %v2490
      %v2538 = vadd.f32 %v2470, %v2490
      %v2539 = vadd.f32 %v2471, %v2490
      %v2540 = vadd.f32 %v2472, %v2490
      %v2541 = vadd.f32 %v2473, %v2490
      %v2542 = vadd.f32 %v2474, %v2490
      %v2543 = vadd.f32 %v2475, %v2490
      %v2544 = vadd.f32 %v2476, %v2490
      %v2545 = vadd.f32 %v2477, %v2490
      %v2546 = vadd.f32 %v2478, %v2490
      %v2547 = vadd.f32 %v2479, %v2490
      %v2548 = vadd.f32 %v2480, %v2490
      %v2549 = vadd.f32 %v2481, %v2490
      %v2550 = vadd.f32 %v2482, %v2490
      %v2551 = vadd.f32 %v2483, %v2490
      %v2552 = vadd.f32 %v2484, %v2490
      %v2553 = vadd.f32 %v2485, %v2490
      %v2554 = vadd.f32 %v2486, %v2490
      %v2555 = vpack.c.bf16 %v2492, %v2491
      %v2556 = vpack.c.bf16 %v2494, %v2493
      %v2557 = vpack.c.bf16 %v2496, %v2495
      %v2558 = vpack.c.bf16 %v2498, %v2497
      %v2559 = vpack.c.bf16 %v2500, %v2499
      %v2560 = vpack.c.bf16 %v2502, %v2501
      %v2561 = vpack.c.bf16 %v2504, %v2503
      %v2562 = vpack.c.bf16 %v2506, %v2505
      %v2563 = vpack.c.bf16 %v2508, %v2507
      %v2564 = vpack.c.bf16 %v2510, %v2509
      %v2565 = vpack.c.bf16 %v2512, %v2511
      %v2566 = vpack.c.bf16 %v2514, %v2513
      %v2567 = vpack.c.bf16 %v2516, %v2515
      %v2568 = vpack.c.bf16 %v2518, %v2517
      %v2569 = vpack.c.bf16 %v2520, %v2519
      %v2570 = vpack.c.bf16 %v2522, %v2521
      %v2571 = vpack.c.bf16 %v2524, %v2523
      %v2572 = vpack.c.bf16 %v2526, %v2525
      %v2573 = vpack.c.bf16 %v2528, %v2527
      %v2574 = vpack.c.bf16 %v2530, %v2529
      %v2575 = vpack.c.bf16 %v2532, %v2531
      %v2576 = vpack.c.bf16 %v2534, %v2533
      %v2577 = vpack.c.bf16 %v2536, %v2535
      %v2578 = vpack.c.bf16 %v2538, %v2537
      %v2579 = vpack.c.bf16 %v2540, %v2539
      %v2580 = vpack.c.bf16 %v2542, %v2541
      %v2581 = vpack.c.bf16 %v2544, %v2543
      %v2582 = vpack.c.bf16 %v2546, %v2545
      %v2583 = vpack.c.bf16 %v2548, %v2547
      %v2584 = vpack.c.bf16 %v2550, %v2549
      %v2585 = vpack.c.bf16 %v2552, %v2551
      %v2586 = vpack.c.bf16 %v2554, %v2553
      %v2587 = vld [vmem:[%s3] sm:$0xff]
      %v2588 = vld [vmem:[%s3 + $0x8] sm:$0xf]
      %v2589 = vld [vmem:[%s3 + $0xc] sm:$0xff]
      %v2590 = vld [vmem:[%s3 + $0x14] sm:$0xf]
      %v2591 = vld [vmem:[%s3 + $0x18] sm:$0xff]
      %v2592 = vld [vmem:[%s3 + $0x20] sm:$0xf]
      %v2593 = vld [vmem:[%s3 + $0x24] sm:$0xff]
      %v2594 = vld [vmem:[%s3 + $0x2c] sm:$0xf]
      %v2595 = vld [vmem:[%s3 + $0x30] sm:$0xff]
      %v2596 = vld [vmem:[%s3 + $0x38] sm:$0xf]
      %v2597 = vld [vmem:[%s3 + $0x3c] sm:$0xff]
      %v2598 = vld [vmem:[%s3 + $0x44] sm:$0xf]
      %v2599 = vld [vmem:[%s3 + $0x48] sm:$0xff]
      %v2600 = vld [vmem:[%s3 + $0x50] sm:$0xf]
      %v2601 = vld [vmem:[%s3 + $0x54] sm:$0xff]
      %v2602 = vld [vmem:[%s3 + $0x5c] sm:$0xf]
      %v2603 = vld [vmem:[%s3 + $0x60] sm:$0xff]
      %v2604 = vld [vmem:[%s3 + $0x68] sm:$0xf]
      %v2605 = vld [vmem:[%s3 + $0x6c] sm:$0xff]
      %v2606 = vld [vmem:[%s3 + $0x74] sm:$0xf]
      %v2607 = vld [vmem:[%s2] sm:$0x7]
      %v2609 = vlaneseq
      %v2610 = vshrl.u32 %v2609, 7
      %v2611 = vsub.s32 0, %v2610
      %v2612 = vrot.slane %v2607, %v2611
      %v2613 = vlaneseq
      %v2614 = vshrl.u32 %v2613, 7
      %v2615 = vsub.s32 1, %v2614
      %v2616 = vrot.slane %v2607, %v2615
      %v2617 = vlaneseq
      %v2618 = vshrl.u32 %v2617, 7
      %v2619 = vsub.s32 2, %v2618
      %v2620 = vrot.slane %v2607, %v2619
      %v2644 = vunpack.c.l.b16 %v2587
      %v2645 = vunpack.c.h.b16 %v2587
      %v2646 = vunpack.c.l.b16 %v2588
      %v2647 = vunpack.c.l.b16 %v2589
      %v2648 = vunpack.c.h.b16 %v2589
      %v2649 = vunpack.c.l.b16 %v2590
      %v2650 = vunpack.c.l.b16 %v2591
      %v2651 = vunpack.c.h.b16 %v2591
      %v2652 = vunpack.c.l.b16 %v2592
      %v2653 = vunpack.c.l.b16 %v2593
      %v2654 = vunpack.c.h.b16 %v2593
      %v2655 = vunpack.c.l.b16 %v2594
      %v2656 = vunpack.c.l.b16 %v2595
      %v2657 = vunpack.c.h.b16 %v2595
      %v2658 = vunpack.c.l.b16 %v2596
      %v2659 = vunpack.c.l.b16 %v2597
      %v2660 = vunpack.c.h.b16 %v2597
      %v2661 = vunpack.c.l.b16 %v2598
      %v2662 = vunpack.c.l.b16 %v2599
      %v2663 = vunpack.c.h.b16 %v2599
      %v2664 = vunpack.c.l.b16 %v2600
      %v2665 = vunpack.c.l.b16 %v2601
      %v2666 = vunpack.c.h.b16 %v2601
      %v2667 = vunpack.c.l.b16 %v2602
      %v2668 = vunpack.c.l.b16 %v2603
      %v2669 = vunpack.c.h.b16 %v2603
      %v2670 = vunpack.c.l.b16 %v2604
      %v2671 = vunpack.c.l.b16 %v2605
      %v2672 = vunpack.c.h.b16 %v2605
      %v2673 = vunpack.c.l.b16 %v2606
      %v2674 = vpack.c.b16 %v2647, %v2644
      %v2675 = vpack.c.b16 %v2648, %v2645
      %v2676 = vpack.c.b16 %v2649, %v2646
      %v2677 = vpack.c.b16 %v2653, %v2650
      %v2678 = vpack.c.b16 %v2654, %v2651
      %v2679 = vpack.c.b16 %v2655, %v2652
      %v2680 = vpack.c.b16 %v2659, %v2656
      %v2681 = vpack.c.b16 %v2660, %v2657
      %v2682 = vpack.c.b16 %v2661, %v2658
      %v2683 = vpack.c.b16 %v2665, %v2662
      %v2684 = vpack.c.b16 %v2666, %v2663
      %v2685 = vpack.c.b16 %v2667, %v2664
      %v2686 = vpack.c.b16 %v2671, %v2668
      %v2687 = vpack.c.b16 %v2672, %v2669
      %v2688 = vpack.c.b16 %v2673, %v2670
      %v2705 = vsel %vm298, %v2555, 0
      %v2708 = vsel %vm298, %v2556, 0
      %v2711 = vsel %vm298, %v2557, 0
      %v2714 = vsel %vm298, %v2558, 0
      %v2717 = vsel %vm298, %v2559, 0
      %v2720 = vsel %vm298, %v2560, 0
      %v2723 = vsel %vm298, %v2561, 0
      %v2726 = vsel %vm298, %v2562, 0
      %v2729 = vsel %vm298, %v2563, 0
      %v2732 = vsel %vm298, %v2564, 0
      %v2735 = vsel %vm298, %v2565, 0
      %v2738 = vsel %vm298, %v2566, 0
      %v2741 = vsel %vm298, %v2567, 0
      %v2744 = vsel %vm298, %v2568, 0
      %v2747 = vsel %vm298, %v2569, 0
      %v2750 = vsel %vm298, %v2570, 0
      %v2753 = vsel %vm298, %v2571, 0
      %v2756 = vsel %vm298, %v2572, 0
      %v2759 = vsel %vm298, %v2573, 0
      %v2762 = vsel %vm298, %v2574, 0
      %v2765 = vsel %vm298, %v2575, 0
      %v2768 = vsel %vm298, %v2576, 0
      %v2771 = vsel %vm298, %v2577, 0
      %v2774 = vsel %vm298, %v2578, 0
      %v2777 = vsel %vm298, %v2579, 0
      %v2780 = vsel %vm298, %v2580, 0
      %v2783 = vsel %vm298, %v2581, 0
      %v2786 = vsel %vm298, %v2582, 0
      %v2789 = vsel %vm298, %v2583, 0
      %v2792 = vsel %vm298, %v2584, 0
      %v2795 = vsel %vm298, %v2585, 0
      %v2798 = vsel %vm298, %v2586, 0
      %2800 = vmatprep.subr.bf16.mxu0 0
      %2801 = vmatpush1.bf16.msra.mxu0 0
      %2802 = vmatprep.subr.bf16.mxu0 0
      %2803 = vmatpush1.bf16.msra.mxu0 0
      %2804 = vmatprep.subr.bf16.mxu0 0
      %2805 = vmatpush1.bf16.msra.mxu0 0
      %2806 = vmatprep.subr.bf16.mxu0 %v2687
      %2807 = vmatpush1.bf16.msra.mxu0 %v2686
      %2808 = vmatprep.subr.bf16.mxu0 %v2684
      %2809 = vmatpush1.bf16.msra.mxu0 %v2683
      %2810 = vmatprep.subr.bf16.mxu0 %v2681
      %2811 = vmatpush1.bf16.msra.mxu0 %v2680
      %2812 = vmatprep.subr.bf16.mxu0 %v2678
      %2813 = vmatpush1.bf16.msra.mxu0 %v2677
      %2814 = vmatprep.subr.bf16.mxu0 %v2675
      %2815 = vmatpush1.bf16.msra.mxu0 %v2674
      %2816 = vmatprep.subr.bf16.mxu0 0
      %2817 = vmatpush2.bf16.msra.mxu0 0
      %2818 = vmatprep.subr.bf16.mxu0 0
      %2819 = vmatpush2.bf16.msra.mxu0 0
      %2820 = vmatprep.subr.bf16.mxu0 0
      %2821 = vmatpush2.bf16.msra.mxu0 0
      %2822 = vmatprep.subr.bf16.mxu0 0
      %2823 = vmatpush2.bf16.msra.mxu0 0
      %2824 = vmatprep.subr.bf16.mxu0 0
      %2825 = vmatpush2.bf16.msra.mxu0 0
      %2826 = vmatprep.subr.bf16.mxu0 0
      %2827 = vmatpush2.bf16.msra.mxu0 0
      %2828 = vmatprep.subr.bf16.mxu0 0
      %2829 = vmatpush2.bf16.msra.mxu0 0
      %2830 = vmatprep.subr.bf16.mxu0 0
      %2831 = vmatpush2.bf16.msra.mxu0 0
      %2832 = vmatprep.mubr.bf16.mxu0 0
      %2833 = vmatmul.mubr.bf16.gmra.mxu0 %v2705
      %v2834 = vpop.f32.mrf.mxu0
      %v2835 = vadd.f32 %v2612, %v2834
      %v2836 = vpop.f32.mrf.mxu0
      %v2837 = vadd.f32 %v2616, %v2836
      %v2838 = vpop.f32.mrf.mxu0
      %v2839 = vadd.f32 %v2612, %v2838
      %v2840 = vpop.f32.mrf.mxu0
      %v2841 = vadd.f32 %v2616, %v2840
      %2842 = vmatprep.mubr.bf16.mxu0 0
      %2843 = vmatmul.mubr.bf16.gmra.mxu0 %v2708
      %v2844 = vpop.f32.mrf.mxu0
      %v2845 = vadd.f32 %v2612, %v2844
      %v2846 = vpop.f32.mrf.mxu0
      %v2847 = vadd.f32 %v2616, %v2846
      %v2848 = vpop.f32.mrf.mxu0
      %v2849 = vadd.f32 %v2612, %v2848
      %v2850 = vpop.f32.mrf.mxu0
      %v2851 = vadd.f32 %v2616, %v2850
      %2852 = vmatprep.mubr.bf16.mxu0 0
      %2853 = vmatmul.mubr.bf16.gmra.mxu0 %v2711
      %v2854 = vpop.f32.mrf.mxu0
      %v2855 = vadd.f32 %v2612, %v2854
      %v2856 = vpop.f32.mrf.mxu0
      %v2857 = vadd.f32 %v2616, %v2856
      %v2858 = vpop.f32.mrf.mxu0
      %v2859 = vadd.f32 %v2612, %v2858
      %v2860 = vpop.f32.mrf.mxu0
      %v2861 = vadd.f32 %v2616, %v2860
      %2862 = vmatprep.mubr.bf16.mxu0 0
      %2863 = vmatmul.mubr.bf16.gmra.mxu0 %v2714
      %v2864 = vpop.f32.mrf.mxu0
      %v2865 = vadd.f32 %v2612, %v2864
      %v2866 = vpop.f32.mrf.mxu0
      %v2867 = vadd.f32 %v2616, %v2866
      %v2868 = vpop.f32.mrf.mxu0
      %v2869 = vadd.f32 %v2612, %v2868
      %v2870 = vpop.f32.mrf.mxu0
      %v2871 = vadd.f32 %v2616, %v2870
      %2872 = vmatprep.mubr.bf16.mxu0 0
      %2873 = vmatmul.mubr.bf16.gmra.mxu0 %v2717
      %v2874 = vpop.f32.mrf.mxu0
      %v2875 = vadd.f32 %v2612, %v2874
      %v2876 = vpop.f32.mrf.mxu0
      %v2877 = vadd.f32 %v2616, %v2876
      %v2878 = vpop.f32.mrf.mxu0
      %v2879 = vadd.f32 %v2612, %v2878
      %v2880 = vpop.f32.mrf.mxu0
      %v2881 = vadd.f32 %v2616, %v2880
      %2882 = vmatprep.mubr.bf16.mxu0 0
      %2883 = vmatmul.mubr.bf16.gmra.mxu0 %v2720
      %v2884 = vpop.f32.mrf.mxu0
      %v2885 = vadd.f32 %v2612, %v2884
      %v2886 = vpop.f32.mrf.mxu0
      %v2887 = vadd.f32 %v2616, %v2886
      %v2888 = vpop.f32.mrf.mxu0
      %v2889 = vadd.f32 %v2612, %v2888
      %v2890 = vpop.f32.mrf.mxu0
      %v2891 = vadd.f32 %v2616, %v2890
      %2892 = vmatprep.mubr.bf16.mxu0 0
      %2893 = vmatmul.mubr.bf16.gmra.mxu0 %v2723
      %v2894 = vpop.f32.mrf.mxu0
      %v2895 = vadd.f32 %v2612, %v2894
      %v2896 = vpop.f32.mrf.mxu0
      %v2897 = vadd.f32 %v2616, %v2896
      %v2898 = vpop.f32.mrf.mxu0
      %v2899 = vadd.f32 %v2612, %v2898
      %v2900 = vpop.f32.mrf.mxu0
      %v2901 = vadd.f32 %v2616, %v2900
      %2902 = vmatprep.mubr.bf16.mxu0 0
      %2903 = vmatmul.mubr.bf16.gmra.mxu0 %v2726
      %v2904 = vpop.f32.mrf.mxu0
      %v2905 = vadd.f32 %v2612, %v2904
      %v2906 = vpop.f32.mrf.mxu0
      %v2907 = vadd.f32 %v2616, %v2906
      %v2908 = vpop.f32.mrf.mxu0
      %v2909 = vadd.f32 %v2612, %v2908
      %v2910 = vpop.f32.mrf.mxu0
      %v2911 = vadd.f32 %v2616, %v2910
      %2912 = vmatprep.mubr.bf16.mxu0 0
      %2913 = vmatmul.mubr.bf16.gmra.mxu0 %v2729
      %v2914 = vpop.f32.mrf.mxu0
      %v2915 = vadd.f32 %v2612, %v2914
      %v2916 = vpop.f32.mrf.mxu0
      %v2917 = vadd.f32 %v2616, %v2916
      %v2918 = vpop.f32.mrf.mxu0
      %v2919 = vadd.f32 %v2612, %v2918
      %v2920 = vpop.f32.mrf.mxu0
      %v2921 = vadd.f32 %v2616, %v2920
      %2922 = vmatprep.mubr.bf16.mxu0 0
      %2923 = vmatmul.mubr.bf16.gmra.mxu0 %v2732
      %v2924 = vpop.f32.mrf.mxu0
      %v2925 = vadd.f32 %v2612, %v2924
      %v2926 = vpop.f32.mrf.mxu0
      %v2927 = vadd.f32 %v2616, %v2926
      %v2928 = vpop.f32.mrf.mxu0
      %v2929 = vadd.f32 %v2612, %v2928
      %v2930 = vpop.f32.mrf.mxu0
      %v2931 = vadd.f32 %v2616, %v2930
      %2932 = vmatprep.mubr.bf16.mxu0 0
      %2933 = vmatmul.mubr.bf16.gmra.mxu0 %v2735
      %v2934 = vpop.f32.mrf.mxu0
      %v2935 = vadd.f32 %v2612, %v2934
      %v2936 = vpop.f32.mrf.mxu0
      %v2937 = vadd.f32 %v2616, %v2936
      %v2938 = vpop.f32.mrf.mxu0
      %v2939 = vadd.f32 %v2612, %v2938
      %v2940 = vpop.f32.mrf.mxu0
      %v2941 = vadd.f32 %v2616, %v2940
      %2942 = vmatprep.mubr.bf16.mxu0 0
      %2943 = vmatmul.mubr.bf16.gmra.mxu0 %v2738
      %v2944 = vpop.f32.mrf.mxu0
      %v2945 = vadd.f32 %v2612, %v2944
      %v2946 = vpop.f32.mrf.mxu0
      %v2947 = vadd.f32 %v2616, %v2946
      %v2948 = vpop.f32.mrf.mxu0
      %v2949 = vadd.f32 %v2612, %v2948
      %v2950 = vpop.f32.mrf.mxu0
      %v2951 = vadd.f32 %v2616, %v2950
      %2952 = vmatprep.mubr.bf16.mxu0 0
      %2953 = vmatmul.mubr.bf16.gmra.mxu0 %v2741
      %v2954 = vpop.f32.mrf.mxu0
      %v2955 = vadd.f32 %v2612, %v2954
      %v2956 = vpop.f32.mrf.mxu0
      %v2957 = vadd.f32 %v2616, %v2956
      %v2958 = vpop.f32.mrf.mxu0
      %v2959 = vadd.f32 %v2612, %v2958
      %v2960 = vpop.f32.mrf.mxu0
      %v2961 = vadd.f32 %v2616, %v2960
      %2962 = vmatprep.mubr.bf16.mxu0 0
      %2963 = vmatmul.mubr.bf16.gmra.mxu0 %v2744
      %v2964 = vpop.f32.mrf.mxu0
      %v2965 = vadd.f32 %v2612, %v2964
      %v2966 = vpop.f32.mrf.mxu0
      %v2967 = vadd.f32 %v2616, %v2966
      %v2968 = vpop.f32.mrf.mxu0
      %v2969 = vadd.f32 %v2612, %v2968
      %v2970 = vpop.f32.mrf.mxu0
      %v2971 = vadd.f32 %v2616, %v2970
      %2972 = vmatprep.mubr.bf16.mxu0 0
      %2973 = vmatmul.mubr.bf16.gmra.mxu0 %v2747
      %v2974 = vpop.f32.mrf.mxu0
      %v2975 = vadd.f32 %v2612, %v2974
      %v2976 = vpop.f32.mrf.mxu0
      %v2977 = vadd.f32 %v2616, %v2976
      %v2978 = vpop.f32.mrf.mxu0
      %v2979 = vadd.f32 %v2612, %v2978
      %v2980 = vpop.f32.mrf.mxu0
      %v2981 = vadd.f32 %v2616, %v2980
      %2982 = vmatprep.mubr.bf16.mxu0 0
      %2983 = vmatmul.mubr.bf16.gmra.mxu0 %v2750
      %v2984 = vpop.f32.mrf.mxu0
      %v2985 = vadd.f32 %v2612, %v2984
      %v2986 = vpop.f32.mrf.mxu0
      %v2987 = vadd.f32 %v2616, %v2986
      %v2988 = vpop.f32.mrf.mxu0
      %v2989 = vadd.f32 %v2612, %v2988
      %v2990 = vpop.f32.mrf.mxu0
      %v2991 = vadd.f32 %v2616, %v2990
      %2992 = vmatprep.mubr.bf16.mxu0 0
      %2993 = vmatmul.mubr.bf16.gmra.mxu0 %v2753
      %v2994 = vpop.f32.mrf.mxu0
      %v2995 = vadd.f32 %v2612, %v2994
      %v2996 = vpop.f32.mrf.mxu0
      %v2997 = vadd.f32 %v2616, %v2996
      %v2998 = vpop.f32.mrf.mxu0
      %v2999 = vadd.f32 %v2612, %v2998
      %v3000 = vpop.f32.mrf.mxu0
      %v3001 = vadd.f32 %v2616, %v3000
      %3002 = vmatprep.mubr.bf16.mxu0 0
      %3003 = vmatmul.mubr.bf16.gmra.mxu0 %v2756
      %v3004 = vpop.f32.mrf.mxu0
      %v3005 = vadd.f32 %v2612, %v3004
      %v3006 = vpop.f32.mrf.mxu0
      %v3007 = vadd.f32 %v2616, %v3006
      %v3008 = vpop.f32.mrf.mxu0
      %v3009 = vadd.f32 %v2612, %v3008
      %v3010 = vpop.f32.mrf.mxu0
      %v3011 = vadd.f32 %v2616, %v3010
      %3012 = vmatprep.mubr.bf16.mxu0 0
      %3013 = vmatmul.mubr.bf16.gmra.mxu0 %v2759
      %v3014 = vpop.f32.mrf.mxu0
      %v3015 = vadd.f32 %v2612, %v3014
      %v3016 = vpop.f32.mrf.mxu0
      %v3017 = vadd.f32 %v2616, %v3016
      %v3018 = vpop.f32.mrf.mxu0
      %v3019 = vadd.f32 %v2612, %v3018
      %v3020 = vpop.f32.mrf.mxu0
      %v3021 = vadd.f32 %v2616, %v3020
      %3022 = vmatprep.mubr.bf16.mxu0 0
      %3023 = vmatmul.mubr.bf16.gmra.mxu0 %v2762
      %v3024 = vpop.f32.mrf.mxu0
      %v3025 = vadd.f32 %v2612, %v3024
      %v3026 = vpop.f32.mrf.mxu0
      %v3027 = vadd.f32 %v2616, %v3026
      %v3028 = vpop.f32.mrf.mxu0
      %v3029 = vadd.f32 %v2612, %v3028
      %v3030 = vpop.f32.mrf.mxu0
      %v3031 = vadd.f32 %v2616, %v3030
      %3032 = vmatprep.mubr.bf16.mxu0 0
      %3033 = vmatmul.mubr.bf16.gmra.mxu0 %v2765
      %v3034 = vpop.f32.mrf.mxu0
      %v3035 = vadd.f32 %v2612, %v3034
      %v3036 = vpop.f32.mrf.mxu0
      %v3037 = vadd.f32 %v2616, %v3036
      %v3038 = vpop.f32.mrf.mxu0
      %v3039 = vadd.f32 %v2612, %v3038
      %v3040 = vpop.f32.mrf.mxu0
      %v3041 = vadd.f32 %v2616, %v3040
      %3042 = vmatprep.mubr.bf16.mxu0 0
      %3043 = vmatmul.mubr.bf16.gmra.mxu0 %v2768
      %v3044 = vpop.f32.mrf.mxu0
      %v3045 = vadd.f32 %v2612, %v3044
      %v3046 = vpop.f32.mrf.mxu0
      %v3047 = vadd.f32 %v2616, %v3046
      %v3048 = vpop.f32.mrf.mxu0
      %v3049 = vadd.f32 %v2612, %v3048
      %v3050 = vpop.f32.mrf.mxu0
      %v3051 = vadd.f32 %v2616, %v3050
      %3052 = vmatprep.mubr.bf16.mxu0 0
      %3053 = vmatmul.mubr.bf16.gmra.mxu0 %v2771
      %v3054 = vpop.f32.mrf.mxu0
      %v3055 = vadd.f32 %v2612, %v3054
      %v3056 = vpop.f32.mrf.mxu0
      %v3057 = vadd.f32 %v2616, %v3056
      %v3058 = vpop.f32.mrf.mxu0
      %v3059 = vadd.f32 %v2612, %v3058
      %v3060 = vpop.f32.mrf.mxu0
      %v3061 = vadd.f32 %v2616, %v3060
      %3062 = vmatprep.mubr.bf16.mxu0 0
      %3063 = vmatmul.mubr.bf16.gmra.mxu0 %v2774
      %v3064 = vpop.f32.mrf.mxu0
      %v3065 = vadd.f32 %v2612, %v3064
      %v3066 = vpop.f32.mrf.mxu0
      %v3067 = vadd.f32 %v2616, %v3066
      %v3068 = vpop.f32.mrf.mxu0
      %v3069 = vadd.f32 %v2612, %v3068
      %v3070 = vpop.f32.mrf.mxu0
      %v3071 = vadd.f32 %v2616, %v3070
      %3072 = vmatprep.mubr.bf16.mxu0 0
      %3073 = vmatmul.mubr.bf16.gmra.mxu0 %v2777
      %v3074 = vpop.f32.mrf.mxu0
      %v3075 = vadd.f32 %v2612, %v3074
      %v3076 = vpop.f32.mrf.mxu0
      %v3077 = vadd.f32 %v2616, %v3076
      %v3078 = vpop.f32.mrf.mxu0
      %v3079 = vadd.f32 %v2612, %v3078
      %v3080 = vpop.f32.mrf.mxu0
      %v3081 = vadd.f32 %v2616, %v3080
      %3082 = vmatprep.mubr.bf16.mxu0 0
      %3083 = vmatmul.mubr.bf16.gmra.mxu0 %v2780
      %v3084 = vpop.f32.mrf.mxu0
      %v3085 = vadd.f32 %v2612, %v3084
      %v3086 = vpop.f32.mrf.mxu0
      %v3087 = vadd.f32 %v2616, %v3086
      %v3088 = vpop.f32.mrf.mxu0
      %v3089 = vadd.f32 %v2612, %v3088
      %v3090 = vpop.f32.mrf.mxu0
      %v3091 = vadd.f32 %v2616, %v3090
      %3092 = vmatprep.mubr.bf16.mxu0 0
      %3093 = vmatmul.mubr.bf16.gmra.mxu0 %v2783
      %v3094 = vpop.f32.mrf.mxu0
      %v3095 = vadd.f32 %v2612, %v3094
      %v3096 = vpop.f32.mrf.mxu0
      %v3097 = vadd.f32 %v2616, %v3096
      %v3098 = vpop.f32.mrf.mxu0
      %v3099 = vadd.f32 %v2612, %v3098
      %v3100 = vpop.f32.mrf.mxu0
      %v3101 = vadd.f32 %v2616, %v3100
      %3102 = vmatprep.mubr.bf16.mxu0 0
      %3103 = vmatmul.mubr.bf16.gmra.mxu0 %v2786
      %v3104 = vpop.f32.mrf.mxu0
      %v3105 = vadd.f32 %v2612, %v3104
      %v3106 = vpop.f32.mrf.mxu0
      %v3107 = vadd.f32 %v2616, %v3106
      %v3108 = vpop.f32.mrf.mxu0
      %v3109 = vadd.f32 %v2612, %v3108
      %v3110 = vpop.f32.mrf.mxu0
      %v3111 = vadd.f32 %v2616, %v3110
      %3112 = vmatprep.mubr.bf16.mxu0 0
      %3113 = vmatmul.mubr.bf16.gmra.mxu0 %v2789
      %v3114 = vpop.f32.mrf.mxu0
      %v3115 = vadd.f32 %v2612, %v3114
      %v3116 = vpop.f32.mrf.mxu0
      %v3117 = vadd.f32 %v2616, %v3116
      %v3118 = vpop.f32.mrf.mxu0
      %v3119 = vadd.f32 %v2612, %v3118
      %v3120 = vpop.f32.mrf.mxu0
      %v3121 = vadd.f32 %v2616, %v3120
      %3122 = vmatprep.mubr.bf16.mxu0 0
      %3123 = vmatmul.mubr.bf16.gmra.mxu0 %v2792
      %v3124 = vpop.f32.mrf.mxu0
      %v3125 = vadd.f32 %v2612, %v3124
      %v3126 = vpop.f32.mrf.mxu0
      %v3127 = vadd.f32 %v2616, %v3126
      %v3128 = vpop.f32.mrf.mxu0
      %v3129 = vadd.f32 %v2612, %v3128
      %v3130 = vpop.f32.mrf.mxu0
      %v3131 = vadd.f32 %v2616, %v3130
      %3132 = vmatprep.mubr.bf16.mxu0 0
      %3133 = vmatmul.mubr.bf16.gmra.mxu0 %v2795
      %v3134 = vpop.f32.mrf.mxu0
      %v3135 = vadd.f32 %v2612, %v3134
      %v3136 = vpop.f32.mrf.mxu0
      %v3137 = vadd.f32 %v2616, %v3136
      %v3138 = vpop.f32.mrf.mxu0
      %v3139 = vadd.f32 %v2612, %v3138
      %v3140 = vpop.f32.mrf.mxu0
      %v3141 = vadd.f32 %v2616, %v3140
      %3142 = vmatprep.mubr.bf16.mxu0 0
      %3143 = vmatmul.mubr.bf16.gmra.mxu0 %v2798
      %v3144 = vpop.f32.mrf.mxu0
      %v3145 = vadd.f32 %v2612, %v3144
      %v3146 = vpop.f32.mrf.mxu0
      %v3147 = vadd.f32 %v2616, %v3146
      %v3148 = vpop.f32.mrf.mxu0
      %v3149 = vadd.f32 %v2612, %v3148
      %v3150 = vpop.f32.mrf.mxu0
      %v3151 = vadd.f32 %v2616, %v3150
      %3152 = vdwg.mxu0
      %3153 = vmatprep.subr.bf16.mxu0 0
      %3154 = vmatpush1.bf16.msra.mxu0 0
      %3155 = vmatprep.subr.bf16.mxu0 0
      %3156 = vmatpush1.bf16.msra.mxu0 0
      %3157 = vmatprep.subr.bf16.mxu0 0
      %3158 = vmatpush1.bf16.msra.mxu0 0
      %3159 = vmatprep.subr.bf16.mxu0 0
      %3160 = vmatpush1.bf16.msra.mxu0 %v2688
      %3161 = vmatprep.subr.bf16.mxu0 0
      %3162 = vmatpush1.bf16.msra.mxu0 %v2685
      %3163 = vmatprep.subr.bf16.mxu0 0
      %3164 = vmatpush1.bf16.msra.mxu0 %v2682
      %3165 = vmatprep.subr.bf16.mxu0 0
      %3166 = vmatpush1.bf16.msra.mxu0 %v2679
      %3167 = vmatprep.subr.bf16.mxu0 0
      %3168 = vmatpush1.bf16.msra.mxu0 %v2676
      %3169 = vmatprep.subr.bf16.mxu0 0
      %3170 = vmatpush2.bf16.msra.mxu0 0
      %3171 = vmatprep.subr.bf16.mxu0 0
      %3172 = vmatpush2.bf16.msra.mxu0 0
      %3173 = vmatprep.subr.bf16.mxu0 0
      %3174 = vmatpush2.bf16.msra.mxu0 0
      %3175 = vmatprep.subr.bf16.mxu0 0
      %3176 = vmatpush2.bf16.msra.mxu0 0
      %3177 = vmatprep.subr.bf16.mxu0 0
      %3178 = vmatpush2.bf16.msra.mxu0 0
      %3179 = vmatprep.subr.bf16.mxu0 0
      %3180 = vmatpush2.bf16.msra.mxu0 0
      %3181 = vmatprep.subr.bf16.mxu0 0
      %3182 = vmatpush2.bf16.msra.mxu0 0
      %3183 = vmatprep.subr.bf16.mxu0 0
      %3184 = vmatpush2.bf16.msra.mxu0 0
      %3185 = vmatprep.mubr.bf16.mxu0 0
      %3186 = vmatmul.mubr.bf16.gmra.mxu0 %v2705
      %v3187 = vpop.f32.mrf.mxu0
      %v3188 = vadd.f32 %v2620, %v3187
      %v3189 = vpop.f32.mrf.mxu0
      %v3190 = vpop.f32.mrf.mxu0
      %v3191 = vadd.f32 %v2620, %v3190
      %v3192 = vpop.f32.mrf.mxu0
      %3193 = vmatprep.mubr.bf16.mxu0 0
      %3194 = vmatmul.mubr.bf16.gmra.mxu0 %v2708
      %v3195 = vpop.f32.mrf.mxu0
      %v3196 = vadd.f32 %v2620, %v3195
      %v3197 = vpop.f32.mrf.mxu0
      %v3198 = vpop.f32.mrf.mxu0
      %v3199 = vadd.f32 %v2620, %v3198
      %v3200 = vpop.f32.mrf.mxu0
      %3201 = vmatprep.mubr.bf16.mxu0 0
      %3202 = vmatmul.mubr.bf16.gmra.mxu0 %v2711
      %v3203 = vpop.f32.mrf.mxu0
      %v3204 = vadd.f32 %v2620, %v3203
      %v3205 = vpop.f32.mrf.mxu0
      %v3206 = vpop.f32.mrf.mxu0
      %v3207 = vadd.f32 %v2620, %v3206
      %v3208 = vpop.f32.mrf.mxu0
      %3209 = vmatprep.mubr.bf16.mxu0 0
      %3210 = vmatmul.mubr.bf16.gmra.mxu0 %v2714
      %v3211 = vpop.f32.mrf.mxu0
      %v3212 = vadd.f32 %v2620, %v3211
      %v3213 = vpop.f32.mrf.mxu0
      %v3214 = vpop.f32.mrf.mxu0
      %v3215 = vadd.f32 %v2620, %v3214
      %v3216 = vpop.f32.mrf.mxu0
      %3217 = vmatprep.mubr.bf16.mxu0 0
      %3218 = vmatmul.mubr.bf16.gmra.mxu0 %v2717
      %v3219 = vpop.f32.mrf.mxu0
      %v3220 = vadd.f32 %v2620, %v3219
      %v3221 = vpop.f32.mrf.mxu0
      %v3222 = vpop.f32.mrf.mxu0
      %v3223 = vadd.f32 %v2620, %v3222
      %v3224 = vpop.f32.mrf.mxu0
      %3225 = vmatprep.mubr.bf16.mxu0 0
      %3226 = vmatmul.mubr.bf16.gmra.mxu0 %v2720
      %v3227 = vpop.f32.mrf.mxu0
      %v3228 = vadd.f32 %v2620, %v3227
      %v3229 = vpop.f32.mrf.mxu0
      %v3230 = vpop.f32.mrf.mxu0
      %v3231 = vadd.f32 %v2620, %v3230
      %v3232 = vpop.f32.mrf.mxu0
      %3233 = vmatprep.mubr.bf16.mxu0 0
      %3234 = vmatmul.mubr.bf16.gmra.mxu0 %v2723
      %v3235 = vpop.f32.mrf.mxu0
      %v3236 = vadd.f32 %v2620, %v3235
      %v3237 = vpop.f32.mrf.mxu0
      %v3238 = vpop.f32.mrf.mxu0
      %v3239 = vadd.f32 %v2620, %v3238
      %v3240 = vpop.f32.mrf.mxu0
      %3241 = vmatprep.mubr.bf16.mxu0 0
      %3242 = vmatmul.mubr.bf16.gmra.mxu0 %v2726
      %v3243 = vpop.f32.mrf.mxu0
      %v3244 = vadd.f32 %v2620, %v3243
      %v3245 = vpop.f32.mrf.mxu0
      %v3246 = vpop.f32.mrf.mxu0
      %v3247 = vadd.f32 %v2620, %v3246
      %v3248 = vpop.f32.mrf.mxu0
      %3249 = vmatprep.mubr.bf16.mxu0 0
      %3250 = vmatmul.mubr.bf16.gmra.mxu0 %v2729
      %v3251 = vpop.f32.mrf.mxu0
      %v3252 = vadd.f32 %v2620, %v3251
      %v3253 = vpop.f32.mrf.mxu0
      %v3254 = vpop.f32.mrf.mxu0
      %v3255 = vadd.f32 %v2620, %v3254
      %v3256 = vpop.f32.mrf.mxu0
      %3257 = vmatprep.mubr.bf16.mxu0 0
      %3258 = vmatmul.mubr.bf16.gmra.mxu0 %v2732
      %v3259 = vpop.f32.mrf.mxu0
      %v3260 = vadd.f32 %v2620, %v3259
      %v3261 = vpop.f32.mrf.mxu0
      %v3262 = vpop.f32.mrf.mxu0
      %v3263 = vadd.f32 %v2620, %v3262
      %v3264 = vpop.f32.mrf.mxu0
      %3265 = vmatprep.mubr.bf16.mxu0 0
      %3266 = vmatmul.mubr.bf16.gmra.mxu0 %v2735
      %v3267 = vpop.f32.mrf.mxu0
      %v3268 = vadd.f32 %v2620, %v3267
      %v3269 = vpop.f32.mrf.mxu0
      %v3270 = vpop.f32.mrf.mxu0
      %v3271 = vadd.f32 %v2620, %v3270
      %v3272 = vpop.f32.mrf.mxu0
      %3273 = vmatprep.mubr.bf16.mxu0 0
      %3274 = vmatmul.mubr.bf16.gmra.mxu0 %v2738
      %v3275 = vpop.f32.mrf.mxu0
      %v3276 = vadd.f32 %v2620, %v3275
      %v3277 = vpop.f32.mrf.mxu0
      %v3278 = vpop.f32.mrf.mxu0
      %v3279 = vadd.f32 %v2620, %v3278
      %v3280 = vpop.f32.mrf.mxu0
      %3281 = vmatprep.mubr.bf16.mxu0 0
      %3282 = vmatmul.mubr.bf16.gmra.mxu0 %v2741
      %v3283 = vpop.f32.mrf.mxu0
      %v3284 = vadd.f32 %v2620, %v3283
      %v3285 = vpop.f32.mrf.mxu0
      %v3286 = vpop.f32.mrf.mxu0
      %v3287 = vadd.f32 %v2620, %v3286
      %v3288 = vpop.f32.mrf.mxu0
      %3289 = vmatprep.mubr.bf16.mxu0 0
      %3290 = vmatmul.mubr.bf16.gmra.mxu0 %v2744
      %v3291 = vpop.f32.mrf.mxu0
      %v3292 = vadd.f32 %v2620, %v3291
      %v3293 = vpop.f32.mrf.mxu0
      %v3294 = vpop.f32.mrf.mxu0
      %v3295 = vadd.f32 %v2620, %v3294
      %v3296 = vpop.f32.mrf.mxu0
      %3297 = vmatprep.mubr.bf16.mxu0 0
      %3298 = vmatmul.mubr.bf16.gmra.mxu0 %v2747
      %v3299 = vpop.f32.mrf.mxu0
      %v3300 = vadd.f32 %v2620, %v3299
      %v3301 = vpop.f32.mrf.mxu0
      %v3302 = vpop.f32.mrf.mxu0
      %v3303 = vadd.f32 %v2620, %v3302
      %v3304 = vpop.f32.mrf.mxu0
      %3305 = vmatprep.mubr.bf16.mxu0 0
      %3306 = vmatmul.mubr.bf16.gmra.mxu0 %v2750
      %v3307 = vpop.f32.mrf.mxu0
      %v3308 = vadd.f32 %v2620, %v3307
      %v3309 = vpop.f32.mrf.mxu0
      %v3310 = vpop.f32.mrf.mxu0
      %v3311 = vadd.f32 %v2620, %v3310
      %v3312 = vpop.f32.mrf.mxu0
      %3313 = vmatprep.mubr.bf16.mxu0 0
      %3314 = vmatmul.mubr.bf16.gmra.mxu0 %v2753
      %v3315 = vpop.f32.mrf.mxu0
      %v3316 = vadd.f32 %v2620, %v3315
      %v3317 = vpop.f32.mrf.mxu0
      %v3318 = vpop.f32.mrf.mxu0
      %v3319 = vadd.f32 %v2620, %v3318
      %v3320 = vpop.f32.mrf.mxu0
      %3321 = vmatprep.mubr.bf16.mxu0 0
      %3322 = vmatmul.mubr.bf16.gmra.mxu0 %v2756
      %v3323 = vpop.f32.mrf.mxu0
      %v3324 = vadd.f32 %v2620, %v3323
      %v3325 = vpop.f32.mrf.mxu0
      %v3326 = vpop.f32.mrf.mxu0
      %v3327 = vadd.f32 %v2620, %v3326
      %v3328 = vpop.f32.mrf.mxu0
      %3329 = vmatprep.mubr.bf16.mxu0 0
      %3330 = vmatmul.mubr.bf16.gmra.mxu0 %v2759
      %v3331 = vpop.f32.mrf.mxu0
      %v3332 = vadd.f32 %v2620, %v3331
      %v3333 = vpop.f32.mrf.mxu0
      %v3334 = vpop.f32.mrf.mxu0
      %v3335 = vadd.f32 %v2620, %v3334
      %v3336 = vpop.f32.mrf.mxu0
      %3337 = vmatprep.mubr.bf16.mxu0 0
      %3338 = vmatmul.mubr.bf16.gmra.mxu0 %v2762
      %v3339 = vpop.f32.mrf.mxu0
      %v3340 = vadd.f32 %v2620, %v3339
      %v3341 = vpop.f32.mrf.mxu0
      %v3342 = vpop.f32.mrf.mxu0
      %v3343 = vadd.f32 %v2620, %v3342
      %v3344 = vpop.f32.mrf.mxu0
      %3345 = vmatprep.mubr.bf16.mxu0 0
      %3346 = vmatmul.mubr.bf16.gmra.mxu0 %v2765
      %v3347 = vpop.f32.mrf.mxu0
      %v3348 = vadd.f32 %v2620, %v3347
      %v3349 = vpop.f32.mrf.mxu0
      %v3350 = vpop.f32.mrf.mxu0
      %v3351 = vadd.f32 %v2620, %v3350
      %v3352 = vpop.f32.mrf.mxu0
      %3353 = vmatprep.mubr.bf16.mxu0 0
      %3354 = vmatmul.mubr.bf16.gmra.mxu0 %v2768
      %v3355 = vpop.f32.mrf.mxu0
      %v3356 = vadd.f32 %v2620, %v3355
      %v3357 = vpop.f32.mrf.mxu0
      %v3358 = vpop.f32.mrf.mxu0
      %v3359 = vadd.f32 %v2620, %v3358
      %v3360 = vpop.f32.mrf.mxu0
      %3361 = vmatprep.mubr.bf16.mxu0 0
      %3362 = vmatmul.mubr.bf16.gmra.mxu0 %v2771
      %v3363 = vpop.f32.mrf.mxu0
      %v3364 = vadd.f32 %v2620, %v3363
      %v3365 = vpop.f32.mrf.mxu0
      %v3366 = vpop.f32.mrf.mxu0
      %v3367 = vadd.f32 %v2620, %v3366
      %v3368 = vpop.f32.mrf.mxu0
      %3369 = vmatprep.mubr.bf16.mxu0 0
      %3370 = vmatmul.mubr.bf16.gmra.mxu0 %v2774
      %v3371 = vpop.f32.mrf.mxu0
      %v3372 = vadd.f32 %v2620, %v3371
      %v3373 = vpop.f32.mrf.mxu0
      %v3374 = vpop.f32.mrf.mxu0
      %v3375 = vadd.f32 %v2620, %v3374
      %v3376 = vpop.f32.mrf.mxu0
      %3377 = vmatprep.mubr.bf16.mxu0 0
      %3378 = vmatmul.mubr.bf16.gmra.mxu0 %v2777
      %v3379 = vpop.f32.mrf.mxu0
      %v3380 = vadd.f32 %v2620, %v3379
      %v3381 = vpop.f32.mrf.mxu0
      %v3382 = vpop.f32.mrf.mxu0
      %v3383 = vadd.f32 %v2620, %v3382
      %v3384 = vpop.f32.mrf.mxu0
      %3385 = vmatprep.mubr.bf16.mxu0 0
      %3386 = vmatmul.mubr.bf16.gmra.mxu0 %v2780
      %v3387 = vpop.f32.mrf.mxu0
      %v3388 = vadd.f32 %v2620, %v3387
      %v3389 = vpop.f32.mrf.mxu0
      %v3390 = vpop.f32.mrf.mxu0
      %v3391 = vadd.f32 %v2620, %v3390
      %v3392 = vpop.f32.mrf.mxu0
      %3393 = vmatprep.mubr.bf16.mxu0 0
      %3394 = vmatmul.mubr.bf16.gmra.mxu0 %v2783
      %v3395 = vpop.f32.mrf.mxu0
      %v3396 = vadd.f32 %v2620, %v3395
      %v3397 = vpop.f32.mrf.mxu0
      %v3398 = vpop.f32.mrf.mxu0
      %v3399 = vadd.f32 %v2620, %v3398
      %v3400 = vpop.f32.mrf.mxu0
      %3401 = vmatprep.mubr.bf16.mxu0 0
      %3402 = vmatmul.mubr.bf16.gmra.mxu0 %v2786
      %v3403 = vpop.f32.mrf.mxu0
      %v3404 = vadd.f32 %v2620, %v3403
      %v3405 = vpop.f32.mrf.mxu0
      %v3406 = vpop.f32.mrf.mxu0
      %v3407 = vadd.f32 %v2620, %v3406
      %v3408 = vpop.f32.mrf.mxu0
      %3409 = vmatprep.mubr.bf16.mxu0 0
      %3410 = vmatmul.mubr.bf16.gmra.mxu0 %v2789
      %v3411 = vpop.f32.mrf.mxu0
      %v3412 = vadd.f32 %v2620, %v3411
      %v3413 = vpop.f32.mrf.mxu0
      %v3414 = vpop.f32.mrf.mxu0
      %v3415 = vadd.f32 %v2620, %v3414
      %v3416 = vpop.f32.mrf.mxu0
      %3417 = vmatprep.mubr.bf16.mxu0 0
      %3418 = vmatmul.mubr.bf16.gmra.mxu0 %v2792
      %v3419 = vpop.f32.mrf.mxu0
      %v3420 = vadd.f32 %v2620, %v3419
      %v3421 = vpop.f32.mrf.mxu0
      %v3422 = vpop.f32.mrf.mxu0
      %v3423 = vadd.f32 %v2620, %v3422
      %v3424 = vpop.f32.mrf.mxu0
      %3425 = vmatprep.mubr.bf16.mxu0 0
      %3426 = vmatmul.mubr.bf16.gmra.mxu0 %v2795
      %v3427 = vpop.f32.mrf.mxu0
      %v3428 = vadd.f32 %v2620, %v3427
      %v3429 = vpop.f32.mrf.mxu0
      %v3430 = vpop.f32.mrf.mxu0
      %v3431 = vadd.f32 %v2620, %v3430
      %v3432 = vpop.f32.mrf.mxu0
      %3433 = vmatprep.mubr.bf16.mxu0 0
      %3434 = vmatmul.mubr.bf16.gmra.mxu0 %v2798
      %v3435 = vpop.f32.mrf.mxu0
      %v3436 = vadd.f32 %v2620, %v3435
      %v3437 = vpop.f32.mrf.mxu0
      %v3438 = vpop.f32.mrf.mxu0
      %v3439 = vadd.f32 %v2620, %v3438
      %v3440 = vpop.f32.mrf.mxu0
      %3441 = vdwg.mxu0
      %v3442 = vpack.c.bf16 %v2839, %v2835
      %v3443 = vpack.c.bf16 %v2841, %v2837
      %v3444 = vpack.c.bf16 %v3191, %v3188
      %v3445 = vpack.c.bf16 %v2849, %v2845
      %v3446 = vpack.c.bf16 %v2851, %v2847
      %v3447 = vpack.c.bf16 %v3199, %v3196
      %v3448 = vpack.c.bf16 %v2859, %v2855
      %v3449 = vpack.c.bf16 %v2861, %v2857
      %v3450 = vpack.c.bf16 %v3207, %v3204
      %v3451 = vpack.c.bf16 %v2869, %v2865
      %v3452 = vpack.c.bf16 %v2871, %v2867
      %v3453 = vpack.c.bf16 %v3215, %v3212
      %v3454 = vpack.c.bf16 %v2879, %v2875
      %v3455 = vpack.c.bf16 %v2881, %v2877
      %v3456 = vpack.c.bf16 %v3223, %v3220
      %v3457 = vpack.c.bf16 %v2889, %v2885
      %v3458 = vpack.c.bf16 %v2891, %v2887
      %v3459 = vpack.c.bf16 %v3231, %v3228
      %v3460 = vpack.c.bf16 %v2899, %v2895
      %v3461 = vpack.c.bf16 %v2901, %v2897
      %v3462 = vpack.c.bf16 %v3239, %v3236
      %v3463 = vpack.c.bf16 %v2909, %v2905
      %v3464 = vpack.c.bf16 %v2911, %v2907
      %v3465 = vpack.c.bf16 %v3247, %v3244
      %v3466 = vpack.c.bf16 %v2919, %v2915
      %v3467 = vpack.c.bf16 %v2921, %v2917
      %v3468 = vpack.c.bf16 %v3255, %v3252
      %v3469 = vpack.c.bf16 %v2929, %v2925
      %v3470 = vpack.c.bf16 %v2931, %v2927
      %v3471 = vpack.c.bf16 %v3263, %v3260
      %v3472 = vpack.c.bf16 %v2939, %v2935
      %v3473 = vpack.c.bf16 %v2941, %v2937
      %v3474 = vpack.c.bf16 %v3271, %v3268
      %v3475 = vpack.c.bf16 %v2949, %v2945
      %v3476 = vpack.c.bf16 %v2951, %v2947
      %v3477 = vpack.c.bf16 %v3279, %v3276
      %v3478 = vpack.c.bf16 %v2959, %v2955
      %v3479 = vpack.c.bf16 %v2961, %v2957
      %v3480 = vpack.c.bf16 %v3287, %v3284
      %v3481 = vpack.c.bf16 %v2969, %v2965
      %v3482 = vpack.c.bf16 %v2971, %v2967
      %v3483 = vpack.c.bf16 %v3295, %v3292
      %v3484 = vpack.c.bf16 %v2979, %v2975
      %v3485 = vpack.c.bf16 %v2981, %v2977
      %v3486 = vpack.c.bf16 %v3303, %v3300
      %v3487 = vpack.c.bf16 %v2989, %v2985
      %v3488 = vpack.c.bf16 %v2991, %v2987
      %v3489 = vpack.c.bf16 %v3311, %v3308
      %v3490 = vpack.c.bf16 %v2999, %v2995
      %v3491 = vpack.c.bf16 %v3001, %v2997
      %v3492 = vpack.c.bf16 %v3319, %v3316
      %v3493 = vpack.c.bf16 %v3009, %v3005
      %v3494 = vpack.c.bf16 %v3011, %v3007
      %v3495 = vpack.c.bf16 %v3327, %v3324
      %v3496 = vpack.c.bf16 %v3019, %v3015
      %v3497 = vpack.c.bf16 %v3021, %v3017
      %v3498 = vpack.c.bf16 %v3335, %v3332
      %v3499 = vpack.c.bf16 %v3029, %v3025
      %v3500 = vpack.c.bf16 %v3031, %v3027
      %v3501 = vpack.c.bf16 %v3343, %v3340
      %v3502 = vpack.c.bf16 %v3039, %v3035
      %v3503 = vpack.c.bf16 %v3041, %v3037
      %v3504 = vpack.c.bf16 %v3351, %v3348
      %v3505 = vpack.c.bf16 %v3049, %v3045
      %v3506 = vpack.c.bf16 %v3051, %v3047
      %v3507 = vpack.c.bf16 %v3359, %v3356
      %v3508 = vpack.c.bf16 %v3059, %v3055
      %v3509 = vpack.c.bf16 %v3061, %v3057
      %v3510 = vpack.c.bf16 %v3367, %v3364
      %v3511 = vpack.c.bf16 %v3069, %v3065
      %v3512 = vpack.c.bf16 %v3071, %v3067
      %v3513 = vpack.c.bf16 %v3375, %v3372
      %v3514 = vpack.c.bf16 %v3079, %v3075
      %v3515 = vpack.c.bf16 %v3081, %v3077
      %v3516 = vpack.c.bf16 %v3383, %v3380
      %v3517 = vpack.c.bf16 %v3089, %v3085
      %v3518 = vpack.c.bf16 %v3091, %v3087
      %v3519 = vpack.c.bf16 %v3391, %v3388
      %v3520 = vpack.c.bf16 %v3099, %v3095
      %v3521 = vpack.c.bf16 %v3101, %v3097
      %v3522 = vpack.c.bf16 %v3399, %v3396
      %v3523 = vpack.c.bf16 %v3109, %v3105
      %v3524 = vpack.c.bf16 %v3111, %v3107
      %v3525 = vpack.c.bf16 %v3407, %v3404
      %v3526 = vpack.c.bf16 %v3119, %v3115
      %v3527 = vpack.c.bf16 %v3121, %v3117
      %v3528 = vpack.c.bf16 %v3415, %v3412
      %v3529 = vpack.c.bf16 %v3129, %v3125
      %v3530 = vpack.c.bf16 %v3131, %v3127
      %v3531 = vpack.c.bf16 %v3423, %v3420
      %v3532 = vpack.c.bf16 %v3139, %v3135
      %v3533 = vpack.c.bf16 %v3141, %v3137
      %v3534 = vpack.c.bf16 %v3431, %v3428
      %v3535 = vpack.c.bf16 %v3149, %v3145
      %v3536 = vpack.c.bf16 %v3151, %v3147
      %v3537 = vpack.c.bf16 %v3439, %v3436
      %v3538 = vmul.bf16 %v3442, %v3442
      %v3539 = vmul.bf16 %v3443, %v3443
      %v3540 = vmul.bf16 %v3444, %v3444
      %v3541 = vmul.bf16 %v3445, %v3445
      %v3542 = vmul.bf16 %v3446, %v3446
      %v3543 = vmul.bf16 %v3447, %v3447
      %v3544 = vmul.bf16 %v3448, %v3448
      %v3545 = vmul.bf16 %v3449, %v3449
      %v3546 = vmul.bf16 %v3450, %v3450
      %v3547 = vmul.bf16 %v3451, %v3451
      %v3548 = vmul.bf16 %v3452, %v3452
      %v3549 = vmul.bf16 %v3453, %v3453
      %v3550 = vmul.bf16 %v3454, %v3454
      %v3551 = vmul.bf16 %v3455, %v3455
      %v3552 = vmul.bf16 %v3456, %v3456
      %v3553 = vmul.bf16 %v3457, %v3457
      %v3554 = vmul.bf16 %v3458, %v3458
      %v3555 = vmul.bf16 %v3459, %v3459
      %v3556 = vmul.bf16 %v3460, %v3460
      %v3557 = vmul.bf16 %v3461, %v3461
      %v3558 = vmul.bf16 %v3462, %v3462
      %v3559 = vmul.bf16 %v3463, %v3463
      %v3560 = vmul.bf16 %v3464, %v3464
      %v3561 = vmul.bf16 %v3465, %v3465
      %v3562 = vmul.bf16 %v3466, %v3466
      %v3563 = vmul.bf16 %v3467, %v3467
      %v3564 = vmul.bf16 %v3468, %v3468
      %v3565 = vmul.bf16 %v3469, %v3469
      %v3566 = vmul.bf16 %v3470, %v3470
      %v3567 = vmul.bf16 %v3471, %v3471
      %v3568 = vmul.bf16 %v3472, %v3472
      %v3569 = vmul.bf16 %v3473, %v3473
      %v3570 = vmul.bf16 %v3474, %v3474
      %v3571 = vmul.bf16 %v3475, %v3475
      %v3572 = vmul.bf16 %v3476, %v3476
      %v3573 = vmul.bf16 %v3477, %v3477
      %v3574 = vmul.bf16 %v3478, %v3478
      %v3575 = vmul.bf16 %v3479, %v3479
      %v3576 = vmul.bf16 %v3480, %v3480
      %v3577 = vmul.bf16 %v3481, %v3481
      %v3578 = vmul.bf16 %v3482, %v3482
      %v3579 = vmul.bf16 %v3483, %v3483
      %v3580 = vmul.bf16 %v3484, %v3484
      %v3581 = vmul.bf16 %v3485, %v3485
      %v3582 = vmul.bf16 %v3486, %v3486
      %v3583 = vmul.bf16 %v3487, %v3487
      %v3584 = vmul.bf16 %v3488, %v3488
      %v3585 = vmul.bf16 %v3489, %v3489
      %v3586 = vmul.bf16 %v3490, %v3490
      %v3587 = vmul.bf16 %v3491, %v3491
      %v3588 = vmul.bf16 %v3492, %v3492
      %v3589 = vmul.bf16 %v3493, %v3493
      %v3590 = vmul.bf16 %v3494, %v3494
      %v3591 = vmul.bf16 %v3495, %v3495
      %v3592 = vmul.bf16 %v3496, %v3496
      %v3593 = vmul.bf16 %v3497, %v3497
      %v3594 = vmul.bf16 %v3498, %v3498
      %v3595 = vmul.bf16 %v3499, %v3499
      %v3596 = vmul.bf16 %v3500, %v3500
      %v3597 = vmul.bf16 %v3501, %v3501
      %v3598 = vmul.bf16 %v3502, %v3502
      %v3599 = vmul.bf16 %v3503, %v3503
      %v3600 = vmul.bf16 %v3504, %v3504
      %v3601 = vmul.bf16 %v3505, %v3505
      %v3602 = vmul.bf16 %v3506, %v3506
      %v3603 = vmul.bf16 %v3507, %v3507
      %v3604 = vmul.bf16 %v3508, %v3508
      %v3605 = vmul.bf16 %v3509, %v3509
      %v3606 = vmul.bf16 %v3510, %v3510
      %v3607 = vmul.bf16 %v3511, %v3511
      %v3608 = vmul.bf16 %v3512, %v3512
      %v3609 = vmul.bf16 %v3513, %v3513
      %v3610 = vmul.bf16 %v3514, %v3514
      %v3611 = vmul.bf16 %v3515, %v3515
      %v3612 = vmul.bf16 %v3516, %v3516
      %v3613 = vmul.bf16 %v3517, %v3517
      %v3614 = vmul.bf16 %v3518, %v3518
      %v3615 = vmul.bf16 %v3519, %v3519
      %v3616 = vmul.bf16 %v3520, %v3520
      %v3617 = vmul.bf16 %v3521, %v3521
      %v3618 = vmul.bf16 %v3522, %v3522
      %v3619 = vmul.bf16 %v3523, %v3523
      %v3620 = vmul.bf16 %v3524, %v3524
      %v3621 = vmul.bf16 %v3525, %v3525
      %v3622 = vmul.bf16 %v3526, %v3526
      %v3623 = vmul.bf16 %v3527, %v3527
      %v3624 = vmul.bf16 %v3528, %v3528
      %v3625 = vmul.bf16 %v3529, %v3529
      %v3626 = vmul.bf16 %v3530, %v3530
      %v3627 = vmul.bf16 %v3531, %v3531
      %v3628 = vmul.bf16 %v3532, %v3532
      %v3629 = vmul.bf16 %v3533, %v3533
      %v3630 = vmul.bf16 %v3534, %v3534
      %v3631 = vmul.bf16 %v3535, %v3535
      %v3632 = vmul.bf16 %v3536, %v3536
      %v3633 = vmul.bf16 %v3537, %v3537
      %v3634 = vmul.bf16 %v3442, %v3538
      %v3635 = vmul.bf16 %v3443, %v3539
      %v3636 = vmul.bf16 %v3444, %v3540
      %v3637 = vmul.bf16 %v3445, %v3541
      %v3638 = vmul.bf16 %v3446, %v3542
      %v3639 = vmul.bf16 %v3447, %v3543
      %v3640 = vmul.bf16 %v3448, %v3544
      %v3641 = vmul.bf16 %v3449, %v3545
      %v3642 = vmul.bf16 %v3450, %v3546
      %v3643 = vmul.bf16 %v3451, %v3547
      %v3644 = vmul.bf16 %v3452, %v3548
      %v3645 = vmul.bf16 %v3453, %v3549
      %v3646 = vmul.bf16 %v3454, %v3550
      %v3647 = vmul.bf16 %v3455, %v3551
      %v3648 = vmul.bf16 %v3456, %v3552
      %v3649 = vmul.bf16 %v3457, %v3553
      %v3650 = vmul.bf16 %v3458, %v3554
      %v3651 = vmul.bf16 %v3459, %v3555
      %v3652 = vmul.bf16 %v3460, %v3556
      %v3653 = vmul.bf16 %v3461, %v3557
      %v3654 = vmul.bf16 %v3462, %v3558
      %v3655 = vmul.bf16 %v3463, %v3559
      %v3656 = vmul.bf16 %v3464, %v3560
      %v3657 = vmul.bf16 %v3465, %v3561
      %v3658 = vmul.bf16 %v3466, %v3562
      %v3659 = vmul.bf16 %v3467, %v3563
      %v3660 = vmul.bf16 %v3468, %v3564
      %v3661 = vmul.bf16 %v3469, %v3565
      %v3662 = vmul.bf16 %v3470, %v3566
      %v3663 = vmul.bf16 %v3471, %v3567
      %v3664 = vmul.bf16 %v3472, %v3568
      %v3665 = vmul.bf16 %v3473, %v3569
      %v3666 = vmul.bf16 %v3474, %v3570
      %v3667 = vmul.bf16 %v3475, %v3571
      %v3668 = vmul.bf16 %v3476, %v3572
      %v3669 = vmul.bf16 %v3477, %v3573
      %v3670 = vmul.bf16 %v3478, %v3574
      %v3671 = vmul.bf16 %v3479, %v3575
      %v3672 = vmul.bf16 %v3480, %v3576
      %v3673 = vmul.bf16 %v3481, %v3577
      %v3674 = vmul.bf16 %v3482, %v3578
      %v3675 = vmul.bf16 %v3483, %v3579
      %v3676 = vmul.bf16 %v3484, %v3580
      %v3677 = vmul.bf16 %v3485, %v3581
      %v3678 = vmul.bf16 %v3486, %v3582
      %v3679 = vmul.bf16 %v3487, %v3583
      %v3680 = vmul.bf16 %v3488, %v3584
      %v3681 = vmul.bf16 %v3489, %v3585
      %v3682 = vmul.bf16 %v3490, %v3586
      %v3683 = vmul.bf16 %v3491, %v3587
      %v3684 = vmul.bf16 %v3492, %v3588
      %v3685 = vmul.bf16 %v3493, %v3589
      %v3686 = vmul.bf16 %v3494, %v3590
      %v3687 = vmul.bf16 %v3495, %v3591
      %v3688 = vmul.bf16 %v3496, %v3592
      %v3689 = vmul.bf16 %v3497, %v3593
      %v3690 = vmul.bf16 %v3498, %v3594
      %v3691 = vmul.bf16 %v3499, %v3595
      %v3692 = vmul.bf16 %v3500, %v3596
      %v3693 = vmul.bf16 %v3501, %v3597
      %v3694 = vmul.bf16 %v3502, %v3598
      %v3695 = vmul.bf16 %v3503, %v3599
      %v3696 = vmul.bf16 %v3504, %v3600
      %v3697 = vmul.bf16 %v3505, %v3601
      %v3698 = vmul.bf16 %v3506, %v3602
      %v3699 = vmul.bf16 %v3507, %v3603
      %v3700 = vmul.bf16 %v3508, %v3604
      %v3701 = vmul.bf16 %v3509, %v3605
      %v3702 = vmul.bf16 %v3510, %v3606
      %v3703 = vmul.bf16 %v3511, %v3607
      %v3704 = vmul.bf16 %v3512, %v3608
      %v3705 = vmul.bf16 %v3513, %v3609
      %v3706 = vmul.bf16 %v3514, %v3610
      %v3707 = vmul.bf16 %v3515, %v3611
      %v3708 = vmul.bf16 %v3516, %v3612
      %v3709 = vmul.bf16 %v3517, %v3613
      %v3710 = vmul.bf16 %v3518, %v3614
      %v3711 = vmul.bf16 %v3519, %v3615
      %v3712 = vmul.bf16 %v3520, %v3616
      %v3713 = vmul.bf16 %v3521, %v3617
      %v3714 = vmul.bf16 %v3522, %v3618
      %v3715 = vmul.bf16 %v3523, %v3619
      %v3716 = vmul.bf16 %v3524, %v3620
      %v3717 = vmul.bf16 %v3525, %v3621
      %v3718 = vmul.bf16 %v3526, %v3622
      %v3719 = vmul.bf16 %v3527, %v3623
      %v3720 = vmul.bf16 %v3528, %v3624
      %v3721 = vmul.bf16 %v3529, %v3625
      %v3722 = vmul.bf16 %v3530, %v3626
      %v3723 = vmul.bf16 %v3531, %v3627
      %v3724 = vmul.bf16 %v3532, %v3628
      %v3725 = vmul.bf16 %v3533, %v3629
      %v3726 = vmul.bf16 %v3534, %v3630
      %v3727 = vmul.bf16 %v3535, %v3631
      %v3728 = vmul.bf16 %v3536, %v3632
      %v3729 = vmul.bf16 %v3537, %v3633
      %v3730 = vmul.bf16 %v3634, 1027030327
      %v3731 = vmul.bf16 %v3635, 1027030327
      %v3732 = vmul.bf16 %v3636, 1027030327
      %v3733 = vmul.bf16 %v3637, 1027030327
      %v3734 = vmul.bf16 %v3638, 1027030327
      %v3735 = vmul.bf16 %v3639, 1027030327
      %v3736 = vmul.bf16 %v3640, 1027030327
      %v3737 = vmul.bf16 %v3641, 1027030327
      %v3738 = vmul.bf16 %v3642, 1027030327
      %v3739 = vmul.bf16 %v3643, 1027030327
      %v3740 = vmul.bf16 %v3644, 1027030327
      %v3741 = vmul.bf16 %v3645, 1027030327
      %v3742 = vmul.bf16 %v3646, 1027030327
      %v3743 = vmul.bf16 %v3647, 1027030327
      %v3744 = vmul.bf16 %v3648, 1027030327
      %v3745 = vmul.bf16 %v3649, 1027030327
      %v3746 = vmul.bf16 %v3650, 1027030327
      %v3747 = vmul.bf16 %v3651, 1027030327
      %v3748 = vmul.bf16 %v3652, 1027030327
      %v3749 = vmul.bf16 %v3653, 1027030327
      %v3750 = vmul.bf16 %v3654, 1027030327
      %v3751 = vmul.bf16 %v3655, 1027030327
      %v3752 = vmul.bf16 %v3656, 1027030327
      %v3753 = vmul.bf16 %v3657, 1027030327
      %v3754 = vmul.bf16 %v3658, 1027030327
      %v3755 = vmul.bf16 %v3659, 1027030327
      %v3756 = vmul.bf16 %v3660, 1027030327
      %v3757 = vmul.bf16 %v3661, 1027030327
      %v3758 = vmul.bf16 %v3662, 1027030327
      %v3759 = vmul.bf16 %v3663, 1027030327
      %v3760 = vmul.bf16 %v3664, 1027030327
      %v3761 = vmul.bf16 %v3665, 1027030327
      %v3762 = vmul.bf16 %v3666, 1027030327
      %v3763 = vmul.bf16 %v3667, 1027030327
      %v3764 = vmul.bf16 %v3668, 1027030327
      %v3765 = vmul.bf16 %v3669, 1027030327
      %v3766 = vmul.bf16 %v3670, 1027030327
      %v3767 = vmul.bf16 %v3671, 1027030327
      %v3768 = vmul.bf16 %v3672, 1027030327
      %v3769 = vmul.bf16 %v3673, 1027030327
      %v3770 = vmul.bf16 %v3674, 1027030327
      %v3771 = vmul.bf16 %v3675, 1027030327
      %v3772 = vmul.bf16 %v3676, 1027030327
      %v3773 = vmul.bf16 %v3677, 1027030327
      %v3774 = vmul.bf16 %v3678, 1027030327
      %v3775 = vmul.bf16 %v3679, 1027030327
      %v3776 = vmul.bf16 %v3680, 1027030327
      %v3777 = vmul.bf16 %v3681, 1027030327
      %v3778 = vmul.bf16 %v3682, 1027030327
      %v3779 = vmul.bf16 %v3683, 1027030327
      %v3780 = vmul.bf16 %v3684, 1027030327
      %v3781 = vmul.bf16 %v3685, 1027030327
      %v3782 = vmul.bf16 %v3686, 1027030327
      %v3783 = vmul.bf16 %v3687, 1027030327
      %v3784 = vmul.bf16 %v3688, 1027030327
      %v3785 = vmul.bf16 %v3689, 1027030327
      %v3786 = vmul.bf16 %v3690, 1027030327
      %v3787 = vmul.bf16 %v3691, 1027030327
      %v3788 = vmul.bf16 %v3692, 1027030327
      %v3789 = vmul.bf16 %v3693, 1027030327
      %v3790 = vmul.bf16 %v3694, 1027030327
      %v3791 = vmul.bf16 %v3695, 1027030327
      %v3792 = vmul.bf16 %v3696, 1027030327
      %v3793 = vmul.bf16 %v3697, 1027030327
      %v3794 = vmul.bf16 %v3698, 1027030327
      %v3795 = vmul.bf16 %v3699, 1027030327
      %v3796 = vmul.bf16 %v3700, 1027030327
      %v3797 = vmul.bf16 %v3701, 1027030327
      %v3798 = vmul.bf16 %v3702, 1027030327
      %v3799 = vmul.bf16 %v3703, 1027030327
      %v3800 = vmul.bf16 %v3704, 1027030327
      %v3801 = vmul.bf16 %v3705, 1027030327
      %v3802 = vmul.bf16 %v3706, 1027030327
      %v3803 = vmul.bf16 %v3707, 1027030327
      %v3804 = vmul.bf16 %v3708, 1027030327
      %v3805 = vmul.bf16 %v3709, 1027030327
      %v3806 = vmul.bf16 %v3710, 1027030327
      %v3807 = vmul.bf16 %v3711, 1027030327
      %v3808 = vmul.bf16 %v3712, 1027030327
      %v3809 = vmul.bf16 %v3713, 1027030327
      %v3810 = vmul.bf16 %v3714, 1027030327
      %v3811 = vmul.bf16 %v3715, 1027030327
      %v3812 = vmul.bf16 %v3716, 1027030327
      %v3813 = vmul.bf16 %v3717, 1027030327
      %v3814 = vmul.bf16 %v3718, 1027030327
      %v3815 = vmul.bf16 %v3719, 1027030327
      %v3816 = vmul.bf16 %v3720, 1027030327
      %v3817 = vmul.bf16 %v3721, 1027030327
      %v3818 = vmul.bf16 %v3722, 1027030327
      %v3819 = vmul.bf16 %v3723, 1027030327
      %v3820 = vmul.bf16 %v3724, 1027030327
      %v3821 = vmul.bf16 %v3725, 1027030327
      %v3822 = vmul.bf16 %v3726, 1027030327
      %v3823 = vmul.bf16 %v3727, 1027030327
      %v3824 = vmul.bf16 %v3728, 1027030327
      %v3825 = vmul.bf16 %v3729, 1027030327
      %v3826 = vadd.bf16 %v3442, %v3730
      %v3827 = vadd.bf16 %v3443, %v3731
      %v3828 = vadd.bf16 %v3444, %v3732
      %v3829 = vadd.bf16 %v3445, %v3733
      %v3830 = vadd.bf16 %v3446, %v3734
      %v3831 = vadd.bf16 %v3447, %v3735
      %v3832 = vadd.bf16 %v3448, %v3736
      %v3833 = vadd.bf16 %v3449, %v3737
      %v3834 = vadd.bf16 %v3450, %v3738
      %v3835 = vadd.bf16 %v3451, %v3739
      %v3836 = vadd.bf16 %v3452, %v3740
      %v3837 = vadd.bf16 %v3453, %v3741
      %v3838 = vadd.bf16 %v3454, %v3742
      %v3839 = vadd.bf16 %v3455, %v3743
      %v3840 = vadd.bf16 %v3456, %v3744
      %v3841 = vadd.bf16 %v3457, %v3745
      %v3842 = vadd.bf16 %v3458, %v3746
      %v3843 = vadd.bf16 %v3459, %v3747
      %v3844 = vadd.bf16 %v3460, %v3748
      %v3845 = vadd.bf16 %v3461, %v3749
      %v3846 = vadd.bf16 %v3462, %v3750
      %v3847 = vadd.bf16 %v3463, %v3751
      %v3848 = vadd.bf16 %v3464, %v3752
      %v3849 = vadd.bf16 %v3465, %v3753
      %v3850 = vadd.bf16 %v3466, %v3754
      %v3851 = vadd.bf16 %v3467, %v3755
      %v3852 = vadd.bf16 %v3468, %v3756
      %v3853 = vadd.bf16 %v3469, %v3757
      %v3854 = vadd.bf16 %v3470, %v3758
      %v3855 = vadd.bf16 %v3471, %v3759
      %v3856 = vadd.bf16 %v3472, %v3760
      %v3857 = vadd.bf16 %v3473, %v3761
      %v3858 = vadd.bf16 %v3474, %v3762
      %v3859 = vadd.bf16 %v3475, %v3763
      %v3860 = vadd.bf16 %v3476, %v3764
      %v3861 = vadd.bf16 %v3477, %v3765
      %v3862 = vadd.bf16 %v3478, %v3766
      %v3863 = vadd.bf16 %v3479, %v3767
      %v3864 = vadd.bf16 %v3480, %v3768
      %v3865 = vadd.bf16 %v3481, %v3769
      %v3866 = vadd.bf16 %v3482, %v3770
      %v3867 = vadd.bf16 %v3483, %v3771
      %v3868 = vadd.bf16 %v3484, %v3772
      %v3869 = vadd.bf16 %v3485, %v3773
      %v3870 = vadd.bf16 %v3486, %v3774
      %v3871 = vadd.bf16 %v3487, %v3775
      %v3872 = vadd.bf16 %v3488, %v3776
      %v3873 = vadd.bf16 %v3489, %v3777
      %v3874 = vadd.bf16 %v3490, %v3778
      %v3875 = vadd.bf16 %v3491, %v3779
      %v3876 = vadd.bf16 %v3492, %v3780
      %v3877 = vadd.bf16 %v3493, %v3781
      %v3878 = vadd.bf16 %v3494, %v3782
      %v3879 = vadd.bf16 %v3495, %v3783
      %v3880 = vadd.bf16 %v3496, %v3784
      %v3881 = vadd.bf16 %v3497, %v3785
      %v3882 = vadd.bf16 %v3498, %v3786
      %v3883 = vadd.bf16 %v3499, %v3787
      %v3884 = vadd.bf16 %v3500, %v3788
      %v3885 = vadd.bf16 %v3501, %v3789
      %v3886 = vadd.bf16 %v3502, %v3790
      %v3887 = vadd.bf16 %v3503, %v3791
      %v3888 = vadd.bf16 %v3504, %v3792
      %v3889 = vadd.bf16 %v3505, %v3793
      %v3890 = vadd.bf16 %v3506, %v3794
      %v3891 = vadd.bf16 %v3507, %v3795
      %v3892 = vadd.bf16 %v3508, %v3796
      %v3893 = vadd.bf16 %v3509, %v3797
      %v3894 = vadd.bf16 %v3510, %v3798
      %v3895 = vadd.bf16 %v3511, %v3799
      %v3896 = vadd.bf16 %v3512, %v3800
      %v3897 = vadd.bf16 %v3513, %v3801
      %v3898 = vadd.bf16 %v3514, %v3802
      %v3899 = vadd.bf16 %v3515, %v3803
      %v3900 = vadd.bf16 %v3516, %v3804
      %v3901 = vadd.bf16 %v3517, %v3805
      %v3902 = vadd.bf16 %v3518, %v3806
      %v3903 = vadd.bf16 %v3519, %v3807
      %v3904 = vadd.bf16 %v3520, %v3808
      %v3905 = vadd.bf16 %v3521, %v3809
      %v3906 = vadd.bf16 %v3522, %v3810
      %v3907 = vadd.bf16 %v3523, %v3811
      %v3908 = vadd.bf16 %v3524, %v3812
      %v3909 = vadd.bf16 %v3525, %v3813
      %v3910 = vadd.bf16 %v3526, %v3814
      %v3911 = vadd.bf16 %v3527, %v3815
      %v3912 = vadd.bf16 %v3528, %v3816
      %v3913 = vadd.bf16 %v3529, %v3817
      %v3914 = vadd.bf16 %v3530, %v3818
      %v3915 = vadd.bf16 %v3531, %v3819
      %v3916 = vadd.bf16 %v3532, %v3820
      %v3917 = vadd.bf16 %v3533, %v3821
      %v3918 = vadd.bf16 %v3534, %v3822
      %v3919 = vadd.bf16 %v3535, %v3823
      %v3920 = vadd.bf16 %v3536, %v3824
      %v3921 = vadd.bf16 %v3537, %v3825
      %v3922 = vmul.bf16 %v3826, 1061961548
      %v3923 = vmul.bf16 %v3827, 1061961548
      %v3924 = vmul.bf16 %v3828, 1061961548
      %v3925 = vmul.bf16 %v3829, 1061961548
      %v3926 = vmul.bf16 %v3830, 1061961548
      %v3927 = vmul.bf16 %v3831, 1061961548
      %v3928 = vmul.bf16 %v3832, 1061961548
      %v3929 = vmul.bf16 %v3833, 1061961548
      %v3930 = vmul.bf16 %v3834, 1061961548
      %v3931 = vmul.bf16 %v3835, 1061961548
      %v3932 = vmul.bf16 %v3836, 1061961548
      %v3933 = vmul.bf16 %v3837, 1061961548
      %v3934 = vmul.bf16 %v3838, 1061961548
      %v3935 = vmul.bf16 %v3839, 1061961548
      %v3936 = vmul.bf16 %v3840, 1061961548
      %v3937 = vmul.bf16 %v3841, 1061961548
      %v3938 = vmul.bf16 %v3842, 1061961548
      %v3939 = vmul.bf16 %v3843, 1061961548
      %v3940 = vmul.bf16 %v3844, 1061961548
      %v3941 = vmul.bf16 %v3845, 1061961548
      %v3942 = vmul.bf16 %v3846, 1061961548
      %v3943 = vmul.bf16 %v3847, 1061961548
      %v3944 = vmul.bf16 %v3848, 1061961548
      %v3945 = vmul.bf16 %v3849, 1061961548
      %v3946 = vmul.bf16 %v3850, 1061961548
      %v3947 = vmul.bf16 %v3851, 1061961548
      %v3948 = vmul.bf16 %v3852, 1061961548
      %v3949 = vmul.bf16 %v3853, 1061961548
      %v3950 = vmul.bf16 %v3854, 1061961548
      %v3951 = vmul.bf16 %v3855, 1061961548
      %v3952 = vmul.bf16 %v3856, 1061961548
      %v3953 = vmul.bf16 %v3857, 1061961548
      %v3954 = vmul.bf16 %v3858, 1061961548
      %v3955 = vmul.bf16 %v3859, 1061961548
      %v3956 = vmul.bf16 %v3860, 1061961548
      %v3957 = vmul.bf16 %v3861, 1061961548
      %v3958 = vmul.bf16 %v3862, 1061961548
      %v3959 = vmul.bf16 %v3863, 1061961548
      %v3960 = vmul.bf16 %v3864, 1061961548
      %v3961 = vmul.bf16 %v3865, 1061961548
      %v3962 = vmul.bf16 %v3866, 1061961548
      %v3963 = vmul.bf16 %v3867, 1061961548
      %v3964 = vmul.bf16 %v3868, 1061961548
      %v3965 = vmul.bf16 %v3869, 1061961548
      %v3966 = vmul.bf16 %v3870, 1061961548
      %v3967 = vmul.bf16 %v3871, 1061961548
      %v3968 = vmul.bf16 %v3872, 1061961548
      %v3969 = vmul.bf16 %v3873, 1061961548
      %v3970 = vmul.bf16 %v3874, 1061961548
      %v3971 = vmul.bf16 %v3875, 1061961548
      %v3972 = vmul.bf16 %v3876, 1061961548
      %v3973 = vmul.bf16 %v3877, 1061961548
      %v3974 = vmul.bf16 %v3878, 1061961548
      %v3975 = vmul.bf16 %v3879, 1061961548
      %v3976 = vmul.bf16 %v3880, 1061961548
      %v3977 = vmul.bf16 %v3881, 1061961548
      %v3978 = vmul.bf16 %v3882, 1061961548
      %v3979 = vmul.bf16 %v3883, 1061961548
      %v3980 = vmul.bf16 %v3884, 1061961548
      %v3981 = vmul.bf16 %v3885, 1061961548
      %v3982 = vmul.bf16 %v3886, 1061961548
      %v3983 = vmul.bf16 %v3887, 1061961548
      %v3984 = vmul.bf16 %v3888, 1061961548
      %v3985 = vmul.bf16 %v3889, 1061961548
      %v3986 = vmul.bf16 %v3890, 1061961548
      %v3987 = vmul.bf16 %v3891, 1061961548
      %v3988 = vmul.bf16 %v3892, 1061961548
      %v3989 = vmul.bf16 %v3893, 1061961548
      %v3990 = vmul.bf16 %v3894, 1061961548
      %v3991 = vmul.bf16 %v3895, 1061961548
      %v3992 = vmul.bf16 %v3896, 1061961548
      %v3993 = vmul.bf16 %v3897, 1061961548
      %v3994 = vmul.bf16 %v3898, 1061961548
      %v3995 = vmul.bf16 %v3899, 1061961548
      %v3996 = vmul.bf16 %v3900, 1061961548
      %v3997 = vmul.bf16 %v3901, 1061961548
      %v3998 = vmul.bf16 %v3902, 1061961548
      %v3999 = vmul.bf16 %v3903, 1061961548
      %v4000 = vmul.bf16 %v3904, 1061961548
      %v4001 = vmul.bf16 %v3905, 1061961548
      %v4002 = vmul.bf16 %v3906, 1061961548
      %v4003 = vmul.bf16 %v3907, 1061961548
      %v4004 = vmul.bf16 %v3908, 1061961548
      %v4005 = vmul.bf16 %v3909, 1061961548
      %v4006 = vmul.bf16 %v3910, 1061961548
      %v4007 = vmul.bf16 %v3911, 1061961548
      %v4008 = vmul.bf16 %v3912, 1061961548
      %v4009 = vmul.bf16 %v3913, 1061961548
      %v4010 = vmul.bf16 %v3914, 1061961548
      %v4011 = vmul.bf16 %v3915, 1061961548
      %v4012 = vmul.bf16 %v3916, 1061961548
      %v4013 = vmul.bf16 %v3917, 1061961548
      %v4014 = vmul.bf16 %v3918, 1061961548
      %v4015 = vmul.bf16 %v3919, 1061961548
      %v4016 = vmul.bf16 %v3920, 1061961548
      %v4017 = vmul.bf16 %v3921, 1061961548
      %v4018 = vtanh.bf16.pop %v3922
      %v4019 = vtanh.bf16.pop %v3923
      %v4020 = vtanh.bf16.pop %v3924
      %v4021 = vtanh.bf16.pop %v3925
      %v4022 = vtanh.bf16.pop %v3926
      %v4023 = vtanh.bf16.pop %v3927
      %v4024 = vtanh.bf16.pop %v3928
      %v4025 = vtanh.bf16.pop %v3929
      %v4026 = vtanh.bf16.pop %v3930
      %v4027 = vtanh.bf16.pop %v3931
      %v4028 = vtanh.bf16.pop %v3932
      %v4029 = vtanh.bf16.pop %v3933
      %v4030 = vtanh.bf16.pop %v3934
      %v4031 = vtanh.bf16.pop %v3935
      %v4032 = vtanh.bf16.pop %v3936
      %v4033 = vtanh.bf16.pop %v3937
      %v4034 = vtanh.bf16.pop %v3938
      %v4035 = vtanh.bf16.pop %v3939
      %v4036 = vtanh.bf16.pop %v3940
      %v4037 = vtanh.bf16.pop %v3941
      %v4038 = vtanh.bf16.pop %v3942
      %v4039 = vtanh.bf16.pop %v3943
      %v4040 = vtanh.bf16.pop %v3944
      %v4041 = vtanh.bf16.pop %v3945
      %v4042 = vtanh.bf16.pop %v3946
      %v4043 = vtanh.bf16.pop %v3947
      %v4044 = vtanh.bf16.pop %v3948
      %v4045 = vtanh.bf16.pop %v3949
      %v4046 = vtanh.bf16.pop %v3950
      %v4047 = vtanh.bf16.pop %v3951
      %v4048 = vtanh.bf16.pop %v3952
      %v4049 = vtanh.bf16.pop %v3953
      %v4050 = vtanh.bf16.pop %v3954
      %v4051 = vtanh.bf16.pop %v3955
      %v4052 = vtanh.bf16.pop %v3956
      %v4053 = vtanh.bf16.pop %v3957
      %v4054 = vtanh.bf16.pop %v3958
      %v4055 = vtanh.bf16.pop %v3959
      %v4056 = vtanh.bf16.pop %v3960
      %v4057 = vtanh.bf16.pop %v3961
      %v4058 = vtanh.bf16.pop %v3962
      %v4059 = vtanh.bf16.pop %v3963
      %v4060 = vtanh.bf16.pop %v3964
      %v4061 = vtanh.bf16.pop %v3965
      %v4062 = vtanh.bf16.pop %v3966
      %v4063 = vtanh.bf16.pop %v3967
      %v4064 = vtanh.bf16.pop %v3968
      %v4065 = vtanh.bf16.pop %v3969
      %v4066 = vtanh.bf16.pop %v3970
      %v4067 = vtanh.bf16.pop %v3971
      %v4068 = vtanh.bf16.pop %v3972
      %v4069 = vtanh.bf16.pop %v3973
      %v4070 = vtanh.bf16.pop %v3974
      %v4071 = vtanh.bf16.pop %v3975
      %v4072 = vtanh.bf16.pop %v3976
      %v4073 = vtanh.bf16.pop %v3977
      %v4074 = vtanh.bf16.pop %v3978
      %v4075 = vtanh.bf16.pop %v3979
      %v4076 = vtanh.bf16.pop %v3980
      %v4077 = vtanh.bf16.pop %v3981
      %v4078 = vtanh.bf16.pop %v3982
      %v4079 = vtanh.bf16.pop %v3983
      %v4080 = vtanh.bf16.pop %v3984
      %v4081 = vtanh.bf16.pop %v3985
      %v4082 = vtanh.bf16.pop %v3986
      %v4083 = vtanh.bf16.pop %v3987
      %v4084 = vtanh.bf16.pop %v3988
      %v4085 = vtanh.bf16.pop %v3989
      %v4086 = vtanh.bf16.pop %v3990
      %v4087 = vtanh.bf16.pop %v3991
      %v4088 = vtanh.bf16.pop %v3992
      %v4089 = vtanh.bf16.pop %v3993
      %v4090 = vtanh.bf16.pop %v3994
      %v4091 = vtanh.bf16.pop %v3995
      %v4092 = vtanh.bf16.pop %v3996
      %v4093 = vtanh.bf16.pop %v3997
      %v4094 = vtanh.bf16.pop %v3998
      %v4095 = vtanh.bf16.pop %v3999
      %v4096 = vtanh.bf16.pop %v4000
      %v4097 = vtanh.bf16.pop %v4001
      %v4098 = vtanh.bf16.pop %v4002
      %v4099 = vtanh.bf16.pop %v4003
      %v4100 = vtanh.bf16.pop %v4004
      %v4101 = vtanh.bf16.pop %v4005
      %v4102 = vtanh.bf16.pop %v4006
      %v4103 = vtanh.bf16.pop %v4007
      %v4104 = vtanh.bf16.pop %v4008
      %v4105 = vtanh.bf16.pop %v4009
      %v4106 = vtanh.bf16.pop %v4010
      %v4107 = vtanh.bf16.pop %v4011
      %v4108 = vtanh.bf16.pop %v4012
      %v4109 = vtanh.bf16.pop %v4013
      %v4110 = vtanh.bf16.pop %v4014
      %v4111 = vtanh.bf16.pop %v4015
      %v4112 = vtanh.bf16.pop %v4016
      %v4113 = vtanh.bf16.pop %v4017
      %v4114 = vadd.bf16 %v4018, 1065369472
      %v4115 = vadd.bf16 %v4019, 1065369472
      %v4116 = vadd.bf16 %v4020, 1065369472
      %v4117 = vadd.bf16 %v4021, 1065369472
      %v4118 = vadd.bf16 %v4022, 1065369472
      %v4119 = vadd.bf16 %v4023, 1065369472
      %v4120 = vadd.bf16 %v4024, 1065369472
      %v4121 = vadd.bf16 %v4025, 1065369472
      %v4122 = vadd.bf16 %v4026, 1065369472
      %v4123 = vadd.bf16 %v4027, 1065369472
      %v4124 = vadd.bf16 %v4028, 1065369472
      %v4125 = vadd.bf16 %v4029, 1065369472
      %v4126 = vadd.bf16 %v4030, 1065369472
      %v4127 = vadd.bf16 %v4031, 1065369472
      %v4128 = vadd.bf16 %v4032, 1065369472
      %v4129 = vadd.bf16 %v4033, 1065369472
      %v4130 = vadd.bf16 %v4034, 1065369472
      %v4131 = vadd.bf16 %v4035, 1065369472
      %v4132 = vadd.bf16 %v4036, 1065369472
      %v4133 = vadd.bf16 %v4037, 1065369472
      %v4134 = vadd.bf16 %v4038, 1065369472
      %v4135 = vadd.bf16 %v4039, 1065369472
      %v4136 = vadd.bf16 %v4040, 1065369472
      %v4137 = vadd.bf16 %v4041, 1065369472
      %v4138 = vadd.bf16 %v4042, 1065369472
      %v4139 = vadd.bf16 %v4043, 1065369472
      %v4140 = vadd.bf16 %v4044, 1065369472
      %v4141 = vadd.bf16 %v4045, 1065369472
      %v4142 = vadd.bf16 %v4046, 1065369472
      %v4143 = vadd.bf16 %v4047, 1065369472
      %v4144 = vadd.bf16 %v4048, 1065369472
      %v4145 = vadd.bf16 %v4049, 1065369472
      %v4146 = vadd.bf16 %v4050, 1065369472
      %v4147 = vadd.bf16 %v4051, 1065369472
      %v4148 = vadd.bf16 %v4052, 1065369472
      %v4149 = vadd.bf16 %v4053, 1065369472
      %v4150 = vadd.bf16 %v4054, 1065369472
      %v4151 = vadd.bf16 %v4055, 1065369472
      %v4152 = vadd.bf16 %v4056, 1065369472
      %v4153 = vadd.bf16 %v4057, 1065369472
      %v4154 = vadd.bf16 %v4058, 1065369472
      %v4155 = vadd.bf16 %v4059, 1065369472
      %v4156 = vadd.bf16 %v4060, 1065369472
      %v4157 = vadd.bf16 %v4061, 1065369472
      %v4158 = vadd.bf16 %v4062, 1065369472
      %v4159 = vadd.bf16 %v4063, 1065369472
      %v4160 = vadd.bf16 %v4064, 1065369472
      %v4161 = vadd.bf16 %v4065, 1065369472
      %v4162 = vadd.bf16 %v4066, 1065369472
      %v4163 = vadd.bf16 %v4067, 1065369472
      %v4164 = vadd.bf16 %v4068, 1065369472
      %v4165 = vadd.bf16 %v4069, 1065369472
      %v4166 = vadd.bf16 %v4070, 1065369472
      %v4167 = vadd.bf16 %v4071, 1065369472
      %v4168 = vadd.bf16 %v4072, 1065369472
      %v4169 = vadd.bf16 %v4073, 1065369472
      %v4170 = vadd.bf16 %v4074, 1065369472
      %v4171 = vadd.bf16 %v4075, 1065369472
      %v4172 = vadd.bf16 %v4076, 1065369472
      %v4173 = vadd.bf16 %v4077, 1065369472
      %v4174 = vadd.bf16 %v4078, 1065369472
      %v4175 = vadd.bf16 %v4079, 1065369472
      %v4176 = vadd.bf16 %v4080, 1065369472
      %v4177 = vadd.bf16 %v4081, 1065369472
      %v4178 = vadd.bf16 %v4082, 1065369472
      %v4179 = vadd.bf16 %v4083, 1065369472
      %v4180 = vadd.bf16 %v4084, 1065369472
      %v4181 = vadd.bf16 %v4085, 1065369472
      %v4182 = vadd.bf16 %v4086, 1065369472
      %v4183 = vadd.bf16 %v4087, 1065369472
      %v4184 = vadd.bf16 %v4088, 1065369472
      %v4185 = vadd.bf16 %v4089, 1065369472
      %v4186 = vadd.bf16 %v4090, 1065369472
      %v4187 = vadd.bf16 %v4091, 1065369472
      %v4188 = vadd.bf16 %v4092, 1065369472
      %v4189 = vadd.bf16 %v4093, 1065369472
      %v4190 = vadd.bf16 %v4094, 1065369472
      %v4191 = vadd.bf16 %v4095, 1065369472
      %v4192 = vadd.bf16 %v4096, 1065369472
      %v4193 = vadd.bf16 %v4097, 1065369472
      %v4194 = vadd.bf16 %v4098, 1065369472
      %v4195 = vadd.bf16 %v4099, 1065369472
      %v4196 = vadd.bf16 %v4100, 1065369472
      %v4197 = vadd.bf16 %v4101, 1065369472
      %v4198 = vadd.bf16 %v4102, 1065369472
      %v4199 = vadd.bf16 %v4103, 1065369472
      %v4200 = vadd.bf16 %v4104, 1065369472
      %v4201 = vadd.bf16 %v4105, 1065369472
      %v4202 = vadd.bf16 %v4106, 1065369472
      %v4203 = vadd.bf16 %v4107, 1065369472
      %v4204 = vadd.bf16 %v4108, 1065369472
      %v4205 = vadd.bf16 %v4109, 1065369472
      %v4206 = vadd.bf16 %v4110, 1065369472
      %v4207 = vadd.bf16 %v4111, 1065369472
      %v4208 = vadd.bf16 %v4112, 1065369472
      %v4209 = vadd.bf16 %v4113, 1065369472
      %v4210 = vmul.bf16 %v4114, 1056980736
      %v4211 = vmul.bf16 %v4115, 1056980736
      %v4212 = vmul.bf16 %v4116, 1056980736
      %v4213 = vmul.bf16 %v4117, 1056980736
      %v4214 = vmul.bf16 %v4118, 1056980736
      %v4215 = vmul.bf16 %v4119, 1056980736
      %v4216 = vmul.bf16 %v4120, 1056980736
      %v4217 = vmul.bf16 %v4121, 1056980736
      %v4218 = vmul.bf16 %v4122, 1056980736
      %v4219 = vmul.bf16 %v4123, 1056980736
      %v4220 = vmul.bf16 %v4124, 1056980736
      %v4221 = vmul.bf16 %v4125, 1056980736
      %v4222 = vmul.bf16 %v4126, 1056980736
      %v4223 = vmul.bf16 %v4127, 1056980736
      %v4224 = vmul.bf16 %v4128, 1056980736
      %v4225 = vmul.bf16 %v4129, 1056980736
      %v4226 = vmul.bf16 %v4130, 1056980736
      %v4227 = vmul.bf16 %v4131, 1056980736
      %v4228 = vmul.bf16 %v4132, 1056980736
      %v4229 = vmul.bf16 %v4133, 1056980736
      %v4230 = vmul.bf16 %v4134, 1056980736
      %v4231 = vmul.bf16 %v4135, 1056980736
      %v4232 = vmul.bf16 %v4136, 1056980736
      %v4233 = vmul.bf16 %v4137, 1056980736
      %v4234 = vmul.bf16 %v4138, 1056980736
      %v4235 = vmul.bf16 %v4139, 1056980736
      %v4236 = vmul.bf16 %v4140, 1056980736
      %v4237 = vmul.bf16 %v4141, 1056980736
      %v4238 = vmul.bf16 %v4142, 1056980736
      %v4239 = vmul.bf16 %v4143, 1056980736
      %v4240 = vmul.bf16 %v4144, 1056980736
      %v4241 = vmul.bf16 %v4145, 1056980736
      %v4242 = vmul.bf16 %v4146, 1056980736
      %v4243 = vmul.bf16 %v4147, 1056980736
      %v4244 = vmul.bf16 %v4148, 1056980736
      %v4245 = vmul.bf16 %v4149, 1056980736
      %v4246 = vmul.bf16 %v4150, 1056980736
      %v4247 = vmul.bf16 %v4151, 1056980736
      %v4248 = vmul.bf16 %v4152, 1056980736
      %v4249 = vmul.bf16 %v4153, 1056980736
      %v4250 = vmul.bf16 %v4154, 1056980736
      %v4251 = vmul.bf16 %v4155, 1056980736
      %v4252 = vmul.bf16 %v4156, 1056980736
      %v4253 = vmul.bf16 %v4157, 1056980736
      %v4254 = vmul.bf16 %v4158, 1056980736
      %v4255 = vmul.bf16 %v4159, 1056980736
      %v4256 = vmul.bf16 %v4160, 1056980736
      %v4257 = vmul.bf16 %v4161, 1056980736
      %v4258 = vmul.bf16 %v4162, 1056980736
      %v4259 = vmul.bf16 %v4163, 1056980736
      %v4260 = vmul.bf16 %v4164, 1056980736
      %v4261 = vmul.bf16 %v4165, 1056980736
      %v4262 = vmul.bf16 %v4166, 1056980736
      %v4263 = vmul.bf16 %v4167, 1056980736
      %v4264 = vmul.bf16 %v4168, 1056980736
      %v4265 = vmul.bf16 %v4169, 1056980736
      %v4266 = vmul.bf16 %v4170, 1056980736
      %v4267 = vmul.bf16 %v4171, 1056980736
      %v4268 = vmul.bf16 %v4172, 1056980736
      %v4269 = vmul.bf16 %v4173, 1056980736
      %v4270 = vmul.bf16 %v4174, 1056980736
      %v4271 = vmul.bf16 %v4175, 1056980736
      %v4272 = vmul.bf16 %v4176, 1056980736
      %v4273 = vmul.bf16 %v4177, 1056980736
      %v4274 = vmul.bf16 %v4178, 1056980736
      %v4275 = vmul.bf16 %v4179, 1056980736
      %v4276 = vmul.bf16 %v4180, 1056980736
      %v4277 = vmul.bf16 %v4181, 1056980736
      %v4278 = vmul.bf16 %v4182, 1056980736
      %v4279 = vmul.bf16 %v4183, 1056980736
      %v4280 = vmul.bf16 %v4184, 1056980736
      %v4281 = vmul.bf16 %v4185, 1056980736
      %v4282 = vmul.bf16 %v4186, 1056980736
      %v4283 = vmul.bf16 %v4187, 1056980736
      %v4284 = vmul.bf16 %v4188, 1056980736
      %v4285 = vmul.bf16 %v4189, 1056980736
      %v4286 = vmul.bf16 %v4190, 1056980736
      %v4287 = vmul.bf16 %v4191, 1056980736
      %v4288 = vmul.bf16 %v4192, 1056980736
      %v4289 = vmul.bf16 %v4193, 1056980736
      %v4290 = vmul.bf16 %v4194, 1056980736
      %v4291 = vmul.bf16 %v4195, 1056980736
      %v4292 = vmul.bf16 %v4196, 1056980736
      %v4293 = vmul.bf16 %v4197, 1056980736
      %v4294 = vmul.bf16 %v4198, 1056980736
      %v4295 = vmul.bf16 %v4199, 1056980736
      %v4296 = vmul.bf16 %v4200, 1056980736
      %v4297 = vmul.bf16 %v4201, 1056980736
      %v4298 = vmul.bf16 %v4202, 1056980736
      %v4299 = vmul.bf16 %v4203, 1056980736
      %v4300 = vmul.bf16 %v4204, 1056980736
      %v4301 = vmul.bf16 %v4205, 1056980736
      %v4302 = vmul.bf16 %v4206, 1056980736
      %v4303 = vmul.bf16 %v4207, 1056980736
      %v4304 = vmul.bf16 %v4208, 1056980736
      %v4305 = vmul.bf16 %v4209, 1056980736
      %v4306 = vmul.bf16 %v3442, %v4210
      %v4307 = vmul.bf16 %v3443, %v4211
      %v4308 = vmul.bf16 %v3444, %v4212
      %v4309 = vmul.bf16 %v3445, %v4213
      %v4310 = vmul.bf16 %v3446, %v4214
      %v4311 = vmul.bf16 %v3447, %v4215
      %v4312 = vmul.bf16 %v3448, %v4216
      %v4313 = vmul.bf16 %v3449, %v4217
      %v4314 = vmul.bf16 %v3450, %v4218
      %v4315 = vmul.bf16 %v3451, %v4219
      %v4316 = vmul.bf16 %v3452, %v4220
      %v4317 = vmul.bf16 %v3453, %v4221
      %v4318 = vmul.bf16 %v3454, %v4222
      %v4319 = vmul.bf16 %v3455, %v4223
      %v4320 = vmul.bf16 %v3456, %v4224
      %v4321 = vmul.bf16 %v3457, %v4225
      %v4322 = vmul.bf16 %v3458, %v4226
      %v4323 = vmul.bf16 %v3459, %v4227
      %v4324 = vmul.bf16 %v3460, %v4228
      %v4325 = vmul.bf16 %v3461, %v4229
      %v4326 = vmul.bf16 %v3462, %v4230
      %v4327 = vmul.bf16 %v3463, %v4231
      %v4328 = vmul.bf16 %v3464, %v4232
      %v4329 = vmul.bf16 %v3465, %v4233
      %v4330 = vmul.bf16 %v3466, %v4234
      %v4331 = vmul.bf16 %v3467, %v4235
      %v4332 = vmul.bf16 %v3468, %v4236
      %v4333 = vmul.bf16 %v3469, %v4237
      %v4334 = vmul.bf16 %v3470, %v4238
      %v4335 = vmul.bf16 %v3471, %v4239
      %v4336 = vmul.bf16 %v3472, %v4240
      %v4337 = vmul.bf16 %v3473, %v4241
      %v4338 = vmul.bf16 %v3474, %v4242
      %v4339 = vmul.bf16 %v3475, %v4243
      %v4340 = vmul.bf16 %v3476, %v4244
      %v4341 = vmul.bf16 %v3477, %v4245
      %v4342 = vmul.bf16 %v3478, %v4246
      %v4343 = vmul.bf16 %v3479, %v4247
      %v4344 = vmul.bf16 %v3480, %v4248
      %v4345 = vmul.bf16 %v3481, %v4249
      %v4346 = vmul.bf16 %v3482, %v4250
      %v4347 = vmul.bf16 %v3483, %v4251
      %v4348 = vmul.bf16 %v3484, %v4252
      %v4349 = vmul.bf16 %v3485, %v4253
      %v4350 = vmul.bf16 %v3486, %v4254
      %v4351 = vmul.bf16 %v3487, %v4255
      %v4352 = vmul.bf16 %v3488, %v4256
      %v4353 = vmul.bf16 %v3489, %v4257
      %v4354 = vmul.bf16 %v3490, %v4258
      %v4355 = vmul.bf16 %v3491, %v4259
      %v4356 = vmul.bf16 %v3492, %v4260
      %v4357 = vmul.bf16 %v3493, %v4261
      %v4358 = vmul.bf16 %v3494, %v4262
      %v4359 = vmul.bf16 %v3495, %v4263
      %v4360 = vmul.bf16 %v3496, %v4264
      %v4361 = vmul.bf16 %v3497, %v4265
      %v4362 = vmul.bf16 %v3498, %v4266
      %v4363 = vmul.bf16 %v3499, %v4267
      %v4364 = vmul.bf16 %v3500, %v4268
      %v4365 = vmul.bf16 %v3501, %v4269
      %v4366 = vmul.bf16 %v3502, %v4270
      %v4367 = vmul.bf16 %v3503, %v4271
      %v4368 = vmul.bf16 %v3504, %v4272
      %v4369 = vmul.bf16 %v3505, %v4273
      %v4370 = vmul.bf16 %v3506, %v4274
      %v4371 = vmul.bf16 %v3507, %v4275
      %v4372 = vmul.bf16 %v3508, %v4276
      %v4373 = vmul.bf16 %v3509, %v4277
      %v4374 = vmul.bf16 %v3510, %v4278
      %v4375 = vmul.bf16 %v3511, %v4279
      %v4376 = vmul.bf16 %v3512, %v4280
      %v4377 = vmul.bf16 %v3513, %v4281
      %v4378 = vmul.bf16 %v3514, %v4282
      %v4379 = vmul.bf16 %v3515, %v4283
      %v4380 = vmul.bf16 %v3516, %v4284
      %v4381 = vmul.bf16 %v3517, %v4285
      %v4382 = vmul.bf16 %v3518, %v4286
      %v4383 = vmul.bf16 %v3519, %v4287
      %v4384 = vmul.bf16 %v3520, %v4288
      %v4385 = vmul.bf16 %v3521, %v4289
      %v4386 = vmul.bf16 %v3522, %v4290
      %v4387 = vmul.bf16 %v3523, %v4291
      %v4388 = vmul.bf16 %v3524, %v4292
      %v4389 = vmul.bf16 %v3525, %v4293
      %v4390 = vmul.bf16 %v3526, %v4294
      %v4391 = vmul.bf16 %v3527, %v4295
      %v4392 = vmul.bf16 %v3528, %v4296
      %v4393 = vmul.bf16 %v3529, %v4297
      %v4394 = vmul.bf16 %v3530, %v4298
      %v4395 = vmul.bf16 %v3531, %v4299
      %v4396 = vmul.bf16 %v3532, %v4300
      %v4397 = vmul.bf16 %v3533, %v4301
      %v4398 = vmul.bf16 %v3534, %v4302
      %v4399 = vmul.bf16 %v3535, %v4303
      %v4400 = vmul.bf16 %v3536, %v4304
      %v4401 = vmul.bf16 %v3537, %v4305
      %v4402 = vld [vmem:[%s4] sm:$0xf]
      %v4403 = vld [vmem:[%s4 + $0x4] sm:$0xf]
      %v4404 = vld [vmem:[%s4 + $0x8] sm:$0xf]
      %v4405 = vld [vmem:[%s4 + $0xc] sm:$0xf]
      %v4406 = vld [vmem:[%s4 + $0x10] sm:$0xf]
      %v4407 = vld [vmem:[%s4 + $0x14] sm:$0xf]
      %v4408 = vld [vmem:[%s4 + $0x18] sm:$0xf]
      %v4409 = vld [vmem:[%s4 + $0x1c] sm:$0xf]
      %v4410 = vld [vmem:[%s4 + $0x20] sm:$0xf]
      %v4411 = vld [vmem:[%s4 + $0x24] sm:$0xf]
      %v4412 = vld [vmem:[%s4 + $0x28] sm:$0xf]
      %v4413 = vld [vmem:[%s4 + $0x2c] sm:$0xf]
      %v4414 = vld [vmem:[%s4 + $0x30] sm:$0xf]
      %v4415 = vld [vmem:[%s4 + $0x34] sm:$0xf]
      %v4416 = vld [vmem:[%s4 + $0x38] sm:$0xf]
      %v4417 = vld [vmem:[%s4 + $0x3c] sm:$0xf]
      %v4418 = vld [vmem:[%s4 + $0x40] sm:$0xf]
      %v4419 = vld [vmem:[%s4 + $0x44] sm:$0xf]
      %v4420 = vld [vmem:[%s4 + $0x48] sm:$0xf]
      %v4421 = vld [vmem:[%s4 + $0x4c] sm:$0xf]
      %v4422 = vld [vmem:[%s4 + $0x50] sm:$0xf]
      %v4423 = vld [vmem:[%s4 + $0x54] sm:$0xf]
      %v4424 = vld [vmem:[%s4 + $0x58] sm:$0xf]
      %v4425 = vld [vmem:[%s4 + $0x5c] sm:$0xf]
      %v4426 = vld [vmem:[%s4 + $0x60] sm:$0xf]
      %v4427 = vld [vmem:[%s4 + $0x64] sm:$0xf]
      %v4428 = vld [vmem:[%s4 + $0x68] sm:$0xf]
      %v4429 = vld [vmem:[%s4 + $0x6c] sm:$0xf]
      %v4430 = vld [vmem:[%s4 + $0x70] sm:$0xf]
      %v4431 = vld [vmem:[%s4 + $0x74] sm:$0xf]
      %v4432 = vld [vmem:[%s4 + $0x78] sm:$0xf]
      %v4433 = vld [vmem:[%s4 + $0x7c] sm:$0xf]
      %v4434 = vld [vmem:[%s4 + $0x80] sm:$0xf]
      %v4435 = vld [vmem:[%s4 + $0x84] sm:$0xf]
      %v4436 = vld [vmem:[%s4 + $0x88] sm:$0xf]
      %v4437 = vld [vmem:[%s4 + $0x8c] sm:$0xf]
      %v4438 = vld [vmem:[%s4 + $0x90] sm:$0xf]
      %v4439 = vld [vmem:[%s4 + $0x94] sm:$0xf]
      %v4440 = vld [vmem:[%s4 + $0x98] sm:$0xf]
      %v4441 = vld [vmem:[%s4 + $0x9c] sm:$0xf]
      %v4442 = vld [vmem:[%s4 + $0xa0] sm:$0xf]
      %v4443 = vld [vmem:[%s4 + $0xa4] sm:$0xf]
      %v4444 = vld [vmem:[%s4 + $0xa8] sm:$0xf]
      %v4445 = vld [vmem:[%s4 + $0xac] sm:$0xf]
      %v4446 = vld [vmem:[%s4 + $0xb0] sm:$0xf]
      %v4447 = vld [vmem:[%s4 + $0xb4] sm:$0xf]
      %v4448 = vld [vmem:[%s4 + $0xb8] sm:$0xf]
      %v4449 = vld [vmem:[%s4 + $0xbc] sm:$0xf]
      %v4450 = vlaneseq
      %v4451 = vshrl.u32 %v4450, 7
      %v4452 = vsub.s32 4, %v4451
      %v4453 = vrot.slane %v297, %v4452
      %v4502 = vunpack.c.l.b16 %v4402
      %v4503 = vunpack.c.l.b16 %v4403
      %v4504 = vunpack.c.l.b16 %v4404
      %v4505 = vunpack.c.l.b16 %v4405
      %v4506 = vunpack.c.l.b16 %v4406
      %v4507 = vunpack.c.l.b16 %v4407
      %v4508 = vunpack.c.l.b16 %v4408
      %v4509 = vunpack.c.l.b16 %v4409
      %v4510 = vunpack.c.l.b16 %v4410
      %v4511 = vunpack.c.l.b16 %v4411
      %v4512 = vunpack.c.l.b16 %v4412
      %v4513 = vunpack.c.l.b16 %v4413
      %v4514 = vunpack.c.l.b16 %v4414
      %v4515 = vunpack.c.l.b16 %v4415
      %v4516 = vunpack.c.l.b16 %v4416
      %v4517 = vunpack.c.l.b16 %v4417
      %v4518 = vunpack.c.l.b16 %v4418
      %v4519 = vunpack.c.l.b16 %v4419
      %v4520 = vunpack.c.l.b16 %v4420
      %v4521 = vunpack.c.l.b16 %v4421
      %v4522 = vunpack.c.l.b16 %v4422
      %v4523 = vunpack.c.l.b16 %v4423
      %v4524 = vunpack.c.l.b16 %v4424
      %v4525 = vunpack.c.l.b16 %v4425
      %v4526 = vunpack.c.l.b16 %v4426
      %v4527 = vunpack.c.l.b16 %v4427
      %v4528 = vunpack.c.l.b16 %v4428
      %v4529 = vunpack.c.l.b16 %v4429
      %v4530 = vunpack.c.l.b16 %v4430
      %v4531 = vunpack.c.l.b16 %v4431
      %v4532 = vunpack.c.l.b16 %v4432
      %v4533 = vunpack.c.l.b16 %v4433
      %v4534 = vunpack.c.l.b16 %v4434
      %v4535 = vunpack.c.l.b16 %v4435
      %v4536 = vunpack.c.l.b16 %v4436
      %v4537 = vunpack.c.l.b16 %v4437
      %v4538 = vunpack.c.l.b16 %v4438
      %v4539 = vunpack.c.l.b16 %v4439
      %v4540 = vunpack.c.l.b16 %v4440
      %v4541 = vunpack.c.l.b16 %v4441
      %v4542 = vunpack.c.l.b16 %v4442
      %v4543 = vunpack.c.l.b16 %v4443
      %v4544 = vunpack.c.l.b16 %v4444
      %v4545 = vunpack.c.l.b16 %v4445
      %v4546 = vunpack.c.l.b16 %v4446
      %v4547 = vunpack.c.l.b16 %v4447
      %v4548 = vunpack.c.l.b16 %v4448
      %v4549 = vunpack.c.l.b16 %v4449
      %v4550 = vpack.c.b16 %v4503, %v4502
      %v4551 = vpack.c.b16 %v4505, %v4504
      %v4552 = vpack.c.b16 %v4507, %v4506
      %v4553 = vpack.c.b16 %v4509, %v4508
      %v4554 = vpack.c.b16 %v4511, %v4510
      %v4555 = vpack.c.b16 %v4513, %v4512
      %v4556 = vpack.c.b16 %v4515, %v4514
      %v4557 = vpack.c.b16 %v4517, %v4516
      %v4558 = vpack.c.b16 %v4519, %v4518
      %v4559 = vpack.c.b16 %v4521, %v4520
      %v4560 = vpack.c.b16 %v4523, %v4522
      %v4561 = vpack.c.b16 %v4525, %v4524
      %v4562 = vpack.c.b16 %v4527, %v4526
      %v4563 = vpack.c.b16 %v4529, %v4528
      %v4564 = vpack.c.b16 %v4531, %v4530
      %v4565 = vpack.c.b16 %v4533, %v4532
      %v4566 = vpack.c.b16 %v4535, %v4534
      %v4567 = vpack.c.b16 %v4537, %v4536
      %v4568 = vpack.c.b16 %v4539, %v4538
      %v4569 = vpack.c.b16 %v4541, %v4540
      %v4570 = vpack.c.b16 %v4543, %v4542
      %v4571 = vpack.c.b16 %v4545, %v4544
      %v4572 = vpack.c.b16 %v4547, %v4546
      %v4573 = vpack.c.b16 %v4549, %v4548
      %4598 = vmatprep.subr.bf16.mxu0 0
      %4599 = vmatpush1.bf16.msra.mxu0 %v4557
      %4600 = vmatprep.subr.bf16.mxu0 0
      %4601 = vmatpush1.bf16.msra.mxu0 %v4556
      %4602 = vmatprep.subr.bf16.mxu0 0
      %4603 = vmatpush1.bf16.msra.mxu0 %v4555
      %4604 = vmatprep.subr.bf16.mxu0 0
      %4605 = vmatpush1.bf16.msra.mxu0 %v4554
      %4606 = vmatprep.subr.bf16.mxu0 0
      %4607 = vmatpush1.bf16.msra.mxu0 %v4553
      %4608 = vmatprep.subr.bf16.mxu0 0
      %4609 = vmatpush1.bf16.msra.mxu0 %v4552
      %4610 = vmatprep.subr.bf16.mxu0 0
      %4611 = vmatpush1.bf16.msra.mxu0 %v4551
      %4612 = vmatprep.subr.bf16.mxu0 0
      %4613 = vmatpush1.bf16.msra.mxu0 %v4550
      %4614 = vmatprep.subr.bf16.mxu0 0
      %4615 = vmatpush2.bf16.msra.mxu0 %v4565
      %4616 = vmatprep.subr.bf16.mxu0 0
      %4617 = vmatpush2.bf16.msra.mxu0 %v4564
      %4618 = vmatprep.subr.bf16.mxu0 0
      %4619 = vmatpush2.bf16.msra.mxu0 %v4563
      %4620 = vmatprep.subr.bf16.mxu0 0
      %4621 = vmatpush2.bf16.msra.mxu0 %v4562
      %4622 = vmatprep.subr.bf16.mxu0 0
      %4623 = vmatpush2.bf16.msra.mxu0 %v4561
      %4624 = vmatprep.subr.bf16.mxu0 0
      %4625 = vmatpush2.bf16.msra.mxu0 %v4560
      %4626 = vmatprep.subr.bf16.mxu0 0
      %4627 = vmatpush2.bf16.msra.mxu0 %v4559
      %4628 = vmatprep.subr.bf16.mxu0 0
      %4629 = vmatpush2.bf16.msra.mxu0 %v4558
      %4630 = vmatprep.mubr.bf16.mxu0 %v4307
      %4631 = vmatmul.mubr.bf16.gmra.mxu0 %v4306
      %v4632 = vpop.f32.mrf.mxu0
      %v4633 = vadd.f32 %v4453, %v4632
      %v4634 = vpop.f32.mrf.mxu0
      %v4635 = vpop.f32.mrf.mxu0
      %v4636 = vadd.f32 %v4453, %v4635
      %v4637 = vpop.f32.mrf.mxu0
      %4638 = vmatprep.mubr.bf16.mxu0 %v4310
      %4639 = vmatmul.mubr.bf16.gmra.mxu0 %v4309
      %v4640 = vpop.f32.mrf.mxu0
      %v4641 = vadd.f32 %v4453, %v4640
      %v4642 = vpop.f32.mrf.mxu0
      %v4643 = vpop.f32.mrf.mxu0
      %v4644 = vadd.f32 %v4453, %v4643
      %v4645 = vpop.f32.mrf.mxu0
      %4646 = vmatprep.mubr.bf16.mxu0 %v4313
      %4647 = vmatmul.mubr.bf16.gmra.mxu0 %v4312
      %v4648 = vpop.f32.mrf.mxu0
      %v4649 = vadd.f32 %v4453, %v4648
      %v4650 = vpop.f32.mrf.mxu0
      %v4651 = vpop.f32.mrf.mxu0
      %v4652 = vadd.f32 %v4453, %v4651
      %v4653 = vpop.f32.mrf.mxu0
      %4654 = vmatprep.mubr.bf16.mxu0 %v4316
      %4655 = vmatmul.mubr.bf16.gmra.mxu0 %v4315
      %v4656 = vpop.f32.mrf.mxu0
      %v4657 = vadd.f32 %v4453, %v4656
      %v4658 = vpop.f32.mrf.mxu0
      %v4659 = vpop.f32.mrf.mxu0
      %v4660 = vadd.f32 %v4453, %v4659
      %v4661 = vpop.f32.mrf.mxu0
      %4662 = vmatprep.mubr.bf16.mxu0 %v4319
      %4663 = vmatmul.mubr.bf16.gmra.mxu0 %v4318
      %v4664 = vpop.f32.mrf.mxu0
      %v4665 = vadd.f32 %v4453, %v4664
      %v4666 = vpop.f32.mrf.mxu0
      %v4667 = vpop.f32.mrf.mxu0
      %v4668 = vadd.f32 %v4453, %v4667
      %v4669 = vpop.f32.mrf.mxu0
      %4670 = vmatprep.mubr.bf16.mxu0 %v4322
      %4671 = vmatmul.mubr.bf16.gmra.mxu0 %v4321
      %v4672 = vpop.f32.mrf.mxu0
      %v4673 = vadd.f32 %v4453, %v4672
      %v4674 = vpop.f32.mrf.mxu0
      %v4675 = vpop.f32.mrf.mxu0
      %v4676 = vadd.f32 %v4453, %v4675
      %v4677 = vpop.f32.mrf.mxu0
      %4678 = vmatprep.mubr.bf16.mxu0 %v4325
      %4679 = vmatmul.mubr.bf16.gmra.mxu0 %v4324
      %v4680 = vpop.f32.mrf.mxu0
      %v4681 = vadd.f32 %v4453, %v4680
      %v4682 = vpop.f32.mrf.mxu0
      %v4683 = vpop.f32.mrf.mxu0
      %v4684 = vadd.f32 %v4453, %v4683
      %v4685 = vpop.f32.mrf.mxu0
      %4686 = vmatprep.mubr.bf16.mxu0 %v4328
      %4687 = vmatmul.mubr.bf16.gmra.mxu0 %v4327
      %v4688 = vpop.f32.mrf.mxu0
      %v4689 = vadd.f32 %v4453, %v4688
      %v4690 = vpop.f32.mrf.mxu0
      %v4691 = vpop.f32.mrf.mxu0
      %v4692 = vadd.f32 %v4453, %v4691
      %v4693 = vpop.f32.mrf.mxu0
      %4694 = vmatprep.mubr.bf16.mxu0 %v4331
      %4695 = vmatmul.mubr.bf16.gmra.mxu0 %v4330
      %v4696 = vpop.f32.mrf.mxu0
      %v4697 = vadd.f32 %v4453, %v4696
      %v4698 = vpop.f32.mrf.mxu0
      %v4699 = vpop.f32.mrf.mxu0
      %v4700 = vadd.f32 %v4453, %v4699
      %v4701 = vpop.f32.mrf.mxu0
      %4702 = vmatprep.mubr.bf16.mxu0 %v4334
      %4703 = vmatmul.mubr.bf16.gmra.mxu0 %v4333
      %v4704 = vpop.f32.mrf.mxu0
      %v4705 = vadd.f32 %v4453, %v4704
      %v4706 = vpop.f32.mrf.mxu0
      %v4707 = vpop.f32.mrf.mxu0
      %v4708 = vadd.f32 %v4453, %v4707
      %v4709 = vpop.f32.mrf.mxu0
      %4710 = vmatprep.mubr.bf16.mxu0 %v4337
      %4711 = vmatmul.mubr.bf16.gmra.mxu0 %v4336
      %v4712 = vpop.f32.mrf.mxu0
      %v4713 = vadd.f32 %v4453, %v4712
      %v4714 = vpop.f32.mrf.mxu0
      %v4715 = vpop.f32.mrf.mxu0
      %v4716 = vadd.f32 %v4453, %v4715
      %v4717 = vpop.f32.mrf.mxu0
      %4718 = vmatprep.mubr.bf16.mxu0 %v4340
      %4719 = vmatmul.mubr.bf16.gmra.mxu0 %v4339
      %v4720 = vpop.f32.mrf.mxu0
      %v4721 = vadd.f32 %v4453, %v4720
      %v4722 = vpop.f32.mrf.mxu0
      %v4723 = vpop.f32.mrf.mxu0
      %v4724 = vadd.f32 %v4453, %v4723
      %v4725 = vpop.f32.mrf.mxu0
      %4726 = vmatprep.mubr.bf16.mxu0 %v4343
      %4727 = vmatmul.mubr.bf16.gmra.mxu0 %v4342
      %v4728 = vpop.f32.mrf.mxu0
      %v4729 = vadd.f32 %v4453, %v4728
      %v4730 = vpop.f32.mrf.mxu0
      %v4731 = vpop.f32.mrf.mxu0
      %v4732 = vadd.f32 %v4453, %v4731
      %v4733 = vpop.f32.mrf.mxu0
      %4734 = vmatprep.mubr.bf16.mxu0 %v4346
      %4735 = vmatmul.mubr.bf16.gmra.mxu0 %v4345
      %v4736 = vpop.f32.mrf.mxu0
      %v4737 = vadd.f32 %v4453, %v4736
      %v4738 = vpop.f32.mrf.mxu0
      %v4739 = vpop.f32.mrf.mxu0
      %v4740 = vadd.f32 %v4453, %v4739
      %v4741 = vpop.f32.mrf.mxu0
      %4742 = vmatprep.mubr.bf16.mxu0 %v4349
      %4743 = vmatmul.mubr.bf16.gmra.mxu0 %v4348
      %v4744 = vpop.f32.mrf.mxu0
      %v4745 = vadd.f32 %v4453, %v4744
      %v4746 = vpop.f32.mrf.mxu0
      %v4747 = vpop.f32.mrf.mxu0
      %v4748 = vadd.f32 %v4453, %v4747
      %v4749 = vpop.f32.mrf.mxu0
      %4750 = vmatprep.mubr.bf16.mxu0 %v4352
      %4751 = vmatmul.mubr.bf16.gmra.mxu0 %v4351
      %v4752 = vpop.f32.mrf.mxu0
      %v4753 = vadd.f32 %v4453, %v4752
      %v4754 = vpop.f32.mrf.mxu0
      %v4755 = vpop.f32.mrf.mxu0
      %v4756 = vadd.f32 %v4453, %v4755
      %v4757 = vpop.f32.mrf.mxu0
      %4758 = vmatprep.mubr.bf16.mxu0 %v4355
      %4759 = vmatmul.mubr.bf16.gmra.mxu0 %v4354
      %v4760 = vpop.f32.mrf.mxu0
      %v4761 = vadd.f32 %v4453, %v4760
      %v4762 = vpop.f32.mrf.mxu0
      %v4763 = vpop.f32.mrf.mxu0
      %v4764 = vadd.f32 %v4453, %v4763
      %v4765 = vpop.f32.mrf.mxu0
      %4766 = vmatprep.mubr.bf16.mxu0 %v4358
      %4767 = vmatmul.mubr.bf16.gmra.mxu0 %v4357
      %v4768 = vpop.f32.mrf.mxu0
      %v4769 = vadd.f32 %v4453, %v4768
      %v4770 = vpop.f32.mrf.mxu0
      %v4771 = vpop.f32.mrf.mxu0
      %v4772 = vadd.f32 %v4453, %v4771
      %v4773 = vpop.f32.mrf.mxu0
      %4774 = vmatprep.mubr.bf16.mxu0 %v4361
      %4775 = vmatmul.mubr.bf16.gmra.mxu0 %v4360
      %v4776 = vpop.f32.mrf.mxu0
      %v4777 = vadd.f32 %v4453, %v4776
      %v4778 = vpop.f32.mrf.mxu0
      %v4779 = vpop.f32.mrf.mxu0
      %v4780 = vadd.f32 %v4453, %v4779
      %v4781 = vpop.f32.mrf.mxu0
      %4782 = vmatprep.mubr.bf16.mxu0 %v4364
      %4783 = vmatmul.mubr.bf16.gmra.mxu0 %v4363
      %v4784 = vpop.f32.mrf.mxu0
      %v4785 = vadd.f32 %v4453, %v4784
      %v4786 = vpop.f32.mrf.mxu0
      %v4787 = vpop.f32.mrf.mxu0
      %v4788 = vadd.f32 %v4453, %v4787
      %v4789 = vpop.f32.mrf.mxu0
      %4790 = vmatprep.mubr.bf16.mxu0 %v4367
      %4791 = vmatmul.mubr.bf16.gmra.mxu0 %v4366
      %v4792 = vpop.f32.mrf.mxu0
      %v4793 = vadd.f32 %v4453, %v4792
      %v4794 = vpop.f32.mrf.mxu0
      %v4795 = vpop.f32.mrf.mxu0
      %v4796 = vadd.f32 %v4453, %v4795
      %v4797 = vpop.f32.mrf.mxu0
      %4798 = vmatprep.mubr.bf16.mxu0 %v4370
      %4799 = vmatmul.mubr.bf16.gmra.mxu0 %v4369
      %v4800 = vpop.f32.mrf.mxu0
      %v4801 = vadd.f32 %v4453, %v4800
      %v4802 = vpop.f32.mrf.mxu0
      %v4803 = vpop.f32.mrf.mxu0
      %v4804 = vadd.f32 %v4453, %v4803
      %v4805 = vpop.f32.mrf.mxu0
      %4806 = vmatprep.mubr.bf16.mxu0 %v4373
      %4807 = vmatmul.mubr.bf16.gmra.mxu0 %v4372
      %v4808 = vpop.f32.mrf.mxu0
      %v4809 = vadd.f32 %v4453, %v4808
      %v4810 = vpop.f32.mrf.mxu0
      %v4811 = vpop.f32.mrf.mxu0
      %v4812 = vadd.f32 %v4453, %v4811
      %v4813 = vpop.f32.mrf.mxu0
      %4814 = vmatprep.mubr.bf16.mxu0 %v4376
      %4815 = vmatmul.mubr.bf16.gmra.mxu0 %v4375
      %v4816 = vpop.f32.mrf.mxu0
      %v4817 = vadd.f32 %v4453, %v4816
      %v4818 = vpop.f32.mrf.mxu0
      %v4819 = vpop.f32.mrf.mxu0
      %v4820 = vadd.f32 %v4453, %v4819
      %v4821 = vpop.f32.mrf.mxu0
      %4822 = vmatprep.mubr.bf16.mxu0 %v4379
      %4823 = vmatmul.mubr.bf16.gmra.mxu0 %v4378
      %v4824 = vpop.f32.mrf.mxu0
      %v4825 = vadd.f32 %v4453, %v4824
      %v4826 = vpop.f32.mrf.mxu0
      %v4827 = vpop.f32.mrf.mxu0
      %v4828 = vadd.f32 %v4453, %v4827
      %v4829 = vpop.f32.mrf.mxu0
      %4830 = vmatprep.mubr.bf16.mxu0 %v4382
      %4831 = vmatmul.mubr.bf16.gmra.mxu0 %v4381
      %v4832 = vpop.f32.mrf.mxu0
      %v4833 = vadd.f32 %v4453, %v4832
      %v4834 = vpop.f32.mrf.mxu0
      %v4835 = vpop.f32.mrf.mxu0
      %v4836 = vadd.f32 %v4453, %v4835
      %v4837 = vpop.f32.mrf.mxu0
      %4838 = vmatprep.mubr.bf16.mxu0 %v4385
      %4839 = vmatmul.mubr.bf16.gmra.mxu0 %v4384
      %v4840 = vpop.f32.mrf.mxu0
      %v4841 = vadd.f32 %v4453, %v4840
      %v4842 = vpop.f32.mrf.mxu0
      %v4843 = vpop.f32.mrf.mxu0
      %v4844 = vadd.f32 %v4453, %v4843
      %v4845 = vpop.f32.mrf.mxu0
      %4846 = vmatprep.mubr.bf16.mxu0 %v4388
      %4847 = vmatmul.mubr.bf16.gmra.mxu0 %v4387
      %v4848 = vpop.f32.mrf.mxu0
      %v4849 = vadd.f32 %v4453, %v4848
      %v4850 = vpop.f32.mrf.mxu0
      %v4851 = vpop.f32.mrf.mxu0
      %v4852 = vadd.f32 %v4453, %v4851
      %v4853 = vpop.f32.mrf.mxu0
      %4854 = vmatprep.mubr.bf16.mxu0 %v4391
      %4855 = vmatmul.mubr.bf16.gmra.mxu0 %v4390
      %v4856 = vpop.f32.mrf.mxu0
      %v4857 = vadd.f32 %v4453, %v4856
      %v4858 = vpop.f32.mrf.mxu0
      %v4859 = vpop.f32.mrf.mxu0
      %v4860 = vadd.f32 %v4453, %v4859
      %v4861 = vpop.f32.mrf.mxu0
      %4862 = vmatprep.mubr.bf16.mxu0 %v4394
      %4863 = vmatmul.mubr.bf16.gmra.mxu0 %v4393
      %v4864 = vpop.f32.mrf.mxu0
      %v4865 = vadd.f32 %v4453, %v4864
      %v4866 = vpop.f32.mrf.mxu0
      %v4867 = vpop.f32.mrf.mxu0
      %v4868 = vadd.f32 %v4453, %v4867
      %v4869 = vpop.f32.mrf.mxu0
      %4870 = vmatprep.mubr.bf16.mxu0 %v4397
      %4871 = vmatmul.mubr.bf16.gmra.mxu0 %v4396
      %v4872 = vpop.f32.mrf.mxu0
      %v4873 = vadd.f32 %v4453, %v4872
      %v4874 = vpop.f32.mrf.mxu0
      %v4875 = vpop.f32.mrf.mxu0
      %v4876 = vadd.f32 %v4453, %v4875
      %v4877 = vpop.f32.mrf.mxu0
      %4878 = vmatprep.mubr.bf16.mxu0 %v4400
      %4879 = vmatmul.mubr.bf16.gmra.mxu0 %v4399
      %v4880 = vpop.f32.mrf.mxu0
      %v4881 = vadd.f32 %v4453, %v4880
      %v4882 = vpop.f32.mrf.mxu0
      %v4883 = vpop.f32.mrf.mxu0
      %v4884 = vadd.f32 %v4453, %v4883
      %v4885 = vpop.f32.mrf.mxu0
      %4886 = vdwg.mxu0
      %4887 = vmatprep.subr.bf16.mxu0 0
      %4888 = vmatpush1.bf16.msra.mxu0 %v4573
      %4889 = vmatprep.subr.bf16.mxu0 0
      %4890 = vmatpush1.bf16.msra.mxu0 %v4572
      %4891 = vmatprep.subr.bf16.mxu0 0
      %4892 = vmatpush1.bf16.msra.mxu0 %v4571
      %4893 = vmatprep.subr.bf16.mxu0 0
      %4894 = vmatpush1.bf16.msra.mxu0 %v4570
      %4895 = vmatprep.subr.bf16.mxu0 0
      %4896 = vmatpush1.bf16.msra.mxu0 %v4569
      %4897 = vmatprep.subr.bf16.mxu0 0
      %4898 = vmatpush1.bf16.msra.mxu0 %v4568
      %4899 = vmatprep.subr.bf16.mxu0 0
      %4900 = vmatpush1.bf16.msra.mxu0 %v4567
      %4901 = vmatprep.subr.bf16.mxu0 0
      %4902 = vmatpush1.bf16.msra.mxu0 %v4566
      %4903 = vmatprep.subr.bf16.mxu0 0
      %4904 = vmatpush2.bf16.msra.mxu0 0
      %4905 = vmatprep.subr.bf16.mxu0 0
      %4906 = vmatpush2.bf16.msra.mxu0 0
      %4907 = vmatprep.subr.bf16.mxu0 0
      %4908 = vmatpush2.bf16.msra.mxu0 0
      %4909 = vmatprep.subr.bf16.mxu0 0
      %4910 = vmatpush2.bf16.msra.mxu0 0
      %4911 = vmatprep.subr.bf16.mxu0 0
      %4912 = vmatpush2.bf16.msra.mxu0 0
      %4913 = vmatprep.subr.bf16.mxu0 0
      %4914 = vmatpush2.bf16.msra.mxu0 0
      %4915 = vmatprep.subr.bf16.mxu0 0
      %4916 = vmatpush2.bf16.msra.mxu0 0
      %4917 = vmatprep.subr.bf16.mxu0 0
      %4918 = vmatpush2.bf16.msra.mxu0 0
      %4919 = vmatprep.mubr.bf16.mxu0 0
      %4920 = vmatmul.mubr.bf16.gmra.mxu0 %v4308
      %v4921 = vpop.f32.mrf.mxu0
      %v4922 = vadd.f32 %v4633, %v4921
      %v4923 = vpop.f32.mrf.mxu0
      %v4924 = vpop.f32.mrf.mxu0
      %v4925 = vadd.f32 %v4636, %v4924
      %v4926 = vpop.f32.mrf.mxu0
      %4927 = vmatprep.mubr.bf16.mxu0 0
      %4928 = vmatmul.mubr.bf16.gmra.mxu0 %v4311
      %v4929 = vpop.f32.mrf.mxu0
      %v4930 = vadd.f32 %v4641, %v4929
      %v4931 = vpop.f32.mrf.mxu0
      %v4932 = vpop.f32.mrf.mxu0
      %v4933 = vadd.f32 %v4644, %v4932
      %v4934 = vpop.f32.mrf.mxu0
      %4935 = vmatprep.mubr.bf16.mxu0 0
      %4936 = vmatmul.mubr.bf16.gmra.mxu0 %v4314
      %v4937 = vpop.f32.mrf.mxu0
      %v4938 = vadd.f32 %v4649, %v4937
      %v4939 = vpop.f32.mrf.mxu0
      %v4940 = vpop.f32.mrf.mxu0
      %v4941 = vadd.f32 %v4652, %v4940
      %v4942 = vpop.f32.mrf.mxu0
      %4943 = vmatprep.mubr.bf16.mxu0 0
      %4944 = vmatmul.mubr.bf16.gmra.mxu0 %v4317
      %v4945 = vpop.f32.mrf.mxu0
      %v4946 = vadd.f32 %v4657, %v4945
      %v4947 = vpop.f32.mrf.mxu0
      %v4948 = vpop.f32.mrf.mxu0
      %v4949 = vadd.f32 %v4660, %v4948
      %v4950 = vpop.f32.mrf.mxu0
      %4951 = vmatprep.mubr.bf16.mxu0 0
      %4952 = vmatmul.mubr.bf16.gmra.mxu0 %v4320
      %v4953 = vpop.f32.mrf.mxu0
      %v4954 = vadd.f32 %v4665, %v4953
      %v4955 = vpop.f32.mrf.mxu0
      %v4956 = vpop.f32.mrf.mxu0
      %v4957 = vadd.f32 %v4668, %v4956
      %v4958 = vpop.f32.mrf.mxu0
      %4959 = vmatprep.mubr.bf16.mxu0 0
      %4960 = vmatmul.mubr.bf16.gmra.mxu0 %v4323
      %v4961 = vpop.f32.mrf.mxu0
      %v4962 = vadd.f32 %v4673, %v4961
      %v4963 = vpop.f32.mrf.mxu0
      %v4964 = vpop.f32.mrf.mxu0
      %v4965 = vadd.f32 %v4676, %v4964
      %v4966 = vpop.f32.mrf.mxu0
      %4967 = vmatprep.mubr.bf16.mxu0 0
      %4968 = vmatmul.mubr.bf16.gmra.mxu0 %v4326
      %v4969 = vpop.f32.mrf.mxu0
      %v4970 = vadd.f32 %v4681, %v4969
      %v4971 = vpop.f32.mrf.mxu0
      %v4972 = vpop.f32.mrf.mxu0
      %v4973 = vadd.f32 %v4684, %v4972
      %v4974 = vpop.f32.mrf.mxu0
      %4975 = vmatprep.mubr.bf16.mxu0 0
      %4976 = vmatmul.mubr.bf16.gmra.mxu0 %v4329
      %v4977 = vpop.f32.mrf.mxu0
      %v4978 = vadd.f32 %v4689, %v4977
      %v4979 = vpop.f32.mrf.mxu0
      %v4980 = vpop.f32.mrf.mxu0
      %v4981 = vadd.f32 %v4692, %v4980
      %v4982 = vpop.f32.mrf.mxu0
      %4983 = vmatprep.mubr.bf16.mxu0 0
      %4984 = vmatmul.mubr.bf16.gmra.mxu0 %v4332
      %v4985 = vpop.f32.mrf.mxu0
      %v4986 = vadd.f32 %v4697, %v4985
      %v4987 = vpop.f32.mrf.mxu0
      %v4988 = vpop.f32.mrf.mxu0
      %v4989 = vadd.f32 %v4700, %v4988
      %v4990 = vpop.f32.mrf.mxu0
      %4991 = vmatprep.mubr.bf16.mxu0 0
      %4992 = vmatmul.mubr.bf16.gmra.mxu0 %v4335
      %v4993 = vpop.f32.mrf.mxu0
      %v4994 = vadd.f32 %v4705, %v4993
      %v4995 = vpop.f32.mrf.mxu0
      %v4996 = vpop.f32.mrf.mxu0
      %v4997 = vadd.f32 %v4708, %v4996
      %v4998 = vpop.f32.mrf.mxu0
      %4999 = vmatprep.mubr.bf16.mxu0 0
      %5000 = vmatmul.mubr.bf16.gmra.mxu0 %v4338
      %v5001 = vpop.f32.mrf.mxu0
      %v5002 = vadd.f32 %v4713, %v5001
      %v5003 = vpop.f32.mrf.mxu0
      %v5004 = vpop.f32.mrf.mxu0
      %v5005 = vadd.f32 %v4716, %v5004
      %v5006 = vpop.f32.mrf.mxu0
      %5007 = vmatprep.mubr.bf16.mxu0 0
      %5008 = vmatmul.mubr.bf16.gmra.mxu0 %v4341
      %v5009 = vpop.f32.mrf.mxu0
      %v5010 = vadd.f32 %v4721, %v5009
      %v5011 = vpop.f32.mrf.mxu0
      %v5012 = vpop.f32.mrf.mxu0
      %v5013 = vadd.f32 %v4724, %v5012
      %v5014 = vpop.f32.mrf.mxu0
      %5015 = vmatprep.mubr.bf16.mxu0 0
      %5016 = vmatmul.mubr.bf16.gmra.mxu0 %v4344
      %v5017 = vpop.f32.mrf.mxu0
      %v5018 = vadd.f32 %v4729, %v5017
      %v5019 = vpop.f32.mrf.mxu0
      %v5020 = vpop.f32.mrf.mxu0
      %v5021 = vadd.f32 %v4732, %v5020
      %v5022 = vpop.f32.mrf.mxu0
      %5023 = vmatprep.mubr.bf16.mxu0 0
      %5024 = vmatmul.mubr.bf16.gmra.mxu0 %v4347
      %v5025 = vpop.f32.mrf.mxu0
      %v5026 = vadd.f32 %v4737, %v5025
      %v5027 = vpop.f32.mrf.mxu0
      %v5028 = vpop.f32.mrf.mxu0
      %v5029 = vadd.f32 %v4740, %v5028
      %v5030 = vpop.f32.mrf.mxu0
      %5031 = vmatprep.mubr.bf16.mxu0 0
      %5032 = vmatmul.mubr.bf16.gmra.mxu0 %v4350
      %v5033 = vpop.f32.mrf.mxu0
      %v5034 = vadd.f32 %v4745, %v5033
      %v5035 = vpop.f32.mrf.mxu0
      %v5036 = vpop.f32.mrf.mxu0
      %v5037 = vadd.f32 %v4748, %v5036
      %v5038 = vpop.f32.mrf.mxu0
      %5039 = vmatprep.mubr.bf16.mxu0 0
      %5040 = vmatmul.mubr.bf16.gmra.mxu0 %v4353
      %v5041 = vpop.f32.mrf.mxu0
      %v5042 = vadd.f32 %v4753, %v5041
      %v5043 = vpop.f32.mrf.mxu0
      %v5044 = vpop.f32.mrf.mxu0
      %v5045 = vadd.f32 %v4756, %v5044
      %v5046 = vpop.f32.mrf.mxu0
      %5047 = vmatprep.mubr.bf16.mxu0 0
      %5048 = vmatmul.mubr.bf16.gmra.mxu0 %v4356
      %v5049 = vpop.f32.mrf.mxu0
      %v5050 = vadd.f32 %v4761, %v5049
      %v5051 = vpop.f32.mrf.mxu0
      %v5052 = vpop.f32.mrf.mxu0
      %v5053 = vadd.f32 %v4764, %v5052
      %v5054 = vpop.f32.mrf.mxu0
      %5055 = vmatprep.mubr.bf16.mxu0 0
      %5056 = vmatmul.mubr.bf16.gmra.mxu0 %v4359
      %v5057 = vpop.f32.mrf.mxu0
      %v5058 = vadd.f32 %v4769, %v5057
      %v5059 = vpop.f32.mrf.mxu0
      %v5060 = vpop.f32.mrf.mxu0
      %v5061 = vadd.f32 %v4772, %v5060
      %v5062 = vpop.f32.mrf.mxu0
      %5063 = vmatprep.mubr.bf16.mxu0 0
      %5064 = vmatmul.mubr.bf16.gmra.mxu0 %v4362
      %v5065 = vpop.f32.mrf.mxu0
      %v5066 = vadd.f32 %v4777, %v5065
      %v5067 = vpop.f32.mrf.mxu0
      %v5068 = vpop.f32.mrf.mxu0
      %v5069 = vadd.f32 %v4780, %v5068
      %v5070 = vpop.f32.mrf.mxu0
      %5071 = vmatprep.mubr.bf16.mxu0 0
      %5072 = vmatmul.mubr.bf16.gmra.mxu0 %v4365
      %v5073 = vpop.f32.mrf.mxu0
      %v5074 = vadd.f32 %v4785, %v5073
      %v5075 = vpop.f32.mrf.mxu0
      %v5076 = vpop.f32.mrf.mxu0
      %v5077 = vadd.f32 %v4788, %v5076
      %v5078 = vpop.f32.mrf.mxu0
      %5079 = vmatprep.mubr.bf16.mxu0 0
      %5080 = vmatmul.mubr.bf16.gmra.mxu0 %v4368
      %v5081 = vpop.f32.mrf.mxu0
      %v5082 = vadd.f32 %v4793, %v5081
      %v5083 = vpop.f32.mrf.mxu0
      %v5084 = vpop.f32.mrf.mxu0
      %v5085 = vadd.f32 %v4796, %v5084
      %v5086 = vpop.f32.mrf.mxu0
      %5087 = vmatprep.mubr.bf16.mxu0 0
      %5088 = vmatmul.mubr.bf16.gmra.mxu0 %v4371
      %v5089 = vpop.f32.mrf.mxu0
      %v5090 = vadd.f32 %v4801, %v5089
      %v5091 = vpop.f32.mrf.mxu0
      %v5092 = vpop.f32.mrf.mxu0
      %v5093 = vadd.f32 %v4804, %v5092
      %v5094 = vpop.f32.mrf.mxu0
      %5095 = vmatprep.mubr.bf16.mxu0 0
      %5096 = vmatmul.mubr.bf16.gmra.mxu0 %v4374
      %v5097 = vpop.f32.mrf.mxu0
      %v5098 = vadd.f32 %v4809, %v5097
      %v5099 = vpop.f32.mrf.mxu0
      %v5100 = vpop.f32.mrf.mxu0
      %v5101 = vadd.f32 %v4812, %v5100
      %v5102 = vpop.f32.mrf.mxu0
      %5103 = vmatprep.mubr.bf16.mxu0 0
      %5104 = vmatmul.mubr.bf16.gmra.mxu0 %v4377
      %v5105 = vpop.f32.mrf.mxu0
      %v5106 = vadd.f32 %v4817, %v5105
      %v5107 = vpop.f32.mrf.mxu0
      %v5108 = vpop.f32.mrf.mxu0
      %v5109 = vadd.f32 %v4820, %v5108
      %v5110 = vpop.f32.mrf.mxu0
      %5111 = vmatprep.mubr.bf16.mxu0 0
      %5112 = vmatmul.mubr.bf16.gmra.mxu0 %v4380
      %v5113 = vpop.f32.mrf.mxu0
      %v5114 = vadd.f32 %v4825, %v5113
      %v5115 = vpop.f32.mrf.mxu0
      %v5116 = vpop.f32.mrf.mxu0
      %v5117 = vadd.f32 %v4828, %v5116
      %v5118 = vpop.f32.mrf.mxu0
      %5119 = vmatprep.mubr.bf16.mxu0 0
      %5120 = vmatmul.mubr.bf16.gmra.mxu0 %v4383
      %v5121 = vpop.f32.mrf.mxu0
      %v5122 = vadd.f32 %v4833, %v5121
      %v5123 = vpop.f32.mrf.mxu0
      %v5124 = vpop.f32.mrf.mxu0
      %v5125 = vadd.f32 %v4836, %v5124
      %v5126 = vpop.f32.mrf.mxu0
      %5127 = vmatprep.mubr.bf16.mxu0 0
      %5128 = vmatmul.mubr.bf16.gmra.mxu0 %v4386
      %v5129 = vpop.f32.mrf.mxu0
      %v5130 = vadd.f32 %v4841, %v5129
      %v5131 = vpop.f32.mrf.mxu0
      %v5132 = vpop.f32.mrf.mxu0
      %v5133 = vadd.f32 %v4844, %v5132
      %v5134 = vpop.f32.mrf.mxu0
      %5135 = vmatprep.mubr.bf16.mxu0 0
      %5136 = vmatmul.mubr.bf16.gmra.mxu0 %v4389
      %v5137 = vpop.f32.mrf.mxu0
      %v5138 = vadd.f32 %v4849, %v5137
      %v5139 = vpop.f32.mrf.mxu0
      %v5140 = vpop.f32.mrf.mxu0
      %v5141 = vadd.f32 %v4852, %v5140
      %v5142 = vpop.f32.mrf.mxu0
      %5143 = vmatprep.mubr.bf16.mxu0 0
      %5144 = vmatmul.mubr.bf16.gmra.mxu0 %v4392
      %v5145 = vpop.f32.mrf.mxu0
      %v5146 = vadd.f32 %v4857, %v5145
      %v5147 = vpop.f32.mrf.mxu0
      %v5148 = vpop.f32.mrf.mxu0
      %v5149 = vadd.f32 %v4860, %v5148
      %v5150 = vpop.f32.mrf.mxu0
      %5151 = vmatprep.mubr.bf16.mxu0 0
      %5152 = vmatmul.mubr.bf16.gmra.mxu0 %v4395
      %v5153 = vpop.f32.mrf.mxu0
      %v5154 = vadd.f32 %v4865, %v5153
      %v5155 = vpop.f32.mrf.mxu0
      %v5156 = vpop.f32.mrf.mxu0
      %v5157 = vadd.f32 %v4868, %v5156
      %v5158 = vpop.f32.mrf.mxu0
      %5159 = vmatprep.mubr.bf16.mxu0 0
      %5160 = vmatmul.mubr.bf16.gmra.mxu0 %v4398
      %v5161 = vpop.f32.mrf.mxu0
      %v5162 = vadd.f32 %v4873, %v5161
      %v5163 = vpop.f32.mrf.mxu0
      %v5164 = vpop.f32.mrf.mxu0
      %v5165 = vadd.f32 %v4876, %v5164
      %v5166 = vpop.f32.mrf.mxu0
      %5167 = vmatprep.mubr.bf16.mxu0 0
      %5168 = vmatmul.mubr.bf16.gmra.mxu0 %v4401
      %v5169 = vpop.f32.mrf.mxu0
      %v5170 = vadd.f32 %v4881, %v5169
      %v5171 = vpop.f32.mrf.mxu0
      %v5172 = vpop.f32.mrf.mxu0
      %v5173 = vadd.f32 %v4884, %v5172
      %v5174 = vpop.f32.mrf.mxu0
      %5175 = vdwg.mxu0
      %v5176 = vadd.f32 %v1395, %v4922
      %v5177 = vadd.f32 %v1396, %v4925
      %v5178 = vadd.f32 %v1397, %v4930
      %v5179 = vadd.f32 %v1398, %v4933
      %v5180 = vadd.f32 %v1399, %v4938
      %v5181 = vadd.f32 %v1400, %v4941
      %v5182 = vadd.f32 %v1401, %v4946
      %v5183 = vadd.f32 %v1402, %v4949
      %v5184 = vadd.f32 %v1403, %v4954
      %v5185 = vadd.f32 %v1404, %v4957
      %v5186 = vadd.f32 %v1405, %v4962
      %v5187 = vadd.f32 %v1406, %v4965
      %v5188 = vadd.f32 %v1407, %v4970
      %v5189 = vadd.f32 %v1408, %v4973
      %v5190 = vadd.f32 %v1409, %v4978
      %v5191 = vadd.f32 %v1410, %v4981
      %v5192 = vadd.f32 %v1411, %v4986
      %v5193 = vadd.f32 %v1412, %v4989
      %v5194 = vadd.f32 %v1413, %v4994
      %v5195 = vadd.f32 %v1414, %v4997
      %v5196 = vadd.f32 %v1415, %v5002
      %v5197 = vadd.f32 %v1416, %v5005
      %v5198 = vadd.f32 %v1417, %v5010
      %v5199 = vadd.f32 %v1418, %v5013
      %v5200 = vadd.f32 %v1419, %v5018
      %v5201 = vadd.f32 %v1420, %v5021
      %v5202 = vadd.f32 %v1421, %v5026
      %v5203 = vadd.f32 %v1422, %v5029
      %v5204 = vadd.f32 %v1423, %v5034
      %v5205 = vadd.f32 %v1424, %v5037
      %v5206 = vadd.f32 %v1425, %v5042
      %v5207 = vadd.f32 %v1426, %v5045
      %v5208 = vadd.f32 %v1427, %v5050
      %v5209 = vadd.f32 %v1428, %v5053
      %v5210 = vadd.f32 %v1429, %v5058
      %v5211 = vadd.f32 %v1430, %v5061
      %v5212 = vadd.f32 %v1431, %v5066
      %v5213 = vadd.f32 %v1432, %v5069
      %v5214 = vadd.f32 %v1433, %v5074
      %v5215 = vadd.f32 %v1434, %v5077
      %v5216 = vadd.f32 %v1435, %v5082
      %v5217 = vadd.f32 %v1436, %v5085
      %v5218 = vadd.f32 %v1437, %v5090
      %v5219 = vadd.f32 %v1438, %v5093
      %v5220 = vadd.f32 %v1439, %v5098
      %v5221 = vadd.f32 %v1440, %v5101
      %v5222 = vadd.f32 %v1441, %v5106
      %v5223 = vadd.f32 %v1442, %v5109
      %v5224 = vadd.f32 %v1443, %v5114
      %v5225 = vadd.f32 %v1444, %v5117
      %v5226 = vadd.f32 %v1445, %v5122
      %v5227 = vadd.f32 %v1446, %v5125
      %v5228 = vadd.f32 %v1447, %v5130
      %v5229 = vadd.f32 %v1448, %v5133
      %v5230 = vadd.f32 %v1449, %v5138
      %v5231 = vadd.f32 %v1450, %v5141
      %v5232 = vadd.f32 %v1451, %v5146
      %v5233 = vadd.f32 %v1452, %v5149
      %v5234 = vadd.f32 %v1453, %v5154
      %v5235 = vadd.f32 %v1454, %v5157
      %v5236 = vadd.f32 %v1455, %v5162
      %v5237 = vadd.f32 %v1456, %v5165
      %v5238 = vadd.f32 %v1457, %v5170
      %v5239 = vadd.f32 %v1458, %v5173
      %5240 = vst.msk [vmem:[%s226] sm:$0xff] %vm298, %v5176
      %5241 = vst.msk [vmem:[%s226 + $0x8] sm:$0xff] %vm298, %v5177
      %5242 = vst.msk [vmem:[%s226 + $0x10] sm:$0xff] %vm298, %v5178
      %5243 = vst.msk [vmem:[%s226 + $0x18] sm:$0xff] %vm298, %v5179
      %5244 = vst.msk [vmem:[%s226 + $0x20] sm:$0xff] %vm298, %v5180
      %5245 = vst.msk [vmem:[%s226 + $0x28] sm:$0xff] %vm298, %v5181
      %5246 = vst.msk [vmem:[%s226 + $0x30] sm:$0xff] %vm298, %v5182
      %5247 = vst.msk [vmem:[%s226 + $0x38] sm:$0xff] %vm298, %v5183
      %5248 = vst.msk [vmem:[%s226 + $0x40] sm:$0xff] %vm298, %v5184
      %5249 = vst.msk [vmem:[%s226 + $0x48] sm:$0xff] %vm298, %v5185
      %5250 = vst.msk [vmem:[%s226 + $0x50] sm:$0xff] %vm298, %v5186
      %5251 = vst.msk [vmem:[%s226 + $0x58] sm:$0xff] %vm298, %v5187
      %5252 = vst.msk [vmem:[%s226 + $0x60] sm:$0xff] %vm298, %v5188
      %5253 = vst.msk [vmem:[%s226 + $0x68] sm:$0xff] %vm298, %v5189
      %5254 = vst.msk [vmem:[%s226 + $0x70] sm:$0xff] %vm298, %v5190
      %5255 = vst.msk [vmem:[%s226 + $0x78] sm:$0xff] %vm298, %v5191
      %5256 = vst.msk [vmem:[%s226 + $0x80] sm:$0xff] %vm298, %v5192
      %5257 = vst.msk [vmem:[%s226 + $0x88] sm:$0xff] %vm298, %v5193
      %5258 = vst.msk [vmem:[%s226 + $0x90] sm:$0xff] %vm298, %v5194
      %5259 = vst.msk [vmem:[%s226 + $0x98] sm:$0xff] %vm298, %v5195
      %5260 = vst.msk [vmem:[%s226 + $0xa0] sm:$0xff] %vm298, %v5196
      %5261 = vst.msk [vmem:[%s226 + $0xa8] sm:$0xff] %vm298, %v5197
      %5262 = vst.msk [vmem:[%s226 + $0xb0] sm:$0xff] %vm298, %v5198
      %5263 = vst.msk [vmem:[%s226 + $0xb8] sm:$0xff] %vm298, %v5199
      %5264 = vst.msk [vmem:[%s226 + $0xc0] sm:$0xff] %vm298, %v5200
      %5265 = vst.msk [vmem:[%s226 + $0xc8] sm:$0xff] %vm298, %v5201
      %5266 = vst.msk [vmem:[%s226 + $0xd0] sm:$0xff] %vm298, %v5202
      %5267 = vst.msk [vmem:[%s226 + $0xd8] sm:$0xff] %vm298, %v5203
      %5268 = vst.msk [vmem:[%s226 + $0xe0] sm:$0xff] %vm298, %v5204
      %5269 = vst.msk [vmem:[%s226 + $0xe8] sm:$0xff] %vm298, %v5205
      %5270 = vst.msk [vmem:[%s226 + $0xf0] sm:$0xff] %vm298, %v5206
      %5271 = vst.msk [vmem:[%s226 + $0xf8] sm:$0xff] %vm298, %v5207
      %5272 = vst.msk [vmem:[%s226 + $0x100] sm:$0xff] %vm298, %v5208
      %5273 = vst.msk [vmem:[%s226 + $0x108] sm:$0xff] %vm298, %v5209
      %5274 = vst.msk [vmem:[%s226 + $0x110] sm:$0xff] %vm298, %v5210
      %5275 = vst.msk [vmem:[%s226 + $0x118] sm:$0xff] %vm298, %v5211
      %5276 = vst.msk [vmem:[%s226 + $0x120] sm:$0xff] %vm298, %v5212
      %5277 = vst.msk [vmem:[%s226 + $0x128] sm:$0xff] %vm298, %v5213
      %5278 = vst.msk [vmem:[%s226 + $0x130] sm:$0xff] %vm298, %v5214
      %5279 = vst.msk [vmem:[%s226 + $0x138] sm:$0xff] %vm298, %v5215
      %5280 = vst.msk [vmem:[%s226 + $0x140] sm:$0xff] %vm298, %v5216
      %5281 = vst.msk [vmem:[%s226 + $0x148] sm:$0xff] %vm298, %v5217
      %5282 = vst.msk [vmem:[%s226 + $0x150] sm:$0xff] %vm298, %v5218
      %5283 = vst.msk [vmem:[%s226 + $0x158] sm:$0xff] %vm298, %v5219
      %5284 = vst.msk [vmem:[%s226 + $0x160] sm:$0xff] %vm298, %v5220
      %5285 = vst.msk [vmem:[%s226 + $0x168] sm:$0xff] %vm298, %v5221
      %5286 = vst.msk [vmem:[%s226 + $0x170] sm:$0xff] %vm298, %v5222
      %5287 = vst.msk [vmem:[%s226 + $0x178] sm:$0xff] %vm298, %v5223
      %5288 = vst.msk [vmem:[%s226 + $0x180] sm:$0xff] %vm298, %v5224
      %5289 = vst.msk [vmem:[%s226 + $0x188] sm:$0xff] %vm298, %v5225
      %5290 = vst.msk [vmem:[%s226 + $0x190] sm:$0xff] %vm298, %v5226
      %5291 = vst.msk [vmem:[%s226 + $0x198] sm:$0xff] %vm298, %v5227
      %5292 = vst.msk [vmem:[%s226 + $0x1a0] sm:$0xff] %vm298, %v5228
      %5293 = vst.msk [vmem:[%s226 + $0x1a8] sm:$0xff] %vm298, %v5229
      %5294 = vst.msk [vmem:[%s226 + $0x1b0] sm:$0xff] %vm298, %v5230
      %5295 = vst.msk [vmem:[%s226 + $0x1b8] sm:$0xff] %vm298, %v5231
      %5296 = vst.msk [vmem:[%s226 + $0x1c0] sm:$0xff] %vm298, %v5232
      %5297 = vst.msk [vmem:[%s226 + $0x1c8] sm:$0xff] %vm298, %v5233
      %5298 = vst.msk [vmem:[%s226 + $0x1d0] sm:$0xff] %vm298, %v5234
      %5299 = vst.msk [vmem:[%s226 + $0x1d8] sm:$0xff] %vm298, %v5235
      %5300 = vst.msk [vmem:[%s226 + $0x1e0] sm:$0xff] %vm298, %v5236
      %5301 = vst.msk [vmem:[%s226 + $0x1e8] sm:$0xff] %vm298, %v5237
      %5302 = vst.msk [vmem:[%s226 + $0x1f0] sm:$0xff] %vm298, %v5238
      %5303 = vst.msk [vmem:[%s226 + $0x1f8] sm:$0xff] %vm298, %v5239
      %s5304 = smul.u32 64, %s16
      %p5305 = scmp.lt.s32.totalorder %s5304, 127
      %s5306 = scalar_select %p5305, %s5304, 127
      %s5307 = smul.addr %s5306, 8
      %s5308 = scalar_lea.vmem %s5, %s5307
      // Predicated region
      $region41: #{tpu_custom_call.1} parent=39 // pred_check
        %p5309 = pneg %p144
      $region42: #{tpu_custom_call.1} parent=39 // pred_check_branch
        %5311 = sbr.rel (%p5309) target = $region44
      $region43: #{tpu_custom_call.1} parent=39 // pred_region
        %s5312 = smul.u32 64, %s16
      $region44: #{tpu_custom_call.1} parent=39 // pred_fallthru
        _
    $region40: #{tpu_custom_call.1} parent=5 // pred_fallthru
      _
    %p5313 = scmp.le.s32.totalorder 2, %s11
    // Predicated region
    $region45: #{tpu_custom_call.1} parent=5 // pred_check
      %p5314 = pneg %p5313
    $region46: #{tpu_custom_call.1} parent=5 // pred_check_branch
      %5316 = sbr.rel (%p5314) target = $region48
    $region47: #{tpu_custom_call.1} parent=5 // pred_region
      %s5317 = ssub.s32 %s11, 2
      // Predicated region
      $region49: #{tpu_custom_call.1} parent=47 // pred_check
        %p5318 = pneg %p150
      $region50: #{tpu_custom_call.1} parent=47 // pred_check_branch
        %5320 = sbr.rel (%p5318) target = $region52
      $region51: #{tpu_custom_call.1} parent=47 // pred_region
        %s5321 = smul.u32 64, %s17
        %p5322 = scmp.lt.s32.totalorder %s5321, 127
        %s5323 = scalar_select %p5322, %s5321, 127
        %s5324 = smul.addr %s5323, 8
        %s5325 = scalar_lea.vmem %s5, %s5324
      $region52: #{tpu_custom_call.1} parent=47 // pred_fallthru
        _
    $region48: #{tpu_custom_call.1} parent=5 // pred_fallthru
      _
  $region6: #{tpu_custom_call.1} parent=0 // loop_footer
    %s15 = sadd.s32 1, %s11
  $region7: #{tpu_custom_call.1} parent=0 // loop_footer_branch
    %10 = sbr.rel target = $region3
  $region8: #{tpu_custom_call.1} parent=0 // loop_exit
    _

</llo_original>
